<compile_context>
chip_gen: v7x
topology: tpu7x:2x2x1
jax: 0.10.0
libtpu: 0.0.40
codegen_flags: <defaults>
</compile_context>

<pallas_src>
import jax
import jax.numpy as jnp
from jax.experimental import pallas as pl
from jax.experimental.pallas import tpu as pltpu

# ----------------------- small hyper-params (consistent with module) -------------
VOCAB_SIZE = 65      # len(chars)  (tiny-shakespeare charset)
N_EMBD     = 128     # n_embd   (scaled-down, lane-dense)
N_HEAD     = 4       # n_head
HEAD_SIZE  = N_EMBD // N_HEAD
N_LAYER    = 2       # n_layer
CHUNK_SIZE = 16      # chunk_size (block size / max T)
LN_EPS     = 1e-5    # PyTorch LayerNorm default
LM_PAD     = 128     # lm_head output columns padded to a lane-dense multiple of 128


# --------------------------------- fused kernel -----------------------------------
def fused_forward_kernel(x_ref,
                         ln1g_ref, ln1b_ref, wqkv_ref, projw_ref, projb_ref,
                         ln2g_ref, ln2b_ref, ff1w_ref, ff1b_ref, ff2w_ref, ff2b_ref,
                         lmw_ref, lmb_ref,
                         o_ref):
    """One grid step == one batch element. Everything stays in VMEM/vregs."""
    C, H, hs = N_EMBD, N_HEAD, HEAD_SIZE
    x = x_ref[0].astype(jnp.float32)                     # (T, C) f32
    T = x.shape[0]

    # causal mask (tril), built once per grid step
    row = jax.lax.broadcasted_iota(jnp.int32, (T, T), 0)
    col = jax.lax.broadcasted_iota(jnp.int32, (T, T), 1)
    causal = col <= row

    def layer_norm(v, g, b):                             # f32 math (VPU + XLU + EUP)
        mu = jnp.mean(v, axis=-1, keepdims=True)
        var = jnp.mean((v - mu) * (v - mu), axis=-1, keepdims=True)
        return (v - mu) * jax.lax.rsqrt(var + LN_EPS) * g + b

    for l in range(N_LAYER):                             # static unroll, weights resident
        # ---- self-attention sub-block: x = x + proj(heads(attn(ln1(x)))) ----------
        xn = layer_norm(x, ln1g_ref[l], ln1b_ref[l])
        # fused QKV: one lane-dense (T,128)@(128,384) bf16 matmul, f32 accumulate.
        # NOTE: the hs**-0.5 attention scale is pre-folded into the Q columns.
        qkv = jnp.dot(xn.astype(jnp.bfloat16), wqkv_ref[l],
                      preferred_element_type=jnp.float32)          # (T, 3C)
        heads = []
        for h in range(H):
            qh = qkv[:, h * hs:(h + 1) * hs].astype(jnp.bfloat16)
            kh = qkv[:, C + h * hs:C + (h + 1) * hs].astype(jnp.bfloat16)
            vh = qkv[:, 2 * C + h * hs:2 * C + (h + 1) * hs].astype(jnp.bfloat16)
            # q @ k^T via dot_general (contract last dims, no explicit transpose)
            s = jax.lax.dot_general(qh, kh, (((1,), (1,)), ((), ())),
                                    preferred_element_type=jnp.float32)
            s = jnp.where(causal, s, -1e30)              # finite mask value (no NaN risk)
            s = s - jnp.max(s, axis=-1, keepdims=True)
            e = jnp.exp(s)                               # f32 softmax (v5e-safe)
            p = e * pl.reciprocal(jnp.sum(e, axis=-1, keepdims=True), approx=True)
            heads.append(jnp.dot(p.astype(jnp.bfloat16), vh,
                                 preferred_element_type=jnp.float32))   # (T, hs)
        attn = jnp.concatenate(heads, axis=-1)           # (T, C) concat-head layout
        sa = jnp.dot(attn.astype(jnp.bfloat16), projw_ref[l],
                     preferred_element_type=jnp.float32) + projb_ref[l]
        x = x + sa                                       # residual, f32

        # ---- feed-forward sub-block: x = x + W2(relu(W1(ln2(x)))) ------------------
        xn2 = layer_norm(x, ln2g_ref[l], ln2b_ref[l])
        h1 = jnp.dot(xn2.astype(jnp.bfloat16), ff1w_ref[l],
                     preferred_element_type=jnp.float32) + ff1b_ref[l]
        h1 = jnp.maximum(h1, 0.0)
        ff = jnp.dot(h1.astype(jnp.bfloat16), ff2w_ref[l],
                     preferred_element_type=jnp.float32) + ff2b_ref[l]
        x = x + ff

    # lm_head (padded to 128 lanes -> unmasked lane-dense store).
    # NOTE: original PyTorch forward() skips ln_f before lm_head -- reproduced.
    logits = jnp.dot(x.astype(jnp.bfloat16), lmw_ref[...],
                     preferred_element_type=jnp.float32) + lmb_ref[...]
    o_ref[0] = logits.astype(o_ref.dtype)


def fused_forward_pallas(x, packed):
    """x: (B, T, C) f32; packed: dict of stacked/fused weights. Returns (B, T, LM_PAD)."""
    B, T, C = x.shape
    L = N_LAYER

    def const_spec(*shape):
        nd = len(shape)
        return pl.BlockSpec(shape, lambda b, _nd=nd: (0,) * _nd)

    in_specs = [
        pl.BlockSpec((1, T, C), lambda b: (b, 0, 0)),         # activations (per-batch tile)
        const_spec(L, 1, C), const_spec(L, 1, C),             # ln1 gamma/beta
        const_spec(L, C, 3 * C),                              # fused QKV weights (Q pre-scaled)
        const_spec(L, C, C), const_spec(L, 1, C),             # proj w/b
        const_spec(L, 1, C), const_spec(L, 1, C),             # ln2 gamma/beta
        const_spec(L, C, 4 * C), const_spec(L, 1, 4 * C),     # ff1 w/b
        const_spec(L, 4 * C, C), const_spec(L, 1, C),         # ff2 w/b
        const_spec(C, LM_PAD), const_spec(1, LM_PAD),         # lm_head w/b (padded)
    ]
    out_specs = pl.BlockSpec((1, T, LM_PAD), lambda b: (b, 0, 0))

    return pl.pallas_call(
        fused_forward_kernel,
        grid=(B,),
        out_shape=jax.ShapeDtypeStruct((B, T, LM_PAD), jnp.float32),
        in_specs=in_specs,
        out_specs=out_specs,
        compiler_params=pltpu.CompilerParams(
            dimension_semantics=("parallel",)),               # v7x: batch across 2 TCs
    )(x,
      packed["ln1_g"], packed["ln1_b"], packed["wqkv"],
      packed["proj_w"], packed["proj_b"],
      packed["ln2_g"], packed["ln2_b"],
      packed["ff1_w"], packed["ff1_b"], packed["ff2_w"], packed["ff2_b"],
      packed["lm_w"], packed["lm_b"])


# --------------------------------- params -----------------------------------------
def init_params(key):
    def nrm(k, shape):
        return 0.02 * jax.random.normal(k, shape, jnp.float32)

    keys = iter(jax.random.split(key, 8 + N_LAYER * 8))
    params = {
        "tok_emb": nrm(next(keys), (VOCAB_SIZE, N_EMBD)),
        "pos_emb": nrm(next(keys), (CHUNK_SIZE, N_EMBD)),
        "lm_w": nrm(next(keys), (N_EMBD, VOCAB_SIZE)),
        "lm_b": jnp.zeros((VOCAB_SIZE,), jnp.float32),
        # ln_f params exist in the module but are never used by forward()
        "lnf_g": jnp.ones((N_EMBD,), jnp.float32),
        "lnf_b": jnp.zeros((N_EMBD,), jnp.float32),
        "blocks": [],
    }
    for _ in range(N_LAYER):
        blk = {
            "ln1_g": jnp.ones((N_EMBD,), jnp.float32),
            "ln1_b": jnp.zeros((N_EMBD,), jnp.float32),
            "wq": nrm(next(keys), (N_HEAD, N_EMBD, HEAD_SIZE)),
            "wk": nrm(next(keys), (N_HEAD, N_EMBD, HEAD_SIZE)),
            "wv": nrm(next(keys), (N_HEAD, N_EMBD, HEAD_SIZE)),
            "proj_w": nrm(next(keys), (N_EMBD, N_EMBD)),
            "proj_b": jnp.zeros((N_EMBD,), jnp.float32),
            "ln2_g": jnp.ones((N_EMBD,), jnp.float32),
            "ln2_b": jnp.zeros((N_EMBD,), jnp.float32),
            "ff1_w": nrm(next(keys), (N_EMBD, 4 * N_EMBD)),
            "ff1_b": jnp.zeros((4 * N_EMBD,), jnp.float32),
            "ff2_w": nrm(next(keys), (4 * N_EMBD, N_EMBD)),
            "ff2_b": jnp.zeros((N_EMBD,), jnp.float32),
        }
        params["blocks"].append(blk)
    return params


def pack_params(params):
    """Stack per-layer weights, fuse QKV (with attention scale folded into Q),
    cast matmul weights to bf16, pad lm_head to a lane-dense width."""
    C = N_EMBD
    q_scale = HEAD_SIZE ** -0.5

    def to_full(w):  # (H, C, hs) -> (C, H*hs) with head h at columns h*hs:(h+1)*hs
        return jnp.transpose(w, (1, 0, 2)).reshape(C, C)

    ln1g, ln1b, wqkv, pw, pb, ln2g, ln2b, f1w, f1b, f2w, f2b = ([] for _ in range(11))
    for blk in params["blocks"]:
        ln1g.append(blk["ln1_g"].reshape(1, C))
        ln1b.append(blk["ln1_b"].reshape(1, C))
        wqkv.append(jnp.concatenate(
            [to_full(blk["wq"]) * q_scale,           # fold hs**-0.5 into Q projection
             to_full(blk["wk"]), to_full(blk["wv"])], axis=1))
        pw.append(blk["proj_w"])
        pb.append(blk["proj_b"].reshape(1, C))
        ln2g.append(blk["ln2_g"].reshape(1, C))
        ln2b.append(blk["ln2_b"].reshape(1, C))
        f1w.append(blk["ff1_w"])
        f1b.append(blk["ff1_b"].reshape(1, 4 * C))
        f2w.append(blk["ff2_w"])
        f2b.append(blk["ff2_b"].reshape(1, C))

    st = lambda xs, dt: jnp.stack(xs).astype(dt)
    lm_w = jnp.zeros((C, LM_PAD), jnp.float32).at[:, :VOCAB_SIZE].set(params["lm_w"])
    lm_b = jnp.zeros((1, LM_PAD), jnp.float32).at[0, :VOCAB_SIZE].set(params["lm_b"])
    return {
        "ln1_g": st(ln1g, jnp.float32), "ln1_b": st(ln1b, jnp.float32),
        "wqkv": st(wqkv, jnp.bfloat16),
        "proj_w": st(pw, jnp.bfloat16), "proj_b": st(pb, jnp.float32),
        "ln2_g": st(ln2g, jnp.float32), "ln2_b": st(ln2b, jnp.float32),
        "ff1_w": st(f1w, jnp.bfloat16), "ff1_b": st(f1b, jnp.float32),
        "ff2_w": st(f2w, jnp.bfloat16), "ff2_b": st(f2b, jnp.float32),
        "lm_w": lm_w.astype(jnp.bfloat16), "lm_b": lm_b,
    }


# --------------------------------- model ------------------------------------------
def forward(params, idx):
    """Fused Pallas forward. idx: (B, T) int32 token ids. Returns logits (B, T, vocab)."""
    B, T = idx.shape
    # embedding gathers are glue (plain JAX)
    tok = params["tok_emb"][idx]                 # (B, T, C)
    pos = params["pos_emb"][:T]                  # (T, C)
    x = (tok + pos).astype(jnp.float32)          # (B, T, C)

    packed = pack_params(params)                 # pack once per trace (jit-cached)
    logits_pad = fused_forward_pallas(x, packed)          # (B, T, LM_PAD)
    return logits_pad[:, :, :VOCAB_SIZE]
    # TODO(synk): targets/cross-entropy-loss path not implemented (targets=None case only).


# ------------------------- pure-JAX f32 reference (for checking) -------------------
def reference_forward(params, idx):
    B, T = idx.shape
    C = N_EMBD
    x = params["tok_emb"][idx] + params["pos_emb"][:T]
    mask = jnp.tril(jnp.ones((T, T), bool))
    for blk in params["blocks"]:
        ln1 = (x - x.mean(-1, keepdims=True)) * jax.lax.rsqrt(x.var(-1, keepdims=True) + LN_EPS)
        ln1 = ln1 * blk["ln1_g"] + blk["ln1_b"]
        q = jnp.einsum("btc,hcd->bhtd", ln1, blk["wq"])
        k = jnp.einsum("btc,hcd->bhtd", ln1, blk["wk"])
        v = jnp.einsum("btc,hcd->bhtd", ln1, blk["wv"])
        wei = jnp.einsum("bhtd,bhsd->bhts", q, k) * (HEAD_SIZE ** -0.5)
        wei = jnp.where(mask, wei, -jnp.inf)
        p = jax.nn.softmax(wei, axis=-1)
        out = jnp.einsum("bhts,bhsd->bhtd", p, v)
        out = jnp.transpose(out, (0, 2, 1, 3)).reshape(B, T, C)
        x = x + out @ blk["proj_w"] + blk["proj_b"]
        ln2 = (x - x.mean(-1, keepdims=True)) * jax.lax.rsqrt(x.var(-1, keepdims=True) + LN_EPS)
        ln2 = ln2 * blk["ln2_g"] + blk["ln2_b"]
        h = jnp.maximum(ln2 @ blk["ff1_w"] + blk["ff1_b"], 0.0)
        x = x + h @ blk["ff2_w"] + blk["ff2_b"]
    return x @ params["lm_w"] + params["lm_b"]


# ----------------------------------- main ------------------------------------------
if __name__ == "__main__":
    key = jax.random.PRNGKey(0)
    pkey, ikey = jax.random.split(key)
    params = init_params(pkey)

    B, T = 2, CHUNK_SIZE
    idx = jax.random.randint(ikey, (B, T), 0, VOCAB_SIZE, dtype=jnp.int32)

    forward_jit = jax.jit(forward)               # one trace: pack + gather + fused kernel
    logits = forward_jit(params, idx)
    jax.block_until_ready(logits)

    ref = reference_forward(params, idx)
    assert logits.shape == (B, T, VOCAB_SIZE)
    # bf16 matmul operands (f32 accumulation) vs pure-f32 reference -> slightly looser tol
    max_err = float(jnp.max(jnp.abs(logits - ref)))
    assert jnp.allclose(logits, ref, atol=2e-2, rtol=2e-2), \
        f"mismatch vs JAX reference (max abs err {max_err})"

    print("KERNEL_OK")
</pallas_src>

<mosaic_0001>
module attributes {stable_mosaic.version = 11 : i64} {
  func.func @fused_forward_kernel(%arg0: i32, %arg1: memref<1x16x128xf32, #tpu.memory_space<vmem>>, %arg2: memref<2x1x128xf32, #tpu.memory_space<vmem>>, %arg3: memref<2x1x128xf32, #tpu.memory_space<vmem>>, %arg4: memref<2x128x384xbf16, #tpu.memory_space<vmem>>, %arg5: memref<2x128x128xbf16, #tpu.memory_space<vmem>>, %arg6: memref<2x1x128xf32, #tpu.memory_space<vmem>>, %arg7: memref<2x1x128xf32, #tpu.memory_space<vmem>>, %arg8: memref<2x1x128xf32, #tpu.memory_space<vmem>>, %arg9: memref<2x128x512xbf16, #tpu.memory_space<vmem>>, %arg10: memref<2x1x512xf32, #tpu.memory_space<vmem>>, %arg11: memref<2x512x128xbf16, #tpu.memory_space<vmem>>, %arg12: memref<2x1x128xf32, #tpu.memory_space<vmem>>, %arg13: memref<128x128xbf16, #tpu.memory_space<vmem>>, %arg14: memref<1x128xf32, #tpu.memory_space<vmem>>, %arg15: memref<1x16x128xf32, #tpu.memory_space<vmem>>) attributes {dimension_semantics = [#tpu.dimension_semantics<parallel>], iteration_bounds = array<i64: 2>, scalar_prefetch = 0 : i64, scratch_operands = 0 : i64, tpu.core_type = #tpu.core_type<tc>, window_params = [{transform_indices = @transform_0, window_bounds = array<i64: 1, 16, 128>}, {pipeline_mode = #tpu.pipeline_mode<synchronous>, transform_indices = @transform_1, window_bounds = array<i64: 2, 1, 128>}, {pipeline_mode = #tpu.pipeline_mode<synchronous>, transform_indices = @transform_2, window_bounds = array<i64: 2, 1, 128>}, {pipeline_mode = #tpu.pipeline_mode<synchronous>, transform_indices = @transform_3, window_bounds = array<i64: 2, 128, 384>}, {pipeline_mode = #tpu.pipeline_mode<synchronous>, transform_indices = @transform_4, window_bounds = array<i64: 2, 128, 128>}, {pipeline_mode = #tpu.pipeline_mode<synchronous>, transform_indices = @transform_5, window_bounds = array<i64: 2, 1, 128>}, {pipeline_mode = #tpu.pipeline_mode<synchronous>, transform_indices = @transform_6, window_bounds = array<i64: 2, 1, 128>}, {pipeline_mode = #tpu.pipeline_mode<synchronous>, transform_indices = @transform_7, window_bounds = array<i64: 2, 1, 128>}, {pipeline_mode = #tpu.pipeline_mode<synchronous>, transform_indices = @transform_8, window_bounds = array<i64: 2, 128, 512>}, {pipeline_mode = #tpu.pipeline_mode<synchronous>, transform_indices = @transform_9, window_bounds = array<i64: 2, 1, 512>}, {pipeline_mode = #tpu.pipeline_mode<synchronous>, transform_indices = @transform_10, window_bounds = array<i64: 2, 512, 128>}, {pipeline_mode = #tpu.pipeline_mode<synchronous>, transform_indices = @transform_11, window_bounds = array<i64: 2, 1, 128>}, {pipeline_mode = #tpu.pipeline_mode<synchronous>, transform_indices = @transform_12, window_bounds = array<i64: 128, 128>}, {pipeline_mode = #tpu.pipeline_mode<synchronous>, transform_indices = @transform_13, window_bounds = array<i64: 1, 128>}, {transform_indices = @transform_14, window_bounds = array<i64: 1, 16, 128>}]} {
    %c0 = arith.constant 0 : index
    %c0_0 = arith.constant 0 : index
    %c0_1 = arith.constant 0 : index
    %0 = vector.load %arg1[%c0, %c0_0, %c0_1] : memref<1x16x128xf32, #tpu.memory_space<vmem>>, vector<1x16x128xf32>
    %1 = vector.shape_cast %0 : vector<1x16x128xf32> to vector<16x128xf32>
    %2 = tpu.iota {dimensions = array<i32: 0>} : vector<16x16xi32>
    %3 = tpu.iota {dimensions = array<i32: 1>} : vector<16x16xi32>
    %4 = arith.cmpi sle, %3, %2 : vector<16x16xi32>
    %c0_2 = arith.constant 0 : index
    %c0_3 = arith.constant 0 : index
    %c0_4 = arith.constant 0 : index
    %5 = vector.load %arg2[%c0_2, %c0_3, %c0_4] : memref<2x1x128xf32, #tpu.memory_space<vmem>>, vector<1x1x128xf32>
    %6 = vector.shape_cast %5 : vector<1x1x128xf32> to vector<1x128xf32>
    %c0_5 = arith.constant 0 : index
    %c0_6 = arith.constant 0 : index
    %c0_7 = arith.constant 0 : index
    %7 = vector.load %arg3[%c0_5, %c0_6, %c0_7] : memref<2x1x128xf32, #tpu.memory_space<vmem>>, vector<1x1x128xf32>
    %8 = vector.shape_cast %7 : vector<1x1x128xf32> to vector<1x128xf32>
    %cst = arith.constant dense<0.000000e+00> : vector<16xf32>
    %9 = vector.multi_reduction <add>, %1, %cst [1] : vector<16x128xf32> to vector<16xf32>
    %10 = vector.shape_cast %9 : vector<16xf32> to vector<16x1xf32>
    %cst_8 = arith.constant 1.280000e+02 : f32
    %11 = vector.broadcast %cst_8 : f32 to vector<16x1xf32>
    %12 = arith.divf %10, %11 : vector<16x1xf32>
    %13 = vector.broadcast %12 : vector<16x1xf32> to vector<16x128xf32>
    %14 = arith.subf %1, %13 : vector<16x128xf32>
    %15 = vector.broadcast %12 : vector<16x1xf32> to vector<16x128xf32>
    %16 = arith.subf %1, %15 : vector<16x128xf32>
    %17 = arith.mulf %14, %16 : vector<16x128xf32>
    %cst_9 = arith.constant dense<0.000000e+00> : vector<16xf32>
    %18 = vector.multi_reduction <add>, %17, %cst_9 [1] : vector<16x128xf32> to vector<16xf32>
    %19 = vector.shape_cast %18 : vector<16xf32> to vector<16x1xf32>
    %cst_10 = arith.constant 1.280000e+02 : f32
    %20 = vector.broadcast %cst_10 : f32 to vector<16x1xf32>
    %21 = arith.divf %19, %20 : vector<16x1xf32>
    %22 = vector.broadcast %12 : vector<16x1xf32> to vector<16x128xf32>
    %23 = arith.subf %1, %22 : vector<16x128xf32>
    %cst_11 = arith.constant 9.99999974E-6 : f32
    %24 = vector.broadcast %cst_11 : f32 to vector<16x1xf32>
    %25 = arith.addf %21, %24 : vector<16x1xf32>
    %26 = math.rsqrt %25 : vector<16x1xf32>
    %27 = vector.broadcast %26 : vector<16x1xf32> to vector<16x128xf32>
    %28 = arith.mulf %23, %27 : vector<16x128xf32>
    %29 = vector.broadcast %6 : vector<1x128xf32> to vector<16x128xf32>
    %30 = arith.mulf %28, %29 : vector<16x128xf32>
    %31 = vector.broadcast %8 : vector<1x128xf32> to vector<16x128xf32>
    %32 = arith.addf %30, %31 : vector<16x128xf32>
    %33 = arith.truncf %32 : vector<16x128xf32> to vector<16x128xbf16>
    %c0_12 = arith.constant 0 : index
    %c0_13 = arith.constant 0 : index
    %c0_14 = arith.constant 0 : index
    %34 = vector.load %arg4[%c0_12, %c0_13, %c0_14] : memref<2x128x384xbf16, #tpu.memory_space<vmem>>, vector<1x128x384xbf16>
    %35 = vector.shape_cast %34 : vector<1x128x384xbf16> to vector<128x384xbf16>
    %cst_15 = arith.constant dense<0.000000e+00> : vector<16x384xf32>
    %36 = tpu.matmul %33, %35, %cst_15 {dimension_numbers = #tpu.dot_dimension_numbers<[1], [0], [0], [1], [0, 0, 1, 1], [], []>} : vector<16x128xbf16>, vector<128x384xbf16>, vector<16x384xf32> -> vector<16x384xf32>
    %37 = vector.extract_strided_slice %36 {offsets = [0, 0], sizes = [16, 32], strides = [1, 1]} : vector<16x384xf32> to vector<16x32xf32>
    %38 = arith.truncf %37 : vector<16x32xf32> to vector<16x32xbf16>
    %39 = vector.extract_strided_slice %36 {offsets = [0, 128], sizes = [16, 32], strides = [1, 1]} : vector<16x384xf32> to vector<16x32xf32>
    %40 = arith.truncf %39 : vector<16x32xf32> to vector<16x32xbf16>
    %41 = vector.extract_strided_slice %36 {offsets = [0, 256], sizes = [16, 32], strides = [1, 1]} : vector<16x384xf32> to vector<16x32xf32>
    %42 = arith.truncf %41 : vector<16x32xf32> to vector<16x32xbf16>
    %cst_16 = arith.constant dense<0.000000e+00> : vector<16x16xf32>
    %43 = tpu.matmul %38, %40, %cst_16 {dimension_numbers = #tpu.dot_dimension_numbers<[1], [1], [0], [0], [0, 0, 1, 0], [], []>} : vector<16x32xbf16>, vector<16x32xbf16>, vector<16x16xf32> -> vector<16x16xf32>
    %cst_17 = arith.constant -1.000000e+30 : f32
    %44 = vector.broadcast %cst_17 : f32 to vector<16x16xf32>
    %45 = arith.select %4, %43, %44 : vector<16x16xi1>, vector<16x16xf32>
    %cst_18 = arith.constant dense<0xFF800000> : vector<16xf32>
    %46 = vector.multi_reduction <maximumf>, %45, %cst_18 [1] : vector<16x16xf32> to vector<16xf32>
    %47 = vector.shape_cast %46 : vector<16xf32> to vector<16x1xf32>
    %48 = vector.broadcast %47 : vector<16x1xf32> to vector<16x16xf32>
    %49 = arith.subf %45, %48 : vector<16x16xf32>
    %50 = math.exp %49 : vector<16x16xf32>
    %cst_19 = arith.constant dense<0.000000e+00> : vector<16xf32>
    %51 = vector.multi_reduction <add>, %50, %cst_19 [1] : vector<16x16xf32> to vector<16xf32>
    %52 = vector.shape_cast %51 : vector<16xf32> to vector<16x1xf32>
    %53 = tpu.reciprocal %52 {approx = true} : vector<16x1xf32> -> vector<16x1xf32>
    %54 = vector.broadcast %53 : vector<16x1xf32> to vector<16x16xf32>
    %55 = arith.mulf %50, %54 : vector<16x16xf32>
    %56 = arith.truncf %55 : vector<16x16xf32> to vector<16x16xbf16>
    %cst_20 = arith.constant dense<0.000000e+00> : vector<16x32xf32>
    %57 = tpu.matmul %56, %42, %cst_20 {dimension_numbers = #tpu.dot_dimension_numbers<[1], [0], [0], [1], [0, 0, 1, 1], [], []>} : vector<16x16xbf16>, vector<16x32xbf16>, vector<16x32xf32> -> vector<16x32xf32>
    %58 = vector.extract_strided_slice %36 {offsets = [0, 32], sizes = [16, 32], strides = [1, 1]} : vector<16x384xf32> to vector<16x32xf32>
    %59 = arith.truncf %58 : vector<16x32xf32> to vector<16x32xbf16>
    %60 = vector.extract_strided_slice %36 {offsets = [0, 160], sizes = [16, 32], strides = [1, 1]} : vector<16x384xf32> to vector<16x32xf32>
    %61 = arith.truncf %60 : vector<16x32xf32> to vector<16x32xbf16>
    %62 = vector.extract_strided_slice %36 {offsets = [0, 288], sizes = [16, 32], strides = [1, 1]} : vector<16x384xf32> to vector<16x32xf32>
    %63 = arith.truncf %62 : vector<16x32xf32> to vector<16x32xbf16>
    %cst_21 = arith.constant dense<0.000000e+00> : vector<16x16xf32>
    %64 = tpu.matmul %59, %61, %cst_21 {dimension_numbers = #tpu.dot_dimension_numbers<[1], [1], [0], [0], [0, 0, 1, 0], [], []>} : vector<16x32xbf16>, vector<16x32xbf16>, vector<16x16xf32> -> vector<16x16xf32>
    %cst_22 = arith.constant -1.000000e+30 : f32
    %65 = vector.broadcast %cst_22 : f32 to vector<16x16xf32>
    %66 = arith.select %4, %64, %65 : vector<16x16xi1>, vector<16x16xf32>
    %cst_23 = arith.constant dense<0xFF800000> : vector<16xf32>
    %67 = vector.multi_reduction <maximumf>, %66, %cst_23 [1] : vector<16x16xf32> to vector<16xf32>
    %68 = vector.shape_cast %67 : vector<16xf32> to vector<16x1xf32>
    %69 = vector.broadcast %68 : vector<16x1xf32> to vector<16x16xf32>
    %70 = arith.subf %66, %69 : vector<16x16xf32>
    %71 = math.exp %70 : vector<16x16xf32>
    %cst_24 = arith.constant dense<0.000000e+00> : vector<16xf32>
    %72 = vector.multi_reduction <add>, %71, %cst_24 [1] : vector<16x16xf32> to vector<16xf32>
    %73 = vector.shape_cast %72 : vector<16xf32> to vector<16x1xf32>
    %74 = tpu.reciprocal %73 {approx = true} : vector<16x1xf32> -> vector<16x1xf32>
    %75 = vector.broadcast %74 : vector<16x1xf32> to vector<16x16xf32>
    %76 = arith.mulf %71, %75 : vector<16x16xf32>
    %77 = arith.truncf %76 : vector<16x16xf32> to vector<16x16xbf16>
    %cst_25 = arith.constant dense<0.000000e+00> : vector<16x32xf32>
    %78 = tpu.matmul %77, %63, %cst_25 {dimension_numbers = #tpu.dot_dimension_numbers<[1], [0], [0], [1], [0, 0, 1, 1], [], []>} : vector<16x16xbf16>, vector<16x32xbf16>, vector<16x32xf32> -> vector<16x32xf32>
    %79 = vector.extract_strided_slice %36 {offsets = [0, 64], sizes = [16, 32], strides = [1, 1]} : vector<16x384xf32> to vector<16x32xf32>
    %80 = arith.truncf %79 : vector<16x32xf32> to vector<16x32xbf16>
    %81 = vector.extract_strided_slice %36 {offsets = [0, 192], sizes = [16, 32], strides = [1, 1]} : vector<16x384xf32> to vector<16x32xf32>
    %82 = arith.truncf %81 : vector<16x32xf32> to vector<16x32xbf16>
    %83 = vector.extract_strided_slice %36 {offsets = [0, 320], sizes = [16, 32], strides = [1, 1]} : vector<16x384xf32> to vector<16x32xf32>
    %84 = arith.truncf %83 : vector<16x32xf32> to vector<16x32xbf16>
    %cst_26 = arith.constant dense<0.000000e+00> : vector<16x16xf32>
    %85 = tpu.matmul %80, %82, %cst_26 {dimension_numbers = #tpu.dot_dimension_numbers<[1], [1], [0], [0], [0, 0, 1, 0], [], []>} : vector<16x32xbf16>, vector<16x32xbf16>, vector<16x16xf32> -> vector<16x16xf32>
    %cst_27 = arith.constant -1.000000e+30 : f32
    %86 = vector.broadcast %cst_27 : f32 to vector<16x16xf32>
    %87 = arith.select %4, %85, %86 : vector<16x16xi1>, vector<16x16xf32>
    %cst_28 = arith.constant dense<0xFF800000> : vector<16xf32>
    %88 = vector.multi_reduction <maximumf>, %87, %cst_28 [1] : vector<16x16xf32> to vector<16xf32>
    %89 = vector.shape_cast %88 : vector<16xf32> to vector<16x1xf32>
    %90 = vector.broadcast %89 : vector<16x1xf32> to vector<16x16xf32>
    %91 = arith.subf %87, %90 : vector<16x16xf32>
    %92 = math.exp %91 : vector<16x16xf32>
    %cst_29 = arith.constant dense<0.000000e+00> : vector<16xf32>
    %93 = vector.multi_reduction <add>, %92, %cst_29 [1] : vector<16x16xf32> to vector<16xf32>
    %94 = vector.shape_cast %93 : vector<16xf32> to vector<16x1xf32>
    %95 = tpu.reciprocal %94 {approx = true} : vector<16x1xf32> -> vector<16x1xf32>
    %96 = vector.broadcast %95 : vector<16x1xf32> to vector<16x16xf32>
    %97 = arith.mulf %92, %96 : vector<16x16xf32>
    %98 = arith.truncf %97 : vector<16x16xf32> to vector<16x16xbf16>
    %cst_30 = arith.constant dense<0.000000e+00> : vector<16x32xf32>
    %99 = tpu.matmul %98, %84, %cst_30 {dimension_numbers = #tpu.dot_dimension_numbers<[1], [0], [0], [1], [0, 0, 1, 1], [], []>} : vector<16x16xbf16>, vector<16x32xbf16>, vector<16x32xf32> -> vector<16x32xf32>
    %100 = vector.extract_strided_slice %36 {offsets = [0, 96], sizes = [16, 32], strides = [1, 1]} : vector<16x384xf32> to vector<16x32xf32>
    %101 = arith.truncf %100 : vector<16x32xf32> to vector<16x32xbf16>
    %102 = vector.extract_strided_slice %36 {offsets = [0, 224], sizes = [16, 32], strides = [1, 1]} : vector<16x384xf32> to vector<16x32xf32>
    %103 = arith.truncf %102 : vector<16x32xf32> to vector<16x32xbf16>
    %104 = vector.extract_strided_slice %36 {offsets = [0, 352], sizes = [16, 32], strides = [1, 1]} : vector<16x384xf32> to vector<16x32xf32>
    %105 = arith.truncf %104 : vector<16x32xf32> to vector<16x32xbf16>
    %cst_31 = arith.constant dense<0.000000e+00> : vector<16x16xf32>
    %106 = tpu.matmul %101, %103, %cst_31 {dimension_numbers = #tpu.dot_dimension_numbers<[1], [1], [0], [0], [0, 0, 1, 0], [], []>} : vector<16x32xbf16>, vector<16x32xbf16>, vector<16x16xf32> -> vector<16x16xf32>
    %cst_32 = arith.constant -1.000000e+30 : f32
    %107 = vector.broadcast %cst_32 : f32 to vector<16x16xf32>
    %108 = arith.select %4, %106, %107 : vector<16x16xi1>, vector<16x16xf32>
    %cst_33 = arith.constant dense<0xFF800000> : vector<16xf32>
    %109 = vector.multi_reduction <maximumf>, %108, %cst_33 [1] : vector<16x16xf32> to vector<16xf32>
    %110 = vector.shape_cast %109 : vector<16xf32> to vector<16x1xf32>
    %111 = vector.broadcast %110 : vector<16x1xf32> to vector<16x16xf32>
    %112 = arith.subf %108, %111 : vector<16x16xf32>
    %113 = math.exp %112 : vector<16x16xf32>
    %cst_34 = arith.constant dense<0.000000e+00> : vector<16xf32>
    %114 = vector.multi_reduction <add>, %113, %cst_34 [1] : vector<16x16xf32> to vector<16xf32>
    %115 = vector.shape_cast %114 : vector<16xf32> to vector<16x1xf32>
    %116 = tpu.reciprocal %115 {approx = true} : vector<16x1xf32> -> vector<16x1xf32>
    %117 = vector.broadcast %116 : vector<16x1xf32> to vector<16x16xf32>
    %118 = arith.mulf %113, %117 : vector<16x16xf32>
    %119 = arith.truncf %118 : vector<16x16xf32> to vector<16x16xbf16>
    %cst_35 = arith.constant dense<0.000000e+00> : vector<16x32xf32>
    %120 = tpu.matmul %119, %105, %cst_35 {dimension_numbers = #tpu.dot_dimension_numbers<[1], [0], [0], [1], [0, 0, 1, 1], [], []>} : vector<16x16xbf16>, vector<16x32xbf16>, vector<16x32xf32> -> vector<16x32xf32>
    %121 = tpu.concatenate %57, %78, %99, %120 in 1 : vector<16x32xf32>, vector<16x32xf32>, vector<16x32xf32>, vector<16x32xf32> -> vector<16x128xf32>
    %122 = arith.truncf %121 : vector<16x128xf32> to vector<16x128xbf16>
    %c0_36 = arith.constant 0 : index
    %c0_37 = arith.constant 0 : index
    %c0_38 = arith.constant 0 : index
    %123 = vector.load %arg5[%c0_36, %c0_37, %c0_38] : memref<2x128x128xbf16, #tpu.memory_space<vmem>>, vector<1x128x128xbf16>
    %124 = vector.shape_cast %123 : vector<1x128x128xbf16> to vector<128x128xbf16>
    %cst_39 = arith.constant dense<0.000000e+00> : vector<16x128xf32>
    %125 = tpu.matmul %122, %124, %cst_39 {dimension_numbers = #tpu.dot_dimension_numbers<[1], [0], [0], [1], [0, 0, 1, 1], [], []>} : vector<16x128xbf16>, vector<128x128xbf16>, vector<16x128xf32> -> vector<16x128xf32>
    %c0_40 = arith.constant 0 : index
    %c0_41 = arith.constant 0 : index
    %c0_42 = arith.constant 0 : index
    %126 = vector.load %arg6[%c0_40, %c0_41, %c0_42] : memref<2x1x128xf32, #tpu.memory_space<vmem>>, vector<1x1x128xf32>
    %127 = vector.shape_cast %126 : vector<1x1x128xf32> to vector<1x128xf32>
    %128 = vector.broadcast %127 : vector<1x128xf32> to vector<16x128xf32>
    %129 = arith.addf %125, %128 : vector<16x128xf32>
    %130 = arith.addf %1, %129 : vector<16x128xf32>
    %c0_43 = arith.constant 0 : index
    %c0_44 = arith.constant 0 : index
    %c0_45 = arith.constant 0 : index
    %131 = vector.load %arg7[%c0_43, %c0_44, %c0_45] : memref<2x1x128xf32, #tpu.memory_space<vmem>>, vector<1x1x128xf32>
    %132 = vector.shape_cast %131 : vector<1x1x128xf32> to vector<1x128xf32>
    %c0_46 = arith.constant 0 : index
    %c0_47 = arith.constant 0 : index
    %c0_48 = arith.constant 0 : index
    %133 = vector.load %arg8[%c0_46, %c0_47, %c0_48] : memref<2x1x128xf32, #tpu.memory_space<vmem>>, vector<1x1x128xf32>
    %134 = vector.shape_cast %133 : vector<1x1x128xf32> to vector<1x128xf32>
    %cst_49 = arith.constant dense<0.000000e+00> : vector<16xf32>
    %135 = vector.multi_reduction <add>, %130, %cst_49 [1] : vector<16x128xf32> to vector<16xf32>
    %136 = vector.shape_cast %135 : vector<16xf32> to vector<16x1xf32>
    %cst_50 = arith.constant 1.280000e+02 : f32
    %137 = vector.broadcast %cst_50 : f32 to vector<16x1xf32>
    %138 = arith.divf %136, %137 : vector<16x1xf32>
    %139 = vector.broadcast %138 : vector<16x1xf32> to vector<16x128xf32>
    %140 = arith.subf %130, %139 : vector<16x128xf32>
    %141 = vector.broadcast %138 : vector<16x1xf32> to vector<16x128xf32>
    %142 = arith.subf %130, %141 : vector<16x128xf32>
    %143 = arith.mulf %140, %142 : vector<16x128xf32>
    %cst_51 = arith.constant dense<0.000000e+00> : vector<16xf32>
    %144 = vector.multi_reduction <add>, %143, %cst_51 [1] : vector<16x128xf32> to vector<16xf32>
    %145 = vector.shape_cast %144 : vector<16xf32> to vector<16x1xf32>
    %cst_52 = arith.constant 1.280000e+02 : f32
    %146 = vector.broadcast %cst_52 : f32 to vector<16x1xf32>
    %147 = arith.divf %145, %146 : vector<16x1xf32>
    %148 = vector.broadcast %138 : vector<16x1xf32> to vector<16x128xf32>
    %149 = arith.subf %130, %148 : vector<16x128xf32>
    %cst_53 = arith.constant 9.99999974E-6 : f32
    %150 = vector.broadcast %cst_53 : f32 to vector<16x1xf32>
    %151 = arith.addf %147, %150 : vector<16x1xf32>
    %152 = math.rsqrt %151 : vector<16x1xf32>
    %153 = vector.broadcast %152 : vector<16x1xf32> to vector<16x128xf32>
    %154 = arith.mulf %149, %153 : vector<16x128xf32>
    %155 = vector.broadcast %132 : vector<1x128xf32> to vector<16x128xf32>
    %156 = arith.mulf %154, %155 : vector<16x128xf32>
    %157 = vector.broadcast %134 : vector<1x128xf32> to vector<16x128xf32>
    %158 = arith.addf %156, %157 : vector<16x128xf32>
    %159 = arith.truncf %158 : vector<16x128xf32> to vector<16x128xbf16>
    %c0_54 = arith.constant 0 : index
    %c0_55 = arith.constant 0 : index
    %c0_56 = arith.constant 0 : index
    %160 = vector.load %arg9[%c0_54, %c0_55, %c0_56] : memref<2x128x512xbf16, #tpu.memory_space<vmem>>, vector<1x128x512xbf16>
    %161 = vector.shape_cast %160 : vector<1x128x512xbf16> to vector<128x512xbf16>
    %cst_57 = arith.constant dense<0.000000e+00> : vector<16x512xf32>
    %162 = tpu.matmul %159, %161, %cst_57 {dimension_numbers = #tpu.dot_dimension_numbers<[1], [0], [0], [1], [0, 0, 1, 1], [], []>} : vector<16x128xbf16>, vector<128x512xbf16>, vector<16x512xf32> -> vector<16x512xf32>
    %c0_58 = arith.constant 0 : index
    %c0_59 = arith.constant 0 : index
    %c0_60 = arith.constant 0 : index
    %163 = vector.load %arg10[%c0_58, %c0_59, %c0_60] : memref<2x1x512xf32, #tpu.memory_space<vmem>>, vector<1x1x512xf32>
    %164 = vector.shape_cast %163 : vector<1x1x512xf32> to vector<1x512xf32>
    %165 = vector.broadcast %164 : vector<1x512xf32> to vector<16x512xf32>
    %166 = arith.addf %162, %165 : vector<16x512xf32>
    %cst_61 = arith.constant 0.000000e+00 : f32
    %167 = vector.broadcast %cst_61 : f32 to vector<16x512xf32>
    %168 = arith.maximumf %166, %167 : vector<16x512xf32>
    %169 = arith.truncf %168 : vector<16x512xf32> to vector<16x512xbf16>
    %c0_62 = arith.constant 0 : index
    %c0_63 = arith.constant 0 : index
    %c0_64 = arith.constant 0 : index
    %170 = vector.load %arg11[%c0_62, %c0_63, %c0_64] : memref<2x512x128xbf16, #tpu.memory_space<vmem>>, vector<1x512x128xbf16>
    %171 = vector.shape_cast %170 : vector<1x512x128xbf16> to vector<512x128xbf16>
    %cst_65 = arith.constant dense<0.000000e+00> : vector<16x128xf32>
    %172 = tpu.matmul %169, %171, %cst_65 {dimension_numbers = #tpu.dot_dimension_numbers<[1], [0], [0], [1], [0, 0, 1, 1], [], []>} : vector<16x512xbf16>, vector<512x128xbf16>, vector<16x128xf32> -> vector<16x128xf32>
    %c0_66 = arith.constant 0 : index
    %c0_67 = arith.constant 0 : index
    %c0_68 = arith.constant 0 : index
    %173 = vector.load %arg12[%c0_66, %c0_67, %c0_68] : memref<2x1x128xf32, #tpu.memory_space<vmem>>, vector<1x1x128xf32>
    %174 = vector.shape_cast %173 : vector<1x1x128xf32> to vector<1x128xf32>
    %175 = vector.broadcast %174 : vector<1x128xf32> to vector<16x128xf32>
    %176 = arith.addf %172, %175 : vector<16x128xf32>
    %177 = arith.addf %130, %176 : vector<16x128xf32>
    %c1 = arith.constant 1 : index
    %c0_69 = arith.constant 0 : index
    %c0_70 = arith.constant 0 : index
    %178 = vector.load %arg2[%c1, %c0_69, %c0_70] : memref<2x1x128xf32, #tpu.memory_space<vmem>>, vector<1x1x128xf32>
    %179 = vector.shape_cast %178 : vector<1x1x128xf32> to vector<1x128xf32>
    %c1_71 = arith.constant 1 : index
    %c0_72 = arith.constant 0 : index
    %c0_73 = arith.constant 0 : index
    %180 = vector.load %arg3[%c1_71, %c0_72, %c0_73] : memref<2x1x128xf32, #tpu.memory_space<vmem>>, vector<1x1x128xf32>
    %181 = vector.shape_cast %180 : vector<1x1x128xf32> to vector<1x128xf32>
    %cst_74 = arith.constant dense<0.000000e+00> : vector<16xf32>
    %182 = vector.multi_reduction <add>, %177, %cst_74 [1] : vector<16x128xf32> to vector<16xf32>
    %183 = vector.shape_cast %182 : vector<16xf32> to vector<16x1xf32>
    %cst_75 = arith.constant 1.280000e+02 : f32
    %184 = vector.broadcast %cst_75 : f32 to vector<16x1xf32>
    %185 = arith.divf %183, %184 : vector<16x1xf32>
    %186 = vector.broadcast %185 : vector<16x1xf32> to vector<16x128xf32>
    %187 = arith.subf %177, %186 : vector<16x128xf32>
    %188 = vector.broadcast %185 : vector<16x1xf32> to vector<16x128xf32>
    %189 = arith.subf %177, %188 : vector<16x128xf32>
    %190 = arith.mulf %187, %189 : vector<16x128xf32>
    %cst_76 = arith.constant dense<0.000000e+00> : vector<16xf32>
    %191 = vector.multi_reduction <add>, %190, %cst_76 [1] : vector<16x128xf32> to vector<16xf32>
    %192 = vector.shape_cast %191 : vector<16xf32> to vector<16x1xf32>
    %cst_77 = arith.constant 1.280000e+02 : f32
    %193 = vector.broadcast %cst_77 : f32 to vector<16x1xf32>
    %194 = arith.divf %192, %193 : vector<16x1xf32>
    %195 = vector.broadcast %185 : vector<16x1xf32> to vector<16x128xf32>
    %196 = arith.subf %177, %195 : vector<16x128xf32>
    %cst_78 = arith.constant 9.99999974E-6 : f32
    %197 = vector.broadcast %cst_78 : f32 to vector<16x1xf32>
    %198 = arith.addf %194, %197 : vector<16x1xf32>
    %199 = math.rsqrt %198 : vector<16x1xf32>
    %200 = vector.broadcast %199 : vector<16x1xf32> to vector<16x128xf32>
    %201 = arith.mulf %196, %200 : vector<16x128xf32>
    %202 = vector.broadcast %179 : vector<1x128xf32> to vector<16x128xf32>
    %203 = arith.mulf %201, %202 : vector<16x128xf32>
    %204 = vector.broadcast %181 : vector<1x128xf32> to vector<16x128xf32>
    %205 = arith.addf %203, %204 : vector<16x128xf32>
    %206 = arith.truncf %205 : vector<16x128xf32> to vector<16x128xbf16>
    %c1_79 = arith.constant 1 : index
    %c0_80 = arith.constant 0 : index
    %c0_81 = arith.constant 0 : index
    %207 = vector.load %arg4[%c1_79, %c0_80, %c0_81] : memref<2x128x384xbf16, #tpu.memory_space<vmem>>, vector<1x128x384xbf16>
    %208 = vector.shape_cast %207 : vector<1x128x384xbf16> to vector<128x384xbf16>
    %cst_82 = arith.constant dense<0.000000e+00> : vector<16x384xf32>
    %209 = tpu.matmul %206, %208, %cst_82 {dimension_numbers = #tpu.dot_dimension_numbers<[1], [0], [0], [1], [0, 0, 1, 1], [], []>} : vector<16x128xbf16>, vector<128x384xbf16>, vector<16x384xf32> -> vector<16x384xf32>
    %210 = vector.extract_strided_slice %209 {offsets = [0, 0], sizes = [16, 32], strides = [1, 1]} : vector<16x384xf32> to vector<16x32xf32>
    %211 = arith.truncf %210 : vector<16x32xf32> to vector<16x32xbf16>
    %212 = vector.extract_strided_slice %209 {offsets = [0, 128], sizes = [16, 32], strides = [1, 1]} : vector<16x384xf32> to vector<16x32xf32>
    %213 = arith.truncf %212 : vector<16x32xf32> to vector<16x32xbf16>
    %214 = vector.extract_strided_slice %209 {offsets = [0, 256], sizes = [16, 32], strides = [1, 1]} : vector<16x384xf32> to vector<16x32xf32>
    %215 = arith.truncf %214 : vector<16x32xf32> to vector<16x32xbf16>
    %cst_83 = arith.constant dense<0.000000e+00> : vector<16x16xf32>
    %216 = tpu.matmul %211, %213, %cst_83 {dimension_numbers = #tpu.dot_dimension_numbers<[1], [1], [0], [0], [0, 0, 1, 0], [], []>} : vector<16x32xbf16>, vector<16x32xbf16>, vector<16x16xf32> -> vector<16x16xf32>
    %cst_84 = arith.constant -1.000000e+30 : f32
    %217 = vector.broadcast %cst_84 : f32 to vector<16x16xf32>
    %218 = arith.select %4, %216, %217 : vector<16x16xi1>, vector<16x16xf32>
    %cst_85 = arith.constant dense<0xFF800000> : vector<16xf32>
    %219 = vector.multi_reduction <maximumf>, %218, %cst_85 [1] : vector<16x16xf32> to vector<16xf32>
    %220 = vector.shape_cast %219 : vector<16xf32> to vector<16x1xf32>
    %221 = vector.broadcast %220 : vector<16x1xf32> to vector<16x16xf32>
    %222 = arith.subf %218, %221 : vector<16x16xf32>
    %223 = math.exp %222 : vector<16x16xf32>
    %cst_86 = arith.constant dense<0.000000e+00> : vector<16xf32>
    %224 = vector.multi_reduction <add>, %223, %cst_86 [1] : vector<16x16xf32> to vector<16xf32>
    %225 = vector.shape_cast %224 : vector<16xf32> to vector<16x1xf32>
    %226 = tpu.reciprocal %225 {approx = true} : vector<16x1xf32> -> vector<16x1xf32>
    %227 = vector.broadcast %226 : vector<16x1xf32> to vector<16x16xf32>
    %228 = arith.mulf %223, %227 : vector<16x16xf32>
    %229 = arith.truncf %228 : vector<16x16xf32> to vector<16x16xbf16>
    %cst_87 = arith.constant dense<0.000000e+00> : vector<16x32xf32>
    %230 = tpu.matmul %229, %215, %cst_87 {dimension_numbers = #tpu.dot_dimension_numbers<[1], [0], [0], [1], [0, 0, 1, 1], [], []>} : vector<16x16xbf16>, vector<16x32xbf16>, vector<16x32xf32> -> vector<16x32xf32>
    %231 = vector.extract_strided_slice %209 {offsets = [0, 32], sizes = [16, 32], strides = [1, 1]} : vector<16x384xf32> to vector<16x32xf32>
    %232 = arith.truncf %231 : vector<16x32xf32> to vector<16x32xbf16>
    %233 = vector.extract_strided_slice %209 {offsets = [0, 160], sizes = [16, 32], strides = [1, 1]} : vector<16x384xf32> to vector<16x32xf32>
    %234 = arith.truncf %233 : vector<16x32xf32> to vector<16x32xbf16>
    %235 = vector.extract_strided_slice %209 {offsets = [0, 288], sizes = [16, 32], strides = [1, 1]} : vector<16x384xf32> to vector<16x32xf32>
    %236 = arith.truncf %235 : vector<16x32xf32> to vector<16x32xbf16>
    %cst_88 = arith.constant dense<0.000000e+00> : vector<16x16xf32>
    %237 = tpu.matmul %232, %234, %cst_88 {dimension_numbers = #tpu.dot_dimension_numbers<[1], [1], [0], [0], [0, 0, 1, 0], [], []>} : vector<16x32xbf16>, vector<16x32xbf16>, vector<16x16xf32> -> vector<16x16xf32>
    %cst_89 = arith.constant -1.000000e+30 : f32
    %238 = vector.broadcast %cst_89 : f32 to vector<16x16xf32>
    %239 = arith.select %4, %237, %238 : vector<16x16xi1>, vector<16x16xf32>
    %cst_90 = arith.constant dense<0xFF800000> : vector<16xf32>
    %240 = vector.multi_reduction <maximumf>, %239, %cst_90 [1] : vector<16x16xf32> to vector<16xf32>
    %241 = vector.shape_cast %240 : vector<16xf32> to vector<16x1xf32>
    %242 = vector.broadcast %241 : vector<16x1xf32> to vector<16x16xf32>
    %243 = arith.subf %239, %242 : vector<16x16xf32>
    %244 = math.exp %243 : vector<16x16xf32>
    %cst_91 = arith.constant dense<0.000000e+00> : vector<16xf32>
    %245 = vector.multi_reduction <add>, %244, %cst_91 [1] : vector<16x16xf32> to vector<16xf32>
    %246 = vector.shape_cast %245 : vector<16xf32> to vector<16x1xf32>
    %247 = tpu.reciprocal %246 {approx = true} : vector<16x1xf32> -> vector<16x1xf32>
    %248 = vector.broadcast %247 : vector<16x1xf32> to vector<16x16xf32>
    %249 = arith.mulf %244, %248 : vector<16x16xf32>
    %250 = arith.truncf %249 : vector<16x16xf32> to vector<16x16xbf16>
    %cst_92 = arith.constant dense<0.000000e+00> : vector<16x32xf32>
    %251 = tpu.matmul %250, %236, %cst_92 {dimension_numbers = #tpu.dot_dimension_numbers<[1], [0], [0], [1], [0, 0, 1, 1], [], []>} : vector<16x16xbf16>, vector<16x32xbf16>, vector<16x32xf32> -> vector<16x32xf32>
    %252 = vector.extract_strided_slice %209 {offsets = [0, 64], sizes = [16, 32], strides = [1, 1]} : vector<16x384xf32> to vector<16x32xf32>
    %253 = arith.truncf %252 : vector<16x32xf32> to vector<16x32xbf16>
    %254 = vector.extract_strided_slice %209 {offsets = [0, 192], sizes = [16, 32], strides = [1, 1]} : vector<16x384xf32> to vector<16x32xf32>
    %255 = arith.truncf %254 : vector<16x32xf32> to vector<16x32xbf16>
    %256 = vector.extract_strided_slice %209 {offsets = [0, 320], sizes = [16, 32], strides = [1, 1]} : vector<16x384xf32> to vector<16x32xf32>
    %257 = arith.truncf %256 : vector<16x32xf32> to vector<16x32xbf16>
    %cst_93 = arith.constant dense<0.000000e+00> : vector<16x16xf32>
    %258 = tpu.matmul %253, %255, %cst_93 {dimension_numbers = #tpu.dot_dimension_numbers<[1], [1], [0], [0], [0, 0, 1, 0], [], []>} : vector<16x32xbf16>, vector<16x32xbf16>, vector<16x16xf32> -> vector<16x16xf32>
    %cst_94 = arith.constant -1.000000e+30 : f32
    %259 = vector.broadcast %cst_94 : f32 to vector<16x16xf32>
    %260 = arith.select %4, %258, %259 : vector<16x16xi1>, vector<16x16xf32>
    %cst_95 = arith.constant dense<0xFF800000> : vector<16xf32>
    %261 = vector.multi_reduction <maximumf>, %260, %cst_95 [1] : vector<16x16xf32> to vector<16xf32>
    %262 = vector.shape_cast %261 : vector<16xf32> to vector<16x1xf32>
    %263 = vector.broadcast %262 : vector<16x1xf32> to vector<16x16xf32>
    %264 = arith.subf %260, %263 : vector<16x16xf32>
    %265 = math.exp %264 : vector<16x16xf32>
    %cst_96 = arith.constant dense<0.000000e+00> : vector<16xf32>
    %266 = vector.multi_reduction <add>, %265, %cst_96 [1] : vector<16x16xf32> to vector<16xf32>
    %267 = vector.shape_cast %266 : vector<16xf32> to vector<16x1xf32>
    %268 = tpu.reciprocal %267 {approx = true} : vector<16x1xf32> -> vector<16x1xf32>
    %269 = vector.broadcast %268 : vector<16x1xf32> to vector<16x16xf32>
    %270 = arith.mulf %265, %269 : vector<16x16xf32>
    %271 = arith.truncf %270 : vector<16x16xf32> to vector<16x16xbf16>
    %cst_97 = arith.constant dense<0.000000e+00> : vector<16x32xf32>
    %272 = tpu.matmul %271, %257, %cst_97 {dimension_numbers = #tpu.dot_dimension_numbers<[1], [0], [0], [1], [0, 0, 1, 1], [], []>} : vector<16x16xbf16>, vector<16x32xbf16>, vector<16x32xf32> -> vector<16x32xf32>
    %273 = vector.extract_strided_slice %209 {offsets = [0, 96], sizes = [16, 32], strides = [1, 1]} : vector<16x384xf32> to vector<16x32xf32>
    %274 = arith.truncf %273 : vector<16x32xf32> to vector<16x32xbf16>
    %275 = vector.extract_strided_slice %209 {offsets = [0, 224], sizes = [16, 32], strides = [1, 1]} : vector<16x384xf32> to vector<16x32xf32>
    %276 = arith.truncf %275 : vector<16x32xf32> to vector<16x32xbf16>
    %277 = vector.extract_strided_slice %209 {offsets = [0, 352], sizes = [16, 32], strides = [1, 1]} : vector<16x384xf32> to vector<16x32xf32>
    %278 = arith.truncf %277 : vector<16x32xf32> to vector<16x32xbf16>
    %cst_98 = arith.constant dense<0.000000e+00> : vector<16x16xf32>
    %279 = tpu.matmul %274, %276, %cst_98 {dimension_numbers = #tpu.dot_dimension_numbers<[1], [1], [0], [0], [0, 0, 1, 0], [], []>} : vector<16x32xbf16>, vector<16x32xbf16>, vector<16x16xf32> -> vector<16x16xf32>
    %cst_99 = arith.constant -1.000000e+30 : f32
    %280 = vector.broadcast %cst_99 : f32 to vector<16x16xf32>
    %281 = arith.select %4, %279, %280 : vector<16x16xi1>, vector<16x16xf32>
    %cst_100 = arith.constant dense<0xFF800000> : vector<16xf32>
    %282 = vector.multi_reduction <maximumf>, %281, %cst_100 [1] : vector<16x16xf32> to vector<16xf32>
    %283 = vector.shape_cast %282 : vector<16xf32> to vector<16x1xf32>
    %284 = vector.broadcast %283 : vector<16x1xf32> to vector<16x16xf32>
    %285 = arith.subf %281, %284 : vector<16x16xf32>
    %286 = math.exp %285 : vector<16x16xf32>
    %cst_101 = arith.constant dense<0.000000e+00> : vector<16xf32>
    %287 = vector.multi_reduction <add>, %286, %cst_101 [1] : vector<16x16xf32> to vector<16xf32>
    %288 = vector.shape_cast %287 : vector<16xf32> to vector<16x1xf32>
    %289 = tpu.reciprocal %288 {approx = true} : vector<16x1xf32> -> vector<16x1xf32>
    %290 = vector.broadcast %289 : vector<16x1xf32> to vector<16x16xf32>
    %291 = arith.mulf %286, %290 : vector<16x16xf32>
    %292 = arith.truncf %291 : vector<16x16xf32> to vector<16x16xbf16>
    %cst_102 = arith.constant dense<0.000000e+00> : vector<16x32xf32>
    %293 = tpu.matmul %292, %278, %cst_102 {dimension_numbers = #tpu.dot_dimension_numbers<[1], [0], [0], [1], [0, 0, 1, 1], [], []>} : vector<16x16xbf16>, vector<16x32xbf16>, vector<16x32xf32> -> vector<16x32xf32>
    %294 = tpu.concatenate %230, %251, %272, %293 in 1 : vector<16x32xf32>, vector<16x32xf32>, vector<16x32xf32>, vector<16x32xf32> -> vector<16x128xf32>
    %295 = arith.truncf %294 : vector<16x128xf32> to vector<16x128xbf16>
    %c1_103 = arith.constant 1 : index
    %c0_104 = arith.constant 0 : index
    %c0_105 = arith.constant 0 : index
    %296 = vector.load %arg5[%c1_103, %c0_104, %c0_105] : memref<2x128x128xbf16, #tpu.memory_space<vmem>>, vector<1x128x128xbf16>
    %297 = vector.shape_cast %296 : vector<1x128x128xbf16> to vector<128x128xbf16>
    %cst_106 = arith.constant dense<0.000000e+00> : vector<16x128xf32>
    %298 = tpu.matmul %295, %297, %cst_106 {dimension_numbers = #tpu.dot_dimension_numbers<[1], [0], [0], [1], [0, 0, 1, 1], [], []>} : vector<16x128xbf16>, vector<128x128xbf16>, vector<16x128xf32> -> vector<16x128xf32>
    %c1_107 = arith.constant 1 : index
    %c0_108 = arith.constant 0 : index
    %c0_109 = arith.constant 0 : index
    %299 = vector.load %arg6[%c1_107, %c0_108, %c0_109] : memref<2x1x128xf32, #tpu.memory_space<vmem>>, vector<1x1x128xf32>
    %300 = vector.shape_cast %299 : vector<1x1x128xf32> to vector<1x128xf32>
    %301 = vector.broadcast %300 : vector<1x128xf32> to vector<16x128xf32>
    %302 = arith.addf %298, %301 : vector<16x128xf32>
    %303 = arith.addf %177, %302 : vector<16x128xf32>
    %c1_110 = arith.constant 1 : index
    %c0_111 = arith.constant 0 : index
    %c0_112 = arith.constant 0 : index
    %304 = vector.load %arg7[%c1_110, %c0_111, %c0_112] : memref<2x1x128xf32, #tpu.memory_space<vmem>>, vector<1x1x128xf32>
    %305 = vector.shape_cast %304 : vector<1x1x128xf32> to vector<1x128xf32>
    %c1_113 = arith.constant 1 : index
    %c0_114 = arith.constant 0 : index
    %c0_115 = arith.constant 0 : index
    %306 = vector.load %arg8[%c1_113, %c0_114, %c0_115] : memref<2x1x128xf32, #tpu.memory_space<vmem>>, vector<1x1x128xf32>
    %307 = vector.shape_cast %306 : vector<1x1x128xf32> to vector<1x128xf32>
    %cst_116 = arith.constant dense<0.000000e+00> : vector<16xf32>
    %308 = vector.multi_reduction <add>, %303, %cst_116 [1] : vector<16x128xf32> to vector<16xf32>
    %309 = vector.shape_cast %308 : vector<16xf32> to vector<16x1xf32>
    %cst_117 = arith.constant 1.280000e+02 : f32
    %310 = vector.broadcast %cst_117 : f32 to vector<16x1xf32>
    %311 = arith.divf %309, %310 : vector<16x1xf32>
    %312 = vector.broadcast %311 : vector<16x1xf32> to vector<16x128xf32>
    %313 = arith.subf %303, %312 : vector<16x128xf32>
    %314 = vector.broadcast %311 : vector<16x1xf32> to vector<16x128xf32>
    %315 = arith.subf %303, %314 : vector<16x128xf32>
    %316 = arith.mulf %313, %315 : vector<16x128xf32>
    %cst_118 = arith.constant dense<0.000000e+00> : vector<16xf32>
    %317 = vector.multi_reduction <add>, %316, %cst_118 [1] : vector<16x128xf32> to vector<16xf32>
    %318 = vector.shape_cast %317 : vector<16xf32> to vector<16x1xf32>
    %cst_119 = arith.constant 1.280000e+02 : f32
    %319 = vector.broadcast %cst_119 : f32 to vector<16x1xf32>
    %320 = arith.divf %318, %319 : vector<16x1xf32>
    %321 = vector.broadcast %311 : vector<16x1xf32> to vector<16x128xf32>
    %322 = arith.subf %303, %321 : vector<16x128xf32>
    %cst_120 = arith.constant 9.99999974E-6 : f32
    %323 = vector.broadcast %cst_120 : f32 to vector<16x1xf32>
    %324 = arith.addf %320, %323 : vector<16x1xf32>
    %325 = math.rsqrt %324 : vector<16x1xf32>
    %326 = vector.broadcast %325 : vector<16x1xf32> to vector<16x128xf32>
    %327 = arith.mulf %322, %326 : vector<16x128xf32>
    %328 = vector.broadcast %305 : vector<1x128xf32> to vector<16x128xf32>
    %329 = arith.mulf %327, %328 : vector<16x128xf32>
    %330 = vector.broadcast %307 : vector<1x128xf32> to vector<16x128xf32>
    %331 = arith.addf %329, %330 : vector<16x128xf32>
    %332 = arith.truncf %331 : vector<16x128xf32> to vector<16x128xbf16>
    %c1_121 = arith.constant 1 : index
    %c0_122 = arith.constant 0 : index
    %c0_123 = arith.constant 0 : index
    %333 = vector.load %arg9[%c1_121, %c0_122, %c0_123] : memref<2x128x512xbf16, #tpu.memory_space<vmem>>, vector<1x128x512xbf16>
    %334 = vector.shape_cast %333 : vector<1x128x512xbf16> to vector<128x512xbf16>
    %cst_124 = arith.constant dense<0.000000e+00> : vector<16x512xf32>
    %335 = tpu.matmul %332, %334, %cst_124 {dimension_numbers = #tpu.dot_dimension_numbers<[1], [0], [0], [1], [0, 0, 1, 1], [], []>} : vector<16x128xbf16>, vector<128x512xbf16>, vector<16x512xf32> -> vector<16x512xf32>
    %c1_125 = arith.constant 1 : index
    %c0_126 = arith.constant 0 : index
    %c0_127 = arith.constant 0 : index
    %336 = vector.load %arg10[%c1_125, %c0_126, %c0_127] : memref<2x1x512xf32, #tpu.memory_space<vmem>>, vector<1x1x512xf32>
    %337 = vector.shape_cast %336 : vector<1x1x512xf32> to vector<1x512xf32>
    %338 = vector.broadcast %337 : vector<1x512xf32> to vector<16x512xf32>
    %339 = arith.addf %335, %338 : vector<16x512xf32>
    %cst_128 = arith.constant 0.000000e+00 : f32
    %340 = vector.broadcast %cst_128 : f32 to vector<16x512xf32>
    %341 = arith.maximumf %339, %340 : vector<16x512xf32>
    %342 = arith.truncf %341 : vector<16x512xf32> to vector<16x512xbf16>
    %c1_129 = arith.constant 1 : index
    %c0_130 = arith.constant 0 : index
    %c0_131 = arith.constant 0 : index
    %343 = vector.load %arg11[%c1_129, %c0_130, %c0_131] : memref<2x512x128xbf16, #tpu.memory_space<vmem>>, vector<1x512x128xbf16>
    %344 = vector.shape_cast %343 : vector<1x512x128xbf16> to vector<512x128xbf16>
    %cst_132 = arith.constant dense<0.000000e+00> : vector<16x128xf32>
    %345 = tpu.matmul %342, %344, %cst_132 {dimension_numbers = #tpu.dot_dimension_numbers<[1], [0], [0], [1], [0, 0, 1, 1], [], []>} : vector<16x512xbf16>, vector<512x128xbf16>, vector<16x128xf32> -> vector<16x128xf32>
    %c1_133 = arith.constant 1 : index
    %c0_134 = arith.constant 0 : index
    %c0_135 = arith.constant 0 : index
    %346 = vector.load %arg12[%c1_133, %c0_134, %c0_135] : memref<2x1x128xf32, #tpu.memory_space<vmem>>, vector<1x1x128xf32>
    %347 = vector.shape_cast %346 : vector<1x1x128xf32> to vector<1x128xf32>
    %348 = vector.broadcast %347 : vector<1x128xf32> to vector<16x128xf32>
    %349 = arith.addf %345, %348 : vector<16x128xf32>
    %350 = arith.addf %303, %349 : vector<16x128xf32>
    %351 = arith.truncf %350 : vector<16x128xf32> to vector<16x128xbf16>
    %c0_136 = arith.constant 0 : index
    %c0_137 = arith.constant 0 : index
    %352 = vector.load %arg13[%c0_136, %c0_137] : memref<128x128xbf16, #tpu.memory_space<vmem>>, vector<128x128xbf16>
    %cst_138 = arith.constant dense<0.000000e+00> : vector<16x128xf32>
    %353 = tpu.matmul %351, %352, %cst_138 {dimension_numbers = #tpu.dot_dimension_numbers<[1], [0], [0], [1], [0, 0, 1, 1], [], []>} : vector<16x128xbf16>, vector<128x128xbf16>, vector<16x128xf32> -> vector<16x128xf32>
    %c0_139 = arith.constant 0 : index
    %c0_140 = arith.constant 0 : index
    %354 = vector.load %arg14[%c0_139, %c0_140] : memref<1x128xf32, #tpu.memory_space<vmem>>, vector<1x128xf32>
    %355 = vector.broadcast %354 : vector<1x128xf32> to vector<16x128xf32>
    %356 = arith.addf %353, %355 : vector<16x128xf32>
    %c0_141 = arith.constant 0 : index
    %c0_142 = arith.constant 0 : index
    %c0_143 = arith.constant 0 : index
    %357 = vector.load %arg15[%c0_141, %c0_142, %c0_143] : memref<1x16x128xf32, #tpu.memory_space<vmem>>, vector<1x16x128xf32>
    %358 = vector.shape_cast %357 : vector<1x16x128xf32> to vector<16x128xf32>
    %359 = vector.shape_cast %356 : vector<16x128xf32> to vector<1x16x128xf32>
    tpu.vector_store %arg15[%c0_141, %c0_142, %c0_143], %359 {strides = array<i32>} : memref<1x16x128xf32, #tpu.memory_space<vmem>>, vector<1x16x128xf32>,
    return
  }
  func.func @transform_0(%arg0: i32) -> (i32, i32, i32) {
    %c0_i32 = arith.constant 0 : i32
    %c0_i32_0 = arith.constant 0 : i32
    %c0_i32_1 = arith.constant 0 : i32
    return %arg0, %c0_i32, %c0_i32_0 : i32, i32, i32
  }
  func.func @transform_1(%arg0: i32) -> (i32, i32, i32) {
    %c0_i32 = arith.constant 0 : i32
    %c0_i32_0 = arith.constant 0 : i32
    %c0_i32_1 = arith.constant 0 : i32
    %c0_i32_2 = arith.constant 0 : i32
    return %c0_i32, %c0_i32_0, %c0_i32_1 : i32, i32, i32
  }
  func.func @transform_2(%arg0: i32) -> (i32, i32, i32) {
    %c0_i32 = arith.constant 0 : i32
    %c0_i32_0 = arith.constant 0 : i32
    %c0_i32_1 = arith.constant 0 : i32
    %c0_i32_2 = arith.constant 0 : i32
    return %c0_i32, %c0_i32_0, %c0_i32_1 : i32, i32, i32
  }
  func.func @transform_3(%arg0: i32) -> (i32, i32, i32) {
    %c0_i32 = arith.constant 0 : i32
    %c0_i32_0 = arith.constant 0 : i32
    %c0_i32_1 = arith.constant 0 : i32
    %c0_i32_2 = arith.constant 0 : i32
    return %c0_i32, %c0_i32_0, %c0_i32_1 : i32, i32, i32
  }
  func.func @transform_4(%arg0: i32) -> (i32, i32, i32) {
    %c0_i32 = arith.constant 0 : i32
    %c0_i32_0 = arith.constant 0 : i32
    %c0_i32_1 = arith.constant 0 : i32
    %c0_i32_2 = arith.constant 0 : i32
    return %c0_i32, %c0_i32_0, %c0_i32_1 : i32, i32, i32
  }
  func.func @transform_5(%arg0: i32) -> (i32, i32, i32) {
    %c0_i32 = arith.constant 0 : i32
    %c0_i32_0 = arith.constant 0 : i32
    %c0_i32_1 = arith.constant 0 : i32
    %c0_i32_2 = arith.constant 0 : i32
    return %c0_i32, %c0_i32_0, %c0_i32_1 : i32, i32, i32
  }
  func.func @transform_6(%arg0: i32) -> (i32, i32, i32) {
    %c0_i32 = arith.constant 0 : i32
    %c0_i32_0 = arith.constant 0 : i32
    %c0_i32_1 = arith.constant 0 : i32
    %c0_i32_2 = arith.constant 0 : i32
    return %c0_i32, %c0_i32_0, %c0_i32_1 : i32, i32, i32
  }
  func.func @transform_7(%arg0: i32) -> (i32, i32, i32) {
    %c0_i32 = arith.constant 0 : i32
    %c0_i32_0 = arith.constant 0 : i32
    %c0_i32_1 = arith.constant 0 : i32
    %c0_i32_2 = arith.constant 0 : i32
    return %c0_i32, %c0_i32_0, %c0_i32_1 : i32, i32, i32
  }
  func.func @transform_8(%arg0: i32) -> (i32, i32, i32) {
    %c0_i32 = arith.constant 0 : i32
    %c0_i32_0 = arith.constant 0 : i32
    %c0_i32_1 = arith.constant 0 : i32
    %c0_i32_2 = arith.constant 0 : i32
    return %c0_i32, %c0_i32_0, %c0_i32_1 : i32, i32, i32
  }
  func.func @transform_9(%arg0: i32) -> (i32, i32, i32) {
    %c0_i32 = arith.constant 0 : i32
    %c0_i32_0 = arith.constant 0 : i32
    %c0_i32_1 = arith.constant 0 : i32
    %c0_i32_2 = arith.constant 0 : i32
    return %c0_i32, %c0_i32_0, %c0_i32_1 : i32, i32, i32
  }
  func.func @transform_10(%arg0: i32) -> (i32, i32, i32) {
    %c0_i32 = arith.constant 0 : i32
    %c0_i32_0 = arith.constant 0 : i32
    %c0_i32_1 = arith.constant 0 : i32
    %c0_i32_2 = arith.constant 0 : i32
    return %c0_i32, %c0_i32_0, %c0_i32_1 : i32, i32, i32
  }
  func.func @transform_11(%arg0: i32) -> (i32, i32, i32) {
    %c0_i32 = arith.constant 0 : i32
    %c0_i32_0 = arith.constant 0 : i32
    %c0_i32_1 = arith.constant 0 : i32
    %c0_i32_2 = arith.constant 0 : i32
    return %c0_i32, %c0_i32_0, %c0_i32_1 : i32, i32, i32
  }
  func.func @transform_12(%arg0: i32) -> (i32, i32) {
    %c0_i32 = arith.constant 0 : i32
    %c0_i32_0 = arith.constant 0 : i32
    %c0_i32_1 = arith.constant 0 : i32
    return %c0_i32, %c0_i32_0 : i32, i32
  }
  func.func @transform_13(%arg0: i32) -> (i32, i32) {
    %c0_i32 = arith.constant 0 : i32
    %c0_i32_0 = arith.constant 0 : i32
    %c0_i32_1 = arith.constant 0 : i32
    return %c0_i32, %c0_i32_0 : i32, i32
  }
  func.func @transform_14(%arg0: i32) -> (i32, i32, i32) {
    %c0_i32 = arith.constant 0 : i32
    %c0_i32_0 = arith.constant 0 : i32
    %c0_i32_1 = arith.constant 0 : i32
    return %arg0, %c0_i32, %c0_i32_0 : i32, i32, i32
  }
}

</mosaic_0001>

<llo_original>
// kernel: forward.1
$region0: #{forward.1}
  #allocation0 [shape = 'u32[]', space=smem, size = 0x4, offset = 0x4, fixed_abs, tag = 'smem constant byte address 0x4 - core index']
  #allocation1 [shape = 'u32[144,128]{1,0:T(1,128)}', space=vmem, size = 0x12000, scoped, tag = 'internal scratch']
  %s0 = inlined_call_operand.vmem [shape: f32[2,16,128], index: 0, kind: input, shape index: {}]
  %s1 = inlined_call_operand.vmem [shape: f32[2,1,128], index: 1, kind: input, shape index: {}]
  %s2 = inlined_call_operand.vmem [shape: f32[2,1,128], index: 2, kind: input, shape index: {}]
  %s3 = inlined_call_operand.vmem [shape: bf16[2,128,384], index: 3, kind: input, shape index: {}]
  %s4 = inlined_call_operand.vmem [shape: bf16[2,128,128], index: 4, kind: input, shape index: {}]
  %s5 = inlined_call_operand.vmem [shape: f32[2,1,128], index: 5, kind: input, shape index: {}]
  %s6 = inlined_call_operand.vmem [shape: f32[2,1,128], index: 6, kind: input, shape index: {}]
  %s7 = inlined_call_operand.vmem [shape: f32[2,1,128], index: 7, kind: input, shape index: {}]
  %s8 = inlined_call_operand.vmem [shape: bf16[2,128,512], index: 8, kind: input, shape index: {}]
  %s9 = inlined_call_operand.vmem [shape: f32[2,1,512], index: 9, kind: input, shape index: {}]
  %s10 = inlined_call_operand.vmem [shape: bf16[2,512,128], index: 10, kind: input, shape index: {}]
  %s11 = inlined_call_operand.vmem [shape: f32[2,1,128], index: 11, kind: input, shape index: {}]
  %s12 = inlined_call_operand.vmem [shape: bf16[128,128], index: 12, kind: input, shape index: {}]
  %s13 = inlined_call_operand.vmem [shape: f32[1,128], index: 13, kind: input, shape index: {}]
  %s14 = inlined_call_operand.hbm [shape: f32[2,16,128], index: 14, kind: output, shape index: {}]
  %s15 = sld [smem:[#allocation0]]
  $region89: #{forward.1} parent=0
    _
  %s17 = ssub.s32 1, %s15
  %s18 = scalar_select 0, %s17, %s15
  $region1: #{forward.1} parent=0
    #allocation2 [shape = 'u8[16384]{0}', space=vmem, size = 0x4000, scoped, tag = 'output window, operand 0']
    #allocation3 [shape = 's32[2]{0}', space=sflag, size = 0x8, scoped, tag = 'scoped memory for forward.1']
    %19 = vsyncpa [#allocation3], 0
    %s20 = scalar_lea.sflag [#allocation3], 1
    %21 = vsyncpa %s20, 0
    loop: start=0, step=1, limit=4
    $region2: #{forward.1} parent=1 // loop_pre_header
      _
    $region3: #{forward.1} parent=1 // loop_header
      %s23 = sphi 0, %s27
      %p24 = scmp.ge.s32.totalorder %s23, 4
      %s33 = sphi 0, %s35
      %s36 = sphi 0, %s33
      %s37 = sphi 0, %s36
      %s53 = sphi 0, %s37
      %s57 = sphi 0, %s57
      %s59 = sphi 0, %s57
      %s60 = sphi 0, %s59
      %s74 = sphi 0, %s60
      %s78 = sphi 0, %s78
      %s80 = sphi 0, %s78
      %s81 = sphi 0, %s80
      %s95 = sphi 0, %s81
      %s99 = sphi 0, %s99
      %s101 = sphi 0, %s99
      %s102 = sphi 0, %s101
      %s116 = sphi 0, %s102
      %s120 = sphi 0, %s120
      %s122 = sphi 0, %s120
      %s123 = sphi 0, %s122
      %s137 = sphi 0, %s123
      %s141 = sphi 0, %s141
      %s143 = sphi 0, %s141
      %s144 = sphi 0, %s143
      %s158 = sphi 0, %s144
      %s162 = sphi 0, %s162
      %s164 = sphi 0, %s162
      %s165 = sphi 0, %s164
      %s179 = sphi 0, %s165
      %s183 = sphi 0, %s183
      %s185 = sphi 0, %s183
      %s186 = sphi 0, %s185
      %s200 = sphi 0, %s186
      %s204 = sphi 0, %s204
      %s206 = sphi 0, %s204
      %s207 = sphi 0, %s206
      %s221 = sphi 0, %s207
      %s225 = sphi 0, %s225
      %s227 = sphi 0, %s225
      %s228 = sphi 0, %s227
      %s242 = sphi 0, %s228
      %s246 = sphi 0, %s246
      %s248 = sphi 0, %s246
      %s249 = sphi 0, %s248
      %s263 = sphi 0, %s249
      %s267 = sphi 0, %s267
      %s269 = sphi 0, %s267
      %s270 = sphi 0, %s269
      %s284 = sphi 0, %s270
      %s288 = sphi 0, %s288
      %s290 = sphi 0, %s288
      %s291 = sphi 0, %s290
      %s305 = sphi 0, %s291
      %s309 = sphi 0, %s309
      %s311 = sphi 0, %s309
      %s312 = sphi 0, %s311
      %s326 = sphi 0, %s312
      %s332 = sphi 0, %s334
      %s335 = sphi 0, %s332
      %s336 = sphi 0, %s335
      %s352 = sphi 0, %s336
    $region4: #{forward.1} parent=1 // loop_header_branch
      %26 = sbr.rel (%p24) target = $region8
    $region5: #{forward.1} parent=1 // loop_body
      %s28 = ssub.s32 %s23, 1
      %s29 = ssub.s32 %s23, 2
      %s30 = sadd.s32 %s23, 1
      %s31 = ssub.s32 %s23, %s30
      %p32 = scmp.eq.s32.totalorder %s31, 0
      %s34 = sadd.s32 %s33, 1
      %s35 = scalar_select %p32, %s33, %s34
      %p38 = pneg %p32
      %p39 = scmp.eq.s32.totalorder %s23, 1
      %p40 = por %p38, %p39
      %p41 = scmp.ne.s32.totalorder %s33, %s36
      %p42 = scmp.eq.s32.totalorder %s23, 0
      %p43 = por %p41, %p42
      %p44 = scmp.ne.s32.totalorder %s33, %s36
      %p45 = scmp.eq.s32.totalorder %s28, 1
      %p46 = por %p44, %p45
      %p47 = scmp.ne.s32.totalorder %s36, %s37
      %p48 = scmp.eq.s32.totalorder %s28, 0
      %p49 = por %p47, %p48
      %p50 = scmp.ne.s32.totalorder %s36, %s37
      %p51 = scmp.eq.s32.totalorder %s29, 1
      %p52 = por %p50, %p51
      %p54 = scmp.ne.s32.totalorder %s37, %s53
      %p55 = scmp.eq.s32.totalorder %s29, 0
      %p56 = por %p54, %p55
      %s58 = sadd.s32 %s57, 1
      %p61 = scmp.eq.s32.totalorder %s23, 1
      %p62 = scmp.ne.s32.totalorder %s57, %s59
      %p63 = scmp.eq.s32.totalorder %s23, 0
      %p64 = por %p62, %p63
      %p65 = scmp.ne.s32.totalorder %s57, %s59
      %p66 = scmp.eq.s32.totalorder %s28, 1
      %p67 = por %p65, %p66
      %p68 = scmp.ne.s32.totalorder %s59, %s60
      %p69 = scmp.eq.s32.totalorder %s28, 0
      %p70 = por %p68, %p69
      %p71 = scmp.ne.s32.totalorder %s59, %s60
      %p72 = scmp.eq.s32.totalorder %s29, 1
      %p73 = por %p71, %p72
      %p75 = scmp.ne.s32.totalorder %s60, %s74
      %p76 = scmp.eq.s32.totalorder %s29, 0
      %p77 = por %p75, %p76
      %s79 = sadd.s32 %s78, 1
      %p82 = scmp.eq.s32.totalorder %s23, 1
      %p83 = scmp.ne.s32.totalorder %s78, %s80
      %p84 = scmp.eq.s32.totalorder %s23, 0
      %p85 = por %p83, %p84
      %p86 = scmp.ne.s32.totalorder %s78, %s80
      %p87 = scmp.eq.s32.totalorder %s28, 1
      %p88 = por %p86, %p87
      %p89 = scmp.ne.s32.totalorder %s80, %s81
      %p90 = scmp.eq.s32.totalorder %s28, 0
      %p91 = por %p89, %p90
      %p92 = scmp.ne.s32.totalorder %s80, %s81
      %p93 = scmp.eq.s32.totalorder %s29, 1
      %p94 = por %p92, %p93
      %p96 = scmp.ne.s32.totalorder %s81, %s95
      %p97 = scmp.eq.s32.totalorder %s29, 0
      %p98 = por %p96, %p97
      %s100 = sadd.s32 %s99, 1
      %p103 = scmp.eq.s32.totalorder %s23, 1
      %p104 = scmp.ne.s32.totalorder %s99, %s101
      %p105 = scmp.eq.s32.totalorder %s23, 0
      %p106 = por %p104, %p105
      %p107 = scmp.ne.s32.totalorder %s99, %s101
      %p108 = scmp.eq.s32.totalorder %s28, 1
      %p109 = por %p107, %p108
      %p110 = scmp.ne.s32.totalorder %s101, %s102
      %p111 = scmp.eq.s32.totalorder %s28, 0
      %p112 = por %p110, %p111
      %p113 = scmp.ne.s32.totalorder %s101, %s102
      %p114 = scmp.eq.s32.totalorder %s29, 1
      %p115 = por %p113, %p114
      %p117 = scmp.ne.s32.totalorder %s102, %s116
      %p118 = scmp.eq.s32.totalorder %s29, 0
      %p119 = por %p117, %p118
      %s121 = sadd.s32 %s120, 1
      %p124 = scmp.eq.s32.totalorder %s23, 1
      %p125 = scmp.ne.s32.totalorder %s120, %s122
      %p126 = scmp.eq.s32.totalorder %s23, 0
      %p127 = por %p125, %p126
      %p128 = scmp.ne.s32.totalorder %s120, %s122
      %p129 = scmp.eq.s32.totalorder %s28, 1
      %p130 = por %p128, %p129
      %p131 = scmp.ne.s32.totalorder %s122, %s123
      %p132 = scmp.eq.s32.totalorder %s28, 0
      %p133 = por %p131, %p132
      %p134 = scmp.ne.s32.totalorder %s122, %s123
      %p135 = scmp.eq.s32.totalorder %s29, 1
      %p136 = por %p134, %p135
      %p138 = scmp.ne.s32.totalorder %s123, %s137
      %p139 = scmp.eq.s32.totalorder %s29, 0
      %p140 = por %p138, %p139
      %s142 = sadd.s32 %s141, 1
      %p145 = scmp.eq.s32.totalorder %s23, 1
      %p146 = scmp.ne.s32.totalorder %s141, %s143
      %p147 = scmp.eq.s32.totalorder %s23, 0
      %p148 = por %p146, %p147
      %p149 = scmp.ne.s32.totalorder %s141, %s143
      %p150 = scmp.eq.s32.totalorder %s28, 1
      %p151 = por %p149, %p150
      %p152 = scmp.ne.s32.totalorder %s143, %s144
      %p153 = scmp.eq.s32.totalorder %s28, 0
      %p154 = por %p152, %p153
      %p155 = scmp.ne.s32.totalorder %s143, %s144
      %p156 = scmp.eq.s32.totalorder %s29, 1
      %p157 = por %p155, %p156
      %p159 = scmp.ne.s32.totalorder %s144, %s158
      %p160 = scmp.eq.s32.totalorder %s29, 0
      %p161 = por %p159, %p160
      %s163 = sadd.s32 %s162, 1
      %p166 = scmp.eq.s32.totalorder %s23, 1
      %p167 = scmp.ne.s32.totalorder %s162, %s164
      %p168 = scmp.eq.s32.totalorder %s23, 0
      %p169 = por %p167, %p168
      %p170 = scmp.ne.s32.totalorder %s162, %s164
      %p171 = scmp.eq.s32.totalorder %s28, 1
      %p172 = por %p170, %p171
      %p173 = scmp.ne.s32.totalorder %s164, %s165
      %p174 = scmp.eq.s32.totalorder %s28, 0
      %p175 = por %p173, %p174
      %p176 = scmp.ne.s32.totalorder %s164, %s165
      %p177 = scmp.eq.s32.totalorder %s29, 1
      %p178 = por %p176, %p177
      %p180 = scmp.ne.s32.totalorder %s165, %s179
      %p181 = scmp.eq.s32.totalorder %s29, 0
      %p182 = por %p180, %p181
      %s184 = sadd.s32 %s183, 1
      %p187 = scmp.eq.s32.totalorder %s23, 1
      %p188 = scmp.ne.s32.totalorder %s183, %s185
      %p189 = scmp.eq.s32.totalorder %s23, 0
      %p190 = por %p188, %p189
      %p191 = scmp.ne.s32.totalorder %s183, %s185
      %p192 = scmp.eq.s32.totalorder %s28, 1
      %p193 = por %p191, %p192
      %p194 = scmp.ne.s32.totalorder %s185, %s186
      %p195 = scmp.eq.s32.totalorder %s28, 0
      %p196 = por %p194, %p195
      %p197 = scmp.ne.s32.totalorder %s185, %s186
      %p198 = scmp.eq.s32.totalorder %s29, 1
      %p199 = por %p197, %p198
      %p201 = scmp.ne.s32.totalorder %s186, %s200
      %p202 = scmp.eq.s32.totalorder %s29, 0
      %p203 = por %p201, %p202
      %s205 = sadd.s32 %s204, 1
      %p208 = scmp.eq.s32.totalorder %s23, 1
      %p209 = scmp.ne.s32.totalorder %s204, %s206
      %p210 = scmp.eq.s32.totalorder %s23, 0
      %p211 = por %p209, %p210
      %p212 = scmp.ne.s32.totalorder %s204, %s206
      %p213 = scmp.eq.s32.totalorder %s28, 1
      %p214 = por %p212, %p213
      %p215 = scmp.ne.s32.totalorder %s206, %s207
      %p216 = scmp.eq.s32.totalorder %s28, 0
      %p217 = por %p215, %p216
      %p218 = scmp.ne.s32.totalorder %s206, %s207
      %p219 = scmp.eq.s32.totalorder %s29, 1
      %p220 = por %p218, %p219
      %p222 = scmp.ne.s32.totalorder %s207, %s221
      %p223 = scmp.eq.s32.totalorder %s29, 0
      %p224 = por %p222, %p223
      %s226 = sadd.s32 %s225, 1
      %p229 = scmp.eq.s32.totalorder %s23, 1
      %p230 = scmp.ne.s32.totalorder %s225, %s227
      %p231 = scmp.eq.s32.totalorder %s23, 0
      %p232 = por %p230, %p231
      %p233 = scmp.ne.s32.totalorder %s225, %s227
      %p234 = scmp.eq.s32.totalorder %s28, 1
      %p235 = por %p233, %p234
      %p236 = scmp.ne.s32.totalorder %s227, %s228
      %p237 = scmp.eq.s32.totalorder %s28, 0
      %p238 = por %p236, %p237
      %p239 = scmp.ne.s32.totalorder %s227, %s228
      %p240 = scmp.eq.s32.totalorder %s29, 1
      %p241 = por %p239, %p240
      %p243 = scmp.ne.s32.totalorder %s228, %s242
      %p244 = scmp.eq.s32.totalorder %s29, 0
      %p245 = por %p243, %p244
      %s247 = sadd.s32 %s246, 1
      %p250 = scmp.eq.s32.totalorder %s23, 1
      %p251 = scmp.ne.s32.totalorder %s246, %s248
      %p252 = scmp.eq.s32.totalorder %s23, 0
      %p253 = por %p251, %p252
      %p254 = scmp.ne.s32.totalorder %s246, %s248
      %p255 = scmp.eq.s32.totalorder %s28, 1
      %p256 = por %p254, %p255
      %p257 = scmp.ne.s32.totalorder %s248, %s249
      %p258 = scmp.eq.s32.totalorder %s28, 0
      %p259 = por %p257, %p258
      %p260 = scmp.ne.s32.totalorder %s248, %s249
      %p261 = scmp.eq.s32.totalorder %s29, 1
      %p262 = por %p260, %p261
      %p264 = scmp.ne.s32.totalorder %s249, %s263
      %p265 = scmp.eq.s32.totalorder %s29, 0
      %p266 = por %p264, %p265
      %s268 = sadd.s32 %s267, 1
      %p271 = scmp.eq.s32.totalorder %s23, 1
      %p272 = scmp.ne.s32.totalorder %s267, %s269
      %p273 = scmp.eq.s32.totalorder %s23, 0
      %p274 = por %p272, %p273
      %p275 = scmp.ne.s32.totalorder %s267, %s269
      %p276 = scmp.eq.s32.totalorder %s28, 1
      %p277 = por %p275, %p276
      %p278 = scmp.ne.s32.totalorder %s269, %s270
      %p279 = scmp.eq.s32.totalorder %s28, 0
      %p280 = por %p278, %p279
      %p281 = scmp.ne.s32.totalorder %s269, %s270
      %p282 = scmp.eq.s32.totalorder %s29, 1
      %p283 = por %p281, %p282
      %p285 = scmp.ne.s32.totalorder %s270, %s284
      %p286 = scmp.eq.s32.totalorder %s29, 0
      %p287 = por %p285, %p286
      %s289 = sadd.s32 %s288, 1
      %p292 = scmp.eq.s32.totalorder %s23, 1
      %p293 = scmp.ne.s32.totalorder %s288, %s290
      %p294 = scmp.eq.s32.totalorder %s23, 0
      %p295 = por %p293, %p294
      %p296 = scmp.ne.s32.totalorder %s288, %s290
      %p297 = scmp.eq.s32.totalorder %s28, 1
      %p298 = por %p296, %p297
      %p299 = scmp.ne.s32.totalorder %s290, %s291
      %p300 = scmp.eq.s32.totalorder %s28, 0
      %p301 = por %p299, %p300
      %p302 = scmp.ne.s32.totalorder %s290, %s291
      %p303 = scmp.eq.s32.totalorder %s29, 1
      %p304 = por %p302, %p303
      %p306 = scmp.ne.s32.totalorder %s291, %s305
      %p307 = scmp.eq.s32.totalorder %s29, 0
      %p308 = por %p306, %p307
      %s310 = sadd.s32 %s309, 1
      %p313 = scmp.eq.s32.totalorder %s23, 1
      %p314 = scmp.ne.s32.totalorder %s309, %s311
      %p315 = scmp.eq.s32.totalorder %s23, 0
      %p316 = por %p314, %p315
      %p317 = scmp.ne.s32.totalorder %s309, %s311
      %p318 = scmp.eq.s32.totalorder %s28, 1
      %p319 = por %p317, %p318
      %p320 = scmp.ne.s32.totalorder %s311, %s312
      %p321 = scmp.eq.s32.totalorder %s28, 0
      %p322 = por %p320, %p321
      %p323 = scmp.ne.s32.totalorder %s311, %s312
      %p324 = scmp.eq.s32.totalorder %s29, 1
      %p325 = por %p323, %p324
      %p327 = scmp.ne.s32.totalorder %s312, %s326
      %p328 = scmp.eq.s32.totalorder %s29, 0
      %p329 = por %p327, %p328
      %s330 = ssub.s32 %s23, %s30
      %p331 = scmp.eq.s32.totalorder %s330, 0
      %s333 = sadd.s32 %s332, 1
      %s334 = scalar_select %p331, %s332, %s333
      %p337 = pneg %p331
      %p338 = scmp.eq.s32.totalorder %s23, 1
      %p339 = por %p337, %p338
      %p340 = scmp.ne.s32.totalorder %s332, %s335
      %p341 = scmp.eq.s32.totalorder %s23, 0
      %p342 = por %p340, %p341
      %p343 = scmp.ne.s32.totalorder %s332, %s335
      %p344 = scmp.eq.s32.totalorder %s28, 1
      %p345 = por %p343, %p344
      %p346 = scmp.ne.s32.totalorder %s335, %s336
      %p347 = scmp.eq.s32.totalorder %s28, 0
      %p348 = por %p346, %p347
      %p349 = scmp.ne.s32.totalorder %s335, %s336
      %p350 = scmp.eq.s32.totalorder %s29, 1
      %p351 = por %p349, %p350
      %p353 = scmp.ne.s32.totalorder %s336, %s352
      %p354 = scmp.eq.s32.totalorder %s29, 0
      %p355 = por %p353, %p354
      %p356 = scmp.le.s32.totalorder 1, %s23
      %p357 = scmp.lt.s32.totalorder %s23, 3
      %p358 = pnand %p356, %p357
      %p359 = pneg %p358
      // Predicated region
      $region9: #{forward.1} parent=5 // pred_check
        _
      $region10: #{forward.1} parent=5 // pred_check_branch
        %361 = sbr.rel (%p358) target = $region12
      $region11: #{forward.1} parent=5 // pred_region
        %s362 = ssub.s32 %s23, 1
        // Predicated region
        $region13: #{forward.1} parent=11 // pred_check
          %p363 = pneg %p70
        $region14: #{forward.1} parent=11 // pred_check_branch
          %365 = sbr.rel (%p363) target = $region16
        $region15: #{forward.1} parent=11 // pred_region
          _
        $region16: #{forward.1} parent=11 // pred_fallthru
          _
        // Predicated region
        $region17: #{forward.1} parent=11 // pred_check
          %p366 = pneg %p91
        $region18: #{forward.1} parent=11 // pred_check_branch
          %368 = sbr.rel (%p366) target = $region20
        $region19: #{forward.1} parent=11 // pred_region
          _
        $region20: #{forward.1} parent=11 // pred_fallthru
          _
        // Predicated region
        $region21: #{forward.1} parent=11 // pred_check
          %p369 = pneg %p112
        $region22: #{forward.1} parent=11 // pred_check_branch
          %371 = sbr.rel (%p369) target = $region24
        $region23: #{forward.1} parent=11 // pred_region
          _
        $region24: #{forward.1} parent=11 // pred_fallthru
          _
        // Predicated region
        $region25: #{forward.1} parent=11 // pred_check
          %p372 = pneg %p133
        $region26: #{forward.1} parent=11 // pred_check_branch
          %374 = sbr.rel (%p372) target = $region28
        $region27: #{forward.1} parent=11 // pred_region
          _
        $region28: #{forward.1} parent=11 // pred_fallthru
          _
        // Predicated region
        $region29: #{forward.1} parent=11 // pred_check
          %p375 = pneg %p154
        $region30: #{forward.1} parent=11 // pred_check_branch
          %377 = sbr.rel (%p375) target = $region32
        $region31: #{forward.1} parent=11 // pred_region
          _
        $region32: #{forward.1} parent=11 // pred_fallthru
          _
        // Predicated region
        $region33: #{forward.1} parent=11 // pred_check
          %p378 = pneg %p175
        $region34: #{forward.1} parent=11 // pred_check_branch
          %380 = sbr.rel (%p378) target = $region36
        $region35: #{forward.1} parent=11 // pred_region
          _
        $region36: #{forward.1} parent=11 // pred_fallthru
          _
        // Predicated region
        $region37: #{forward.1} parent=11 // pred_check
          %p381 = pneg %p196
        $region38: #{forward.1} parent=11 // pred_check_branch
          %383 = sbr.rel (%p381) target = $region40
        $region39: #{forward.1} parent=11 // pred_region
          _
        $region40: #{forward.1} parent=11 // pred_fallthru
          _
        // Predicated region
        $region41: #{forward.1} parent=11 // pred_check
          %p384 = pneg %p217
        $region42: #{forward.1} parent=11 // pred_check_branch
          %386 = sbr.rel (%p384) target = $region44
        $region43: #{forward.1} parent=11 // pred_region
          _
        $region44: #{forward.1} parent=11 // pred_fallthru
          _
        // Predicated region
        $region45: #{forward.1} parent=11 // pred_check
          %p387 = pneg %p238
        $region46: #{forward.1} parent=11 // pred_check_branch
          %389 = sbr.rel (%p387) target = $region48
        $region47: #{forward.1} parent=11 // pred_region
          _
        $region48: #{forward.1} parent=11 // pred_fallthru
          _
        // Predicated region
        $region49: #{forward.1} parent=11 // pred_check
          %p390 = pneg %p259
        $region50: #{forward.1} parent=11 // pred_check_branch
          %392 = sbr.rel (%p390) target = $region52
        $region51: #{forward.1} parent=11 // pred_region
          _
        $region52: #{forward.1} parent=11 // pred_fallthru
          _
        // Predicated region
        $region53: #{forward.1} parent=11 // pred_check
          %p393 = pneg %p280
        $region54: #{forward.1} parent=11 // pred_check_branch
          %395 = sbr.rel (%p393) target = $region56
        $region55: #{forward.1} parent=11 // pred_region
          _
        $region56: #{forward.1} parent=11 // pred_fallthru
          _
        // Predicated region
        $region57: #{forward.1} parent=11 // pred_check
          %p396 = pneg %p301
        $region58: #{forward.1} parent=11 // pred_check_branch
          %398 = sbr.rel (%p396) target = $region60
        $region59: #{forward.1} parent=11 // pred_region
          _
        $region60: #{forward.1} parent=11 // pred_fallthru
          _
        // Predicated region
        $region61: #{forward.1} parent=11 // pred_check
          %p399 = pneg %p322
        $region62: #{forward.1} parent=11 // pred_check_branch
          %401 = sbr.rel (%p399) target = $region64
        $region63: #{forward.1} parent=11 // pred_region
          _
        $region64: #{forward.1} parent=11 // pred_fallthru
          _
      $region12: #{forward.1} parent=5 // pred_fallthru
        _
      %p402 = scmp.lt.s32.totalorder %s23, 2
      // Predicated region
      $region65: #{forward.1} parent=5 // pred_check
        %p403 = pneg %p402
      $region66: #{forward.1} parent=5 // pred_check_branch
        %405 = sbr.rel (%p403) target = $region68
      $region67: #{forward.1} parent=5 // pred_region
        // Predicated region
        $region69: #{forward.1} parent=67 // pred_check
          %p406 = pneg %p43
        $region70: #{forward.1} parent=67 // pred_check_branch
          %408 = sbr.rel (%p406) target = $region72
        $region71: #{forward.1} parent=67 // pred_region
          %p409 = scmp.lt.s32.totalorder %s23, 1
          %s410 = scalar_select %p409, %s23, 1
          %s411 = smul.addr %s410, 2
          %s412 = smul.addr %s411, 8
          %s413 = scalar_lea.vmem %s0, %s412
        $region72: #{forward.1} parent=67 // pred_fallthru
          _
      $region68: #{forward.1} parent=5 // pred_fallthru
        _
      %p414 = scmp.le.s32.totalorder 1, %s23
      %p415 = scmp.lt.s32.totalorder %s23, 3
      %p416 = pnand %p414, %p415
      %p417 = pneg %p416
      // Predicated region
      $region73: #{forward.1} parent=5 // pred_check
        _
      $region74: #{forward.1} parent=5 // pred_check_branch
        %419 = sbr.rel (%p416) target = $region76
      $region75: #{forward.1} parent=5 // pred_region
        %s420 = ssub.s32 %s23, 1
        %p421 = scmp.lt.s32.totalorder %s28, 1
        %s422 = scalar_select %p421, %s28, 1
        %s423 = smul.addr %s422, 2
        %s424 = smul.addr %s423, 8
        %s425 = scalar_lea.vmem %s0, %s424
        %p426 = pneg %p49
        %p427 = pneg %p46
        %p428 = pneg %p70
        %p429 = pneg %p67
        %p430 = pneg %p91
        %p431 = pneg %p88
        %p432 = pneg %p112
        %p433 = pneg %p109
        %p434 = pneg %p133
        %p435 = pneg %p130
        %p436 = pneg %p154
        %p437 = pneg %p151
        %p438 = pneg %p175
        %p439 = pneg %p172
        %p440 = pneg %p196
        %p441 = pneg %p193
        %p442 = pneg %p217
        %p443 = pneg %p214
        %p444 = pneg %p238
        %p445 = pneg %p235
        %p446 = pneg %p259
        %p447 = pneg %p256
        %p448 = pneg %p280
        %p449 = pneg %p277
        %p450 = pneg %p301
        %p451 = pneg %p298
        %p452 = pneg %p322
        %p453 = pneg %p319
        %p454 = pneg %p348
        %p455 = pneg %p345
        %s456 = sand.u32 %s335, 1
        %s457 = scalar_lea.sflag [#allocation3], %s456
        %s458 = sand.u32 %s335, 1
        %s459 = smul.addr %s458, 16
        %s460 = scalar_lea.vmem [#allocation2], %s459
        %p461 = scmp.lt.s32.totalorder %s28, 1
        %s462 = scalar_select %p461, %s28, 1
        %s463 = smul.addr %s462, 2
        %s464 = smul.addr %s463, 8
        %s465 = scalar_lea.vmem %s0, %s464
        %v467 = vld [vmem:[%s465] sm:$0xff]
        %v468 = vld [vmem:[%s465 + $0x8] sm:$0xff]
        %v469 = vlaneseq
        %v470 = vshrl.u32 %v469, 7
        %v471 = vadd.s32 %v470, 8
        %v472 = vlaneseq
        %v473 = vand.u32 %v472, 127
        %vm474 = vcmp.le.s32.totalorder %v473, %v470
        %vm475 = vcmp.le.s32.totalorder %v473, %v471
        %v476 = vld [vmem:[%s1] sm:$0x1]
        %v477 = vld [vmem:[%s2] sm:$0x1]
        %478 = vadd.xlane.f32.xlu0 %v467
        %v479 = vpop.xlane.xlu0 %478
        %480 = vadd.xlane.f32.xlu0 %v468
        %v481 = vpop.xlane.xlu0 %480
        %v482 = vrcp.pop 128.0
        %v483 = vmul.f32 %v479, %v482
        %v484 = vmul.f32 %v481, %v482
        %v485 = vsub.f32 %v467, %v483
        %v486 = vsub.f32 %v468, %v484
        %v487 = vmul.f32 %v485, %v485
        %v488 = vmul.f32 %v486, %v486
        %489 = vadd.xlane.f32.xlu0 %v487
        %v490 = vpop.xlane.xlu0 %489
        %491 = vadd.xlane.f32.xlu0 %v488
        %v492 = vpop.xlane.xlu0 %491
        %v493 = vmul.f32 %v490, %v482
        %v494 = vmul.f32 %v492, %v482
        %v495 = vadd.f32 %v493, 1e-05
        %v496 = vadd.f32 %v494, 1e-05
        %v497 = vrsqrt.pop %v495
        %v498 = vrsqrt.pop %v496
        %v499 = vmul.f32 %v485, %v497
        %v500 = vmul.f32 %v486, %v498
        %v502 = vlaneseq
        %v503 = vshrl.u32 %v502, 7
        %v504 = vsub.s32 0, %v503
        %v505 = vrot.slane %v476, %v504
        %v507 = vmul.f32 %v499, %v505
        %v508 = vmul.f32 %v500, %v505
        %v510 = vlaneseq
        %v511 = vshrl.u32 %v510, 7
        %v512 = vsub.s32 0, %v511
        %v513 = vrot.slane %v477, %v512
        %v515 = vadd.f32 %v507, %v513
        %v516 = vadd.f32 %v508, %v513
        %v517 = vpack.c.bf16 %v516, %v515
        %v518 = vld [vmem:[%s3] sm:$0xff]
        %v519 = vld [vmem:[%s3 + $0x8] sm:$0xf]
        %v520 = vld [vmem:[%s3 + $0xc] sm:$0xff]
        %v521 = vld [vmem:[%s3 + $0x14] sm:$0xf]
        %v522 = vld [vmem:[%s3 + $0x18] sm:$0xff]
        %v523 = vld [vmem:[%s3 + $0x20] sm:$0xf]
        %v524 = vld [vmem:[%s3 + $0x24] sm:$0xff]
        %v525 = vld [vmem:[%s3 + $0x2c] sm:$0xf]
        %v526 = vld [vmem:[%s3 + $0x30] sm:$0xff]
        %v527 = vld [vmem:[%s3 + $0x38] sm:$0xf]
        %v528 = vld [vmem:[%s3 + $0x3c] sm:$0xff]
        %v529 = vld [vmem:[%s3 + $0x44] sm:$0xf]
        %v530 = vld [vmem:[%s3 + $0x48] sm:$0xff]
        %v531 = vld [vmem:[%s3 + $0x50] sm:$0xf]
        %v532 = vld [vmem:[%s3 + $0x54] sm:$0xff]
        %v533 = vld [vmem:[%s3 + $0x5c] sm:$0xf]
        %v534 = vld [vmem:[%s3 + $0x60] sm:$0xff]
        %v535 = vld [vmem:[%s3 + $0x68] sm:$0xf]
        %v536 = vld [vmem:[%s3 + $0x6c] sm:$0xff]
        %v537 = vld [vmem:[%s3 + $0x74] sm:$0xf]
        %v538 = vld [vmem:[%s3 + $0x78] sm:$0xff]
        %v539 = vld [vmem:[%s3 + $0x80] sm:$0xf]
        %v540 = vld [vmem:[%s3 + $0x84] sm:$0xff]
        %v541 = vld [vmem:[%s3 + $0x8c] sm:$0xf]
        %v542 = vld [vmem:[%s3 + $0x90] sm:$0xff]
        %v543 = vld [vmem:[%s3 + $0x98] sm:$0xf]
        %v544 = vld [vmem:[%s3 + $0x9c] sm:$0xff]
        %v545 = vld [vmem:[%s3 + $0xa4] sm:$0xf]
        %v546 = vld [vmem:[%s3 + $0xa8] sm:$0xff]
        %v547 = vld [vmem:[%s3 + $0xb0] sm:$0xf]
        %v548 = vld [vmem:[%s3 + $0xb4] sm:$0xff]
        %v549 = vld [vmem:[%s3 + $0xbc] sm:$0xf]
        %v582 = vunpack.c.l.b16 %v518
        %v583 = vunpack.c.h.b16 %v518
        %v584 = vunpack.c.l.b16 %v519
        %v585 = vunpack.c.l.b16 %v520
        %v586 = vunpack.c.h.b16 %v520
        %v587 = vunpack.c.l.b16 %v521
        %v588 = vunpack.c.l.b16 %v522
        %v589 = vunpack.c.h.b16 %v522
        %v590 = vunpack.c.l.b16 %v523
        %v591 = vunpack.c.l.b16 %v524
        %v592 = vunpack.c.h.b16 %v524
        %v593 = vunpack.c.l.b16 %v525
        %v594 = vunpack.c.l.b16 %v526
        %v595 = vunpack.c.h.b16 %v526
        %v596 = vunpack.c.l.b16 %v527
        %v597 = vunpack.c.l.b16 %v528
        %v598 = vunpack.c.h.b16 %v528
        %v599 = vunpack.c.l.b16 %v529
        %v600 = vunpack.c.l.b16 %v530
        %v601 = vunpack.c.h.b16 %v530
        %v602 = vunpack.c.l.b16 %v531
        %v603 = vunpack.c.l.b16 %v532
        %v604 = vunpack.c.h.b16 %v532
        %v605 = vunpack.c.l.b16 %v533
        %v606 = vunpack.c.l.b16 %v534
        %v607 = vunpack.c.h.b16 %v534
        %v608 = vunpack.c.l.b16 %v535
        %v609 = vunpack.c.l.b16 %v536
        %v610 = vunpack.c.h.b16 %v536
        %v611 = vunpack.c.l.b16 %v537
        %v612 = vunpack.c.l.b16 %v538
        %v613 = vunpack.c.h.b16 %v538
        %v614 = vunpack.c.l.b16 %v539
        %v615 = vunpack.c.l.b16 %v540
        %v616 = vunpack.c.h.b16 %v540
        %v617 = vunpack.c.l.b16 %v541
        %v618 = vunpack.c.l.b16 %v542
        %v619 = vunpack.c.h.b16 %v542
        %v620 = vunpack.c.l.b16 %v543
        %v621 = vunpack.c.l.b16 %v544
        %v622 = vunpack.c.h.b16 %v544
        %v623 = vunpack.c.l.b16 %v545
        %v624 = vunpack.c.l.b16 %v546
        %v625 = vunpack.c.h.b16 %v546
        %v626 = vunpack.c.l.b16 %v547
        %v627 = vunpack.c.l.b16 %v548
        %v628 = vunpack.c.h.b16 %v548
        %v629 = vunpack.c.l.b16 %v549
        %v630 = vpack.c.b16 %v585, %v582
        %v631 = vpack.c.b16 %v586, %v583
        %v632 = vpack.c.b16 %v587, %v584
        %v633 = vpack.c.b16 %v591, %v588
        %v634 = vpack.c.b16 %v592, %v589
        %v635 = vpack.c.b16 %v593, %v590
        %v636 = vpack.c.b16 %v597, %v594
        %v637 = vpack.c.b16 %v598, %v595
        %v638 = vpack.c.b16 %v599, %v596
        %v639 = vpack.c.b16 %v603, %v600
        %v640 = vpack.c.b16 %v604, %v601
        %v641 = vpack.c.b16 %v605, %v602
        %v642 = vpack.c.b16 %v609, %v606
        %v643 = vpack.c.b16 %v610, %v607
        %v644 = vpack.c.b16 %v611, %v608
        %v645 = vpack.c.b16 %v615, %v612
        %v646 = vpack.c.b16 %v616, %v613
        %v647 = vpack.c.b16 %v617, %v614
        %v648 = vpack.c.b16 %v621, %v618
        %v649 = vpack.c.b16 %v622, %v619
        %v650 = vpack.c.b16 %v623, %v620
        %v651 = vpack.c.b16 %v627, %v624
        %v652 = vpack.c.b16 %v628, %v625
        %v653 = vpack.c.b16 %v629, %v626
        %678 = vmatprep.subr.bf16.mxu0 %v631
        %679 = vmatpush1.bf16.msra.mxu0 %v630
        %680 = vmatprep.subr.bf16.mxu0 %v634
        %681 = vmatpush1.bf16.msra.mxu0 %v633
        %682 = vmatprep.subr.bf16.mxu0 %v637
        %683 = vmatpush1.bf16.msra.mxu0 %v636
        %684 = vmatprep.subr.bf16.mxu0 %v640
        %685 = vmatpush1.bf16.msra.mxu0 %v639
        %686 = vmatprep.subr.bf16.mxu0 %v643
        %687 = vmatpush1.bf16.msra.mxu0 %v642
        %688 = vmatprep.subr.bf16.mxu0 %v646
        %689 = vmatpush1.bf16.msra.mxu0 %v645
        %690 = vmatprep.subr.bf16.mxu0 %v649
        %691 = vmatpush1.bf16.msra.mxu0 %v648
        %692 = vmatprep.subr.bf16.mxu0 %v652
        %693 = vmatpush1.bf16.msra.mxu0 %v651
        %694 = vmatprep.subr.bf16.mxu0 0
        %695 = vmatpush1.bf16.msra.mxu0 0
        %696 = vmatprep.subr.bf16.mxu0 0
        %697 = vmatpush1.bf16.msra.mxu0 0
        %698 = vmatprep.subr.bf16.mxu0 0
        %699 = vmatpush1.bf16.msra.mxu0 0
        %700 = vmatprep.subr.bf16.mxu0 0
        %701 = vmatpush1.bf16.msra.mxu0 0
        %702 = vmatprep.subr.bf16.mxu0 0
        %703 = vmatpush1.bf16.msra.mxu0 0
        %704 = vmatprep.subr.bf16.mxu0 0
        %705 = vmatpush1.bf16.msra.mxu0 0
        %706 = vmatprep.subr.bf16.mxu0 0
        %707 = vmatpush1.bf16.msra.mxu0 0
        %708 = vmatprep.subr.bf16.mxu0 0
        %709 = vmatpush1.bf16.msra.mxu0 0
        %710 = vmatprep.mubr.bf16.mxu0 0
        %711 = vmatmul.mubr.bf16.gmra.mrb[0].mxu0 %v517
        %v712 = vpop.f32.mrb[0].mxu0
        %v713 = vadd.f32 0.0, %v712
        %v714 = vpop.f32.mrb[0].mxu0
        %v715 = vadd.f32 0.0, %v714
        %v716 = vpop.f32.mrb[0].mxu0
        %v717 = vadd.f32 0.0, %v716
        %v718 = vpop.f32.mrb[0].mxu0
        %v719 = vadd.f32 0.0, %v718
        %720 = vdwg.mxu0
        %721 = vmatprep.subr.bf16.mxu0 0
        %722 = vmatpush1.bf16.msra.mxu0 %v632
        %723 = vmatprep.subr.bf16.mxu0 0
        %724 = vmatpush1.bf16.msra.mxu0 %v635
        %725 = vmatprep.subr.bf16.mxu0 0
        %726 = vmatpush1.bf16.msra.mxu0 %v638
        %727 = vmatprep.subr.bf16.mxu0 0
        %728 = vmatpush1.bf16.msra.mxu0 %v641
        %729 = vmatprep.subr.bf16.mxu0 0
        %730 = vmatpush1.bf16.msra.mxu0 %v644
        %731 = vmatprep.subr.bf16.mxu0 0
        %732 = vmatpush1.bf16.msra.mxu0 %v647
        %733 = vmatprep.subr.bf16.mxu0 0
        %734 = vmatpush1.bf16.msra.mxu0 %v650
        %735 = vmatprep.subr.bf16.mxu0 0
        %736 = vmatpush1.bf16.msra.mxu0 %v653
        %737 = vmatprep.subr.bf16.mxu0 0
        %738 = vmatpush1.bf16.msra.mxu0 0
        %739 = vmatprep.subr.bf16.mxu0 0
        %740 = vmatpush1.bf16.msra.mxu0 0
        %741 = vmatprep.subr.bf16.mxu0 0
        %742 = vmatpush1.bf16.msra.mxu0 0
        %743 = vmatprep.subr.bf16.mxu0 0
        %744 = vmatpush1.bf16.msra.mxu0 0
        %745 = vmatprep.subr.bf16.mxu0 0
        %746 = vmatpush1.bf16.msra.mxu0 0
        %747 = vmatprep.subr.bf16.mxu0 0
        %748 = vmatpush1.bf16.msra.mxu0 0
        %749 = vmatprep.subr.bf16.mxu0 0
        %750 = vmatpush1.bf16.msra.mxu0 0
        %751 = vmatprep.subr.bf16.mxu0 0
        %752 = vmatpush1.bf16.msra.mxu0 0
        %753 = vmatprep.mubr.bf16.mxu0 0
        %754 = vmatmul.mubr.bf16.gmra.mrb[0].mxu0 %v517
        %v755 = vpop.f32.mrb[0].mxu0
        %v756 = vadd.f32 0.0, %v755
        %v757 = vpop.f32.mrb[0].mxu0
        %v758 = vpop.f32.mrb[0].mxu0
        %v759 = vadd.f32 0.0, %v758
        %v760 = vpop.f32.mrb[0].mxu0
        %761 = vdwg.mxu0
        %v762 = vpack.c.bf16 %v717, %v713
        %v763 = vpack.c.bf16 %v719, %v715
        %v764 = vpack.c.bf16 %v759, %v756
        %vm765 = vcmask 261120
        %v767 = vsel %vm765, %v762, 0
        %v770 = vsel %vm765, %v763, 0
        %772 = vmatprep.subr.bf16.mxu0 0
        %773 = vmatpush1.bf16.xpose.msra.mxu0 %v770
        %774 = vmatprep.subr.bf16.mxu0 0
        %775 = vmatpush1.bf16.xpose.msra.mxu0 0
        %776 = vmatprep.subr.bf16.mxu0 0
        %777 = vmatpush1.bf16.xpose.msra.mxu0 0
        %778 = vmatprep.subr.bf16.mxu0 0
        %779 = vmatpush1.bf16.xpose.msra.mxu0 0
        %780 = vmatprep.subr.bf16.mxu0 0
        %781 = vmatpush1.bf16.xpose.msra.mxu0 0
        %782 = vmatprep.subr.bf16.mxu0 0
        %783 = vmatpush1.bf16.xpose.msra.mxu0 0
        %784 = vmatprep.subr.bf16.mxu0 0
        %785 = vmatpush1.bf16.xpose.msra.mxu0 0
        %786 = vmatprep.subr.bf16.mxu0 0
        %787 = vmatpush1.bf16.xpose.msra.mxu0 0
        %788 = vmatprep.subr.bf16.mxu0 0
        %789 = vmatpush1.bf16.xpose.msra.mxu0 0
        %790 = vmatprep.subr.bf16.mxu0 0
        %791 = vmatpush1.bf16.xpose.msra.mxu0 0
        %792 = vmatprep.subr.bf16.mxu0 0
        %793 = vmatpush1.bf16.xpose.msra.mxu0 0
        %794 = vmatprep.subr.bf16.mxu0 0
        %795 = vmatpush1.bf16.xpose.msra.mxu0 0
        %796 = vmatprep.subr.bf16.mxu0 0
        %797 = vmatpush1.bf16.xpose.msra.mxu0 0
        %798 = vmatprep.subr.bf16.mxu0 0
        %799 = vmatpush1.bf16.xpose.msra.mxu0 0
        %800 = vmatprep.subr.bf16.mxu0 0
        %801 = vmatpush1.bf16.xpose.msra.mxu0 0
        %802 = vmatprep.subr.bf16.mxu0 0
        %803 = vmatpush1.bf16.xpose.msra.mxu0 0
        %804 = vmatprep.mubr.bf16.mxu0 0
        %805 = vmatmul.mubr.bf16.gmra.mrb[0].mxu0 %v767
        %v806 = vpop.f32.mrb[0].mxu0
        %v807 = vadd.f32 0.0, %v806
        %v808 = vpop.f32.mrb[0].mxu0
        %v809 = vpop.f32.mrb[0].mxu0
        %v810 = vadd.f32 0.0, %v809
        %v811 = vpop.f32.mrb[0].mxu0
        %812 = vdwg.mxu0
        %v813 = vsel %vm474, %v807, -1e+30
        %v814 = vsel %vm475, %v810, -1e+30
        %vm815 = vcmask 130048
        %v816 = vsel %vm815, %v813, -inf
        %817 = vmax.xlane.f32.xlu0 %v816
        %v818 = vpop.xlane.xlu0 %817
        %v819 = vsel %vm815, %v814, -inf
        %820 = vmax.xlane.f32.xlu0 %v819
        %v821 = vpop.xlane.xlu0 %820
        %v822 = vsub.f32 %v813, %v818
        %v823 = vsub.f32 %v814, %v821
        %v824 = vmul.f32 %v822, 1.442695
        %v825 = vpow.pop %v824
        %v826 = vmul.f32 %v823, 1.442695
        %v827 = vpow.pop %v826
        %v828 = vsel %vm815, %v825, 0.0
        %829 = vadd.xlane.f32.xlu0 %v828
        %v830 = vpop.xlane.xlu0 %829
        %v831 = vsel %vm815, %v827, 0.0
        %832 = vadd.xlane.f32.xlu0 %v831
        %v833 = vpop.xlane.xlu0 %832
        %v834 = vrcp.pop %v830
        %v835 = vrcp.pop %v833
        %v836 = vmul.f32 %v825, %v834
        %v837 = vmul.f32 %v827, %v835
        %v838 = vpack.c.bf16 %v837, %v836
        %v840 = vsel %vm815, %v838, 0
        %842 = vmatprep.subr.bf16.mxu0 0
        %843 = vmatpush1.bf16.msra.mxu0 %v764
        %844 = vmatprep.subr.bf16.mxu0 0
        %845 = vmatpush1.bf16.msra.mxu0 0
        %846 = vmatprep.subr.bf16.mxu0 0
        %847 = vmatpush1.bf16.msra.mxu0 0
        %848 = vmatprep.subr.bf16.mxu0 0
        %849 = vmatpush1.bf16.msra.mxu0 0
        %850 = vmatprep.subr.bf16.mxu0 0
        %851 = vmatpush1.bf16.msra.mxu0 0
        %852 = vmatprep.subr.bf16.mxu0 0
        %853 = vmatpush1.bf16.msra.mxu0 0
        %854 = vmatprep.subr.bf16.mxu0 0
        %855 = vmatpush1.bf16.msra.mxu0 0
        %856 = vmatprep.subr.bf16.mxu0 0
        %857 = vmatpush1.bf16.msra.mxu0 0
        %858 = vmatprep.subr.bf16.mxu0 0
        %859 = vmatpush1.bf16.msra.mxu0 0
        %860 = vmatprep.subr.bf16.mxu0 0
        %861 = vmatpush1.bf16.msra.mxu0 0
        %862 = vmatprep.subr.bf16.mxu0 0
        %863 = vmatpush1.bf16.msra.mxu0 0
        %864 = vmatprep.subr.bf16.mxu0 0
        %865 = vmatpush1.bf16.msra.mxu0 0
        %866 = vmatprep.subr.bf16.mxu0 0
        %867 = vmatpush1.bf16.msra.mxu0 0
        %868 = vmatprep.subr.bf16.mxu0 0
        %869 = vmatpush1.bf16.msra.mxu0 0
        %870 = vmatprep.subr.bf16.mxu0 0
        %871 = vmatpush1.bf16.msra.mxu0 0
        %872 = vmatprep.subr.bf16.mxu0 0
        %873 = vmatpush1.bf16.msra.mxu0 0
        %874 = vmatprep.mubr.bf16.mxu0 0
        %875 = vmatmul.mubr.bf16.gmra.mrb[0].mxu0 %v840
        %v876 = vpop.f32.mrb[0].mxu0
        %v877 = vadd.f32 0.0, %v876
        %v878 = vpop.f32.mrb[0].mxu0
        %v879 = vpop.f32.mrb[0].mxu0
        %v880 = vadd.f32 0.0, %v879
        %v881 = vpop.f32.mrb[0].mxu0
        %882 = vdwg.mxu0
        %884 = vrot.lane.b32.xlu0 %v762, 96
        %v885 = vpop.permute.xlu0 %884
        %887 = vrot.lane.b32.xlu0 %v763, 96
        %v888 = vpop.permute.xlu0 %887
        %v890 = vsel %vm765, %v885, 0
        %v893 = vsel %vm765, %v888, 0
        %895 = vmatprep.subr.bf16.mxu0 0
        %896 = vmatpush1.bf16.xpose.msra.mxu0 %v893
        %897 = vmatprep.subr.bf16.mxu0 0
        %898 = vmatpush1.bf16.xpose.msra.mxu0 0
        %899 = vmatprep.subr.bf16.mxu0 0
        %900 = vmatpush1.bf16.xpose.msra.mxu0 0
        %901 = vmatprep.subr.bf16.mxu0 0
        %902 = vmatpush1.bf16.xpose.msra.mxu0 0
        %903 = vmatprep.subr.bf16.mxu0 0
        %904 = vmatpush1.bf16.xpose.msra.mxu0 0
        %905 = vmatprep.subr.bf16.mxu0 0
        %906 = vmatpush1.bf16.xpose.msra.mxu0 0
        %907 = vmatprep.subr.bf16.mxu0 0
        %908 = vmatpush1.bf16.xpose.msra.mxu0 0
        %909 = vmatprep.subr.bf16.mxu0 0
        %910 = vmatpush1.bf16.xpose.msra.mxu0 0
        %911 = vmatprep.subr.bf16.mxu0 0
        %912 = vmatpush1.bf16.xpose.msra.mxu0 0
        %913 = vmatprep.subr.bf16.mxu0 0
        %914 = vmatpush1.bf16.xpose.msra.mxu0 0
        %915 = vmatprep.subr.bf16.mxu0 0
        %916 = vmatpush1.bf16.xpose.msra.mxu0 0
        %917 = vmatprep.subr.bf16.mxu0 0
        %918 = vmatpush1.bf16.xpose.msra.mxu0 0
        %919 = vmatprep.subr.bf16.mxu0 0
        %920 = vmatpush1.bf16.xpose.msra.mxu0 0
        %921 = vmatprep.subr.bf16.mxu0 0
        %922 = vmatpush1.bf16.xpose.msra.mxu0 0
        %923 = vmatprep.subr.bf16.mxu0 0
        %924 = vmatpush1.bf16.xpose.msra.mxu0 0
        %925 = vmatprep.subr.bf16.mxu0 0
        %926 = vmatpush1.bf16.xpose.msra.mxu0 0
        %927 = vmatprep.mubr.bf16.mxu0 0
        %928 = vmatmul.mubr.bf16.gmra.mrb[0].mxu0 %v890
        %v929 = vpop.f32.mrb[0].mxu0
        %v930 = vadd.f32 0.0, %v929
        %v931 = vpop.f32.mrb[0].mxu0
        %v932 = vpop.f32.mrb[0].mxu0
        %v933 = vadd.f32 0.0, %v932
        %v934 = vpop.f32.mrb[0].mxu0
        %935 = vdwg.mxu0
        %v936 = vsel %vm474, %v930, -1e+30
        %v937 = vsel %vm475, %v933, -1e+30
        %v938 = vsel %vm815, %v936, -inf
        %939 = vmax.xlane.f32.xlu0 %v938
        %v940 = vpop.xlane.xlu0 %939
        %v941 = vsel %vm815, %v937, -inf
        %942 = vmax.xlane.f32.xlu0 %v941
        %v943 = vpop.xlane.xlu0 %942
        %v944 = vsub.f32 %v936, %v940
        %v945 = vsub.f32 %v937, %v943
        %v946 = vmul.f32 %v944, 1.442695
        %v947 = vpow.pop %v946
        %v948 = vmul.f32 %v945, 1.442695
        %v949 = vpow.pop %v948
        %v950 = vsel %vm815, %v947, 0.0
        %951 = vadd.xlane.f32.xlu0 %v950
        %v952 = vpop.xlane.xlu0 %951
        %v953 = vsel %vm815, %v949, 0.0
        %954 = vadd.xlane.f32.xlu0 %v953
        %v955 = vpop.xlane.xlu0 %954
        %v956 = vrcp.pop %v952
        %v957 = vrcp.pop %v955
        %v958 = vmul.f32 %v947, %v956
        %v959 = vmul.f32 %v949, %v957
        %v960 = vpack.c.bf16 %v959, %v958
        %962 = vrot.lane.b32.xlu0 %v764, 96
        %v963 = vpop.permute.xlu0 %962
        %v966 = vsel %vm815, %v960, 0
        %968 = vmatprep.subr.bf16.mxu0 0
        %969 = vmatpush1.bf16.msra.mxu0 %v963
        %970 = vmatprep.subr.bf16.mxu0 0
        %971 = vmatpush1.bf16.msra.mxu0 0
        %972 = vmatprep.subr.bf16.mxu0 0
        %973 = vmatpush1.bf16.msra.mxu0 0
        %974 = vmatprep.subr.bf16.mxu0 0
        %975 = vmatpush1.bf16.msra.mxu0 0
        %976 = vmatprep.subr.bf16.mxu0 0
        %977 = vmatpush1.bf16.msra.mxu0 0
        %978 = vmatprep.subr.bf16.mxu0 0
        %979 = vmatpush1.bf16.msra.mxu0 0
        %980 = vmatprep.subr.bf16.mxu0 0
        %981 = vmatpush1.bf16.msra.mxu0 0
        %982 = vmatprep.subr.bf16.mxu0 0
        %983 = vmatpush1.bf16.msra.mxu0 0
        %984 = vmatprep.subr.bf16.mxu0 0
        %985 = vmatpush1.bf16.msra.mxu0 0
        %986 = vmatprep.subr.bf16.mxu0 0
        %987 = vmatpush1.bf16.msra.mxu0 0
        %988 = vmatprep.subr.bf16.mxu0 0
        %989 = vmatpush1.bf16.msra.mxu0 0
        %990 = vmatprep.subr.bf16.mxu0 0
        %991 = vmatpush1.bf16.msra.mxu0 0
        %992 = vmatprep.subr.bf16.mxu0 0
        %993 = vmatpush1.bf16.msra.mxu0 0
        %994 = vmatprep.subr.bf16.mxu0 0
        %995 = vmatpush1.bf16.msra.mxu0 0
        %996 = vmatprep.subr.bf16.mxu0 0
        %997 = vmatpush1.bf16.msra.mxu0 0
        %998 = vmatprep.subr.bf16.mxu0 0
        %999 = vmatpush1.bf16.msra.mxu0 0
        %1000 = vmatprep.mubr.bf16.mxu0 0
        %1001 = vmatmul.mubr.bf16.gmra.mrb[0].mxu0 %v966
        %v1002 = vpop.f32.mrb[0].mxu0
        %v1003 = vadd.f32 0.0, %v1002
        %v1004 = vpop.f32.mrb[0].mxu0
        %v1005 = vpop.f32.mrb[0].mxu0
        %v1006 = vadd.f32 0.0, %v1005
        %v1007 = vpop.f32.mrb[0].mxu0
        %1008 = vdwg.mxu0
        %1009 = vrot.lane.b32.xlu0 %v762, 64
        %v1010 = vpop.permute.xlu0 %1009
        %1011 = vrot.lane.b32.xlu0 %v763, 64
        %v1012 = vpop.permute.xlu0 %1011
        %v1014 = vsel %vm765, %v1010, 0
        %v1017 = vsel %vm765, %v1012, 0
        %1019 = vmatprep.subr.bf16.mxu0 0
        %1020 = vmatpush1.bf16.xpose.msra.mxu0 %v1017
        %1021 = vmatprep.subr.bf16.mxu0 0
        %1022 = vmatpush1.bf16.xpose.msra.mxu0 0
        %1023 = vmatprep.subr.bf16.mxu0 0
        %1024 = vmatpush1.bf16.xpose.msra.mxu0 0
        %1025 = vmatprep.subr.bf16.mxu0 0
        %1026 = vmatpush1.bf16.xpose.msra.mxu0 0
        %1027 = vmatprep.subr.bf16.mxu0 0
        %1028 = vmatpush1.bf16.xpose.msra.mxu0 0
        %1029 = vmatprep.subr.bf16.mxu0 0
        %1030 = vmatpush1.bf16.xpose.msra.mxu0 0
        %1031 = vmatprep.subr.bf16.mxu0 0
        %1032 = vmatpush1.bf16.xpose.msra.mxu0 0
        %1033 = vmatprep.subr.bf16.mxu0 0
        %1034 = vmatpush1.bf16.xpose.msra.mxu0 0
        %1035 = vmatprep.subr.bf16.mxu0 0
        %1036 = vmatpush1.bf16.xpose.msra.mxu0 0
        %1037 = vmatprep.subr.bf16.mxu0 0
        %1038 = vmatpush1.bf16.xpose.msra.mxu0 0
        %1039 = vmatprep.subr.bf16.mxu0 0
        %1040 = vmatpush1.bf16.xpose.msra.mxu0 0
        %1041 = vmatprep.subr.bf16.mxu0 0
        %1042 = vmatpush1.bf16.xpose.msra.mxu0 0
        %1043 = vmatprep.subr.bf16.mxu0 0
        %1044 = vmatpush1.bf16.xpose.msra.mxu0 0
        %1045 = vmatprep.subr.bf16.mxu0 0
        %1046 = vmatpush1.bf16.xpose.msra.mxu0 0
        %1047 = vmatprep.subr.bf16.mxu0 0
        %1048 = vmatpush1.bf16.xpose.msra.mxu0 0
        %1049 = vmatprep.subr.bf16.mxu0 0
        %1050 = vmatpush1.bf16.xpose.msra.mxu0 0
        %1051 = vmatprep.mubr.bf16.mxu0 0
        %1052 = vmatmul.mubr.bf16.gmra.mrb[0].mxu0 %v1014
        %v1053 = vpop.f32.mrb[0].mxu0
        %v1054 = vadd.f32 0.0, %v1053
        %v1055 = vpop.f32.mrb[0].mxu0
        %v1056 = vpop.f32.mrb[0].mxu0
        %v1057 = vadd.f32 0.0, %v1056
        %v1058 = vpop.f32.mrb[0].mxu0
        %1059 = vdwg.mxu0
        %v1060 = vsel %vm474, %v1054, -1e+30
        %v1061 = vsel %vm475, %v1057, -1e+30
        %v1062 = vsel %vm815, %v1060, -inf
        %1063 = vmax.xlane.f32.xlu0 %v1062
        %v1064 = vpop.xlane.xlu0 %1063
        %v1065 = vsel %vm815, %v1061, -inf
        %1066 = vmax.xlane.f32.xlu0 %v1065
        %v1067 = vpop.xlane.xlu0 %1066
        %v1068 = vsub.f32 %v1060, %v1064
        %v1069 = vsub.f32 %v1061, %v1067
        %v1070 = vmul.f32 %v1068, 1.442695
        %v1071 = vpow.pop %v1070
        %v1072 = vmul.f32 %v1069, 1.442695
        %v1073 = vpow.pop %v1072
        %v1074 = vsel %vm815, %v1071, 0.0
        %1075 = vadd.xlane.f32.xlu0 %v1074
        %v1076 = vpop.xlane.xlu0 %1075
        %v1077 = vsel %vm815, %v1073, 0.0
        %1078 = vadd.xlane.f32.xlu0 %v1077
        %v1079 = vpop.xlane.xlu0 %1078
        %v1080 = vrcp.pop %v1076
        %v1081 = vrcp.pop %v1079
        %v1082 = vmul.f32 %v1071, %v1080
        %v1083 = vmul.f32 %v1073, %v1081
        %v1084 = vpack.c.bf16 %v1083, %v1082
        %1085 = vrot.lane.b32.xlu0 %v764, 64
        %v1086 = vpop.permute.xlu0 %1085
        %v1089 = vsel %vm815, %v1084, 0
        %1091 = vmatprep.subr.bf16.mxu0 0
        %1092 = vmatpush1.bf16.msra.mxu0 %v1086
        %1093 = vmatprep.subr.bf16.mxu0 0
        %1094 = vmatpush1.bf16.msra.mxu0 0
        %1095 = vmatprep.subr.bf16.mxu0 0
        %1096 = vmatpush1.bf16.msra.mxu0 0
        %1097 = vmatprep.subr.bf16.mxu0 0
        %1098 = vmatpush1.bf16.msra.mxu0 0
        %1099 = vmatprep.subr.bf16.mxu0 0
        %1100 = vmatpush1.bf16.msra.mxu0 0
        %1101 = vmatprep.subr.bf16.mxu0 0
        %1102 = vmatpush1.bf16.msra.mxu0 0
        %1103 = vmatprep.subr.bf16.mxu0 0
        %1104 = vmatpush1.bf16.msra.mxu0 0
        %1105 = vmatprep.subr.bf16.mxu0 0
        %1106 = vmatpush1.bf16.msra.mxu0 0
        %1107 = vmatprep.subr.bf16.mxu0 0
        %1108 = vmatpush1.bf16.msra.mxu0 0
        %1109 = vmatprep.subr.bf16.mxu0 0
        %1110 = vmatpush1.bf16.msra.mxu0 0
        %1111 = vmatprep.subr.bf16.mxu0 0
        %1112 = vmatpush1.bf16.msra.mxu0 0
        %1113 = vmatprep.subr.bf16.mxu0 0
        %1114 = vmatpush1.bf16.msra.mxu0 0
        %1115 = vmatprep.subr.bf16.mxu0 0
        %1116 = vmatpush1.bf16.msra.mxu0 0
        %1117 = vmatprep.subr.bf16.mxu0 0
        %1118 = vmatpush1.bf16.msra.mxu0 0
        %1119 = vmatprep.subr.bf16.mxu0 0
        %1120 = vmatpush1.bf16.msra.mxu0 0
        %1121 = vmatprep.subr.bf16.mxu0 0
        %1122 = vmatpush1.bf16.msra.mxu0 0
        %1123 = vmatprep.mubr.bf16.mxu0 0
        %1124 = vmatmul.mubr.bf16.gmra.mrb[0].mxu0 %v1089
        %v1125 = vpop.f32.mrb[0].mxu0
        %v1126 = vadd.f32 0.0, %v1125
        %v1127 = vpop.f32.mrb[0].mxu0
        %v1128 = vpop.f32.mrb[0].mxu0
        %v1129 = vadd.f32 0.0, %v1128
        %v1130 = vpop.f32.mrb[0].mxu0
        %1131 = vdwg.mxu0
        %1132 = vrot.lane.b32.xlu0 %v762, 32
        %v1133 = vpop.permute.xlu0 %1132
        %1134 = vrot.lane.b32.xlu0 %v763, 32
        %v1135 = vpop.permute.xlu0 %1134
        %v1137 = vsel %vm765, %v1133, 0
        %v1140 = vsel %vm765, %v1135, 0
        %1142 = vmatprep.subr.bf16.mxu0 0
        %1143 = vmatpush1.bf16.xpose.msra.mxu0 %v1140
        %1144 = vmatprep.subr.bf16.mxu0 0
        %1145 = vmatpush1.bf16.xpose.msra.mxu0 0
        %1146 = vmatprep.subr.bf16.mxu0 0
        %1147 = vmatpush1.bf16.xpose.msra.mxu0 0
        %1148 = vmatprep.subr.bf16.mxu0 0
        %1149 = vmatpush1.bf16.xpose.msra.mxu0 0
        %1150 = vmatprep.subr.bf16.mxu0 0
        %1151 = vmatpush1.bf16.xpose.msra.mxu0 0
        %1152 = vmatprep.subr.bf16.mxu0 0
        %1153 = vmatpush1.bf16.xpose.msra.mxu0 0
        %1154 = vmatprep.subr.bf16.mxu0 0
        %1155 = vmatpush1.bf16.xpose.msra.mxu0 0
        %1156 = vmatprep.subr.bf16.mxu0 0
        %1157 = vmatpush1.bf16.xpose.msra.mxu0 0
        %1158 = vmatprep.subr.bf16.mxu0 0
        %1159 = vmatpush1.bf16.xpose.msra.mxu0 0
        %1160 = vmatprep.subr.bf16.mxu0 0
        %1161 = vmatpush1.bf16.xpose.msra.mxu0 0
        %1162 = vmatprep.subr.bf16.mxu0 0
        %1163 = vmatpush1.bf16.xpose.msra.mxu0 0
        %1164 = vmatprep.subr.bf16.mxu0 0
        %1165 = vmatpush1.bf16.xpose.msra.mxu0 0
        %1166 = vmatprep.subr.bf16.mxu0 0
        %1167 = vmatpush1.bf16.xpose.msra.mxu0 0
        %1168 = vmatprep.subr.bf16.mxu0 0
        %1169 = vmatpush1.bf16.xpose.msra.mxu0 0
        %1170 = vmatprep.subr.bf16.mxu0 0
        %1171 = vmatpush1.bf16.xpose.msra.mxu0 0
        %1172 = vmatprep.subr.bf16.mxu0 0
        %1173 = vmatpush1.bf16.xpose.msra.mxu0 0
        %1174 = vmatprep.mubr.bf16.mxu0 0
        %1175 = vmatmul.mubr.bf16.gmra.mrb[0].mxu0 %v1137
        %v1176 = vpop.f32.mrb[0].mxu0
        %v1177 = vadd.f32 0.0, %v1176
        %v1178 = vpop.f32.mrb[0].mxu0
        %v1179 = vpop.f32.mrb[0].mxu0
        %v1180 = vadd.f32 0.0, %v1179
        %v1181 = vpop.f32.mrb[0].mxu0
        %1182 = vdwg.mxu0
        %v1183 = vsel %vm474, %v1177, -1e+30
        %v1184 = vsel %vm475, %v1180, -1e+30
        %v1185 = vsel %vm815, %v1183, -inf
        %1186 = vmax.xlane.f32.xlu0 %v1185
        %v1187 = vpop.xlane.xlu0 %1186
        %v1188 = vsel %vm815, %v1184, -inf
        %1189 = vmax.xlane.f32.xlu0 %v1188
        %v1190 = vpop.xlane.xlu0 %1189
        %v1191 = vsub.f32 %v1183, %v1187
        %v1192 = vsub.f32 %v1184, %v1190
        %v1193 = vmul.f32 %v1191, 1.442695
        %v1194 = vpow.pop %v1193
        %v1195 = vmul.f32 %v1192, 1.442695
        %v1196 = vpow.pop %v1195
        %v1197 = vsel %vm815, %v1194, 0.0
        %1198 = vadd.xlane.f32.xlu0 %v1197
        %v1199 = vpop.xlane.xlu0 %1198
        %v1200 = vsel %vm815, %v1196, 0.0
        %1201 = vadd.xlane.f32.xlu0 %v1200
        %v1202 = vpop.xlane.xlu0 %1201
        %v1203 = vrcp.pop %v1199
        %v1204 = vrcp.pop %v1202
        %v1205 = vmul.f32 %v1194, %v1203
        %v1206 = vmul.f32 %v1196, %v1204
        %v1207 = vpack.c.bf16 %v1206, %v1205
        %1208 = vrot.lane.b32.xlu0 %v764, 32
        %v1209 = vpop.permute.xlu0 %1208
        %v1212 = vsel %vm815, %v1207, 0
        %1214 = vmatprep.subr.bf16.mxu0 0
        %1215 = vmatpush1.bf16.msra.mxu0 %v1209
        %1216 = vmatprep.subr.bf16.mxu0 0
        %1217 = vmatpush1.bf16.msra.mxu0 0
        %1218 = vmatprep.subr.bf16.mxu0 0
        %1219 = vmatpush1.bf16.msra.mxu0 0
        %1220 = vmatprep.subr.bf16.mxu0 0
        %1221 = vmatpush1.bf16.msra.mxu0 0
        %1222 = vmatprep.subr.bf16.mxu0 0
        %1223 = vmatpush1.bf16.msra.mxu0 0
        %1224 = vmatprep.subr.bf16.mxu0 0
        %1225 = vmatpush1.bf16.msra.mxu0 0
        %1226 = vmatprep.subr.bf16.mxu0 0
        %1227 = vmatpush1.bf16.msra.mxu0 0
        %1228 = vmatprep.subr.bf16.mxu0 0
        %1229 = vmatpush1.bf16.msra.mxu0 0
        %1230 = vmatprep.subr.bf16.mxu0 0
        %1231 = vmatpush1.bf16.msra.mxu0 0
        %1232 = vmatprep.subr.bf16.mxu0 0
        %1233 = vmatpush1.bf16.msra.mxu0 0
        %1234 = vmatprep.subr.bf16.mxu0 0
        %1235 = vmatpush1.bf16.msra.mxu0 0
        %1236 = vmatprep.subr.bf16.mxu0 0
        %1237 = vmatpush1.bf16.msra.mxu0 0
        %1238 = vmatprep.subr.bf16.mxu0 0
        %1239 = vmatpush1.bf16.msra.mxu0 0
        %1240 = vmatprep.subr.bf16.mxu0 0
        %1241 = vmatpush1.bf16.msra.mxu0 0
        %1242 = vmatprep.subr.bf16.mxu0 0
        %1243 = vmatpush1.bf16.msra.mxu0 0
        %1244 = vmatprep.subr.bf16.mxu0 0
        %1245 = vmatpush1.bf16.msra.mxu0 0
        %1246 = vmatprep.mubr.bf16.mxu0 0
        %1247 = vmatmul.mubr.bf16.gmra.mrb[0].mxu0 %v1212
        %v1248 = vpop.f32.mrb[0].mxu0
        %v1249 = vadd.f32 0.0, %v1248
        %v1250 = vpop.f32.mrb[0].mxu0
        %v1251 = vpop.f32.mrb[0].mxu0
        %v1252 = vadd.f32 0.0, %v1251
        %v1253 = vpop.f32.mrb[0].mxu0
        %1254 = vdwg.mxu0
        %1257 = vrot.lane.b32.xlu0 %v1003, 32
        %v1258 = vpop.permute.xlu0 %1257
        %1259 = vrot.lane.b32.xlu0 %v1006, 32
        %v1260 = vpop.permute.xlu0 %1259
        %1265 = vrot.lane.b32.xlu0 %v1126, 64
        %v1266 = vpop.permute.xlu0 %1265
        %1267 = vrot.lane.b32.xlu0 %v1129, 64
        %v1268 = vpop.permute.xlu0 %1267
        %1273 = vrot.lane.b32.xlu0 %v1249, 96
        %v1274 = vpop.permute.xlu0 %1273
        %1275 = vrot.lane.b32.xlu0 %v1252, 96
        %v1276 = vpop.permute.xlu0 %1275
        %v1279 = vsel %vm765, %v877, %v1258
        %v1280 = vsel %vm765, %v880, %v1260
        %vm1281 = vcmask 523264
        %v1282 = vsel %vm1281, %v1279, %v1266
        %v1283 = vsel %vm1281, %v1280, %v1268
        %vm1284 = vcmask 785408
        %v1285 = vsel %vm1284, %v1282, %v1274
        %v1286 = vsel %vm1284, %v1283, %v1276
        %v1287 = vpack.c.bf16 %v1286, %v1285
        %v1288 = vld [vmem:[%s4] sm:$0xf]
        %v1289 = vld [vmem:[%s4 + $0x4] sm:$0xf]
        %v1290 = vld [vmem:[%s4 + $0x8] sm:$0xf]
        %v1291 = vld [vmem:[%s4 + $0xc] sm:$0xf]
        %v1292 = vld [vmem:[%s4 + $0x10] sm:$0xf]
        %v1293 = vld [vmem:[%s4 + $0x14] sm:$0xf]
        %v1294 = vld [vmem:[%s4 + $0x18] sm:$0xf]
        %v1295 = vld [vmem:[%s4 + $0x1c] sm:$0xf]
        %v1296 = vld [vmem:[%s4 + $0x20] sm:$0xf]
        %v1297 = vld [vmem:[%s4 + $0x24] sm:$0xf]
        %v1298 = vld [vmem:[%s4 + $0x28] sm:$0xf]
        %v1299 = vld [vmem:[%s4 + $0x2c] sm:$0xf]
        %v1300 = vld [vmem:[%s4 + $0x30] sm:$0xf]
        %v1301 = vld [vmem:[%s4 + $0x34] sm:$0xf]
        %v1302 = vld [vmem:[%s4 + $0x38] sm:$0xf]
        %v1303 = vld [vmem:[%s4 + $0x3c] sm:$0xf]
        %v1304 = vld [vmem:[%s5] sm:$0x1]
        %v1306 = vlaneseq
        %v1307 = vshrl.u32 %v1306, 7
        %v1308 = vsub.s32 0, %v1307
        %v1309 = vrot.slane %v1304, %v1308
        %v1327 = vunpack.c.l.b16 %v1288
        %v1328 = vunpack.c.l.b16 %v1289
        %v1329 = vunpack.c.l.b16 %v1290
        %v1330 = vunpack.c.l.b16 %v1291
        %v1331 = vunpack.c.l.b16 %v1292
        %v1332 = vunpack.c.l.b16 %v1293
        %v1333 = vunpack.c.l.b16 %v1294
        %v1334 = vunpack.c.l.b16 %v1295
        %v1335 = vunpack.c.l.b16 %v1296
        %v1336 = vunpack.c.l.b16 %v1297
        %v1337 = vunpack.c.l.b16 %v1298
        %v1338 = vunpack.c.l.b16 %v1299
        %v1339 = vunpack.c.l.b16 %v1300
        %v1340 = vunpack.c.l.b16 %v1301
        %v1341 = vunpack.c.l.b16 %v1302
        %v1342 = vunpack.c.l.b16 %v1303
        %v1343 = vpack.c.b16 %v1328, %v1327
        %v1344 = vpack.c.b16 %v1330, %v1329
        %v1345 = vpack.c.b16 %v1332, %v1331
        %v1346 = vpack.c.b16 %v1334, %v1333
        %v1347 = vpack.c.b16 %v1336, %v1335
        %v1348 = vpack.c.b16 %v1338, %v1337
        %v1349 = vpack.c.b16 %v1340, %v1339
        %v1350 = vpack.c.b16 %v1342, %v1341
        %1359 = vmatprep.subr.bf16.mxu0 0
        %1360 = vmatpush1.bf16.msra.mxu0 %v1343
        %1361 = vmatprep.subr.bf16.mxu0 0
        %1362 = vmatpush1.bf16.msra.mxu0 %v1344
        %1363 = vmatprep.subr.bf16.mxu0 0
        %1364 = vmatpush1.bf16.msra.mxu0 %v1345
        %1365 = vmatprep.subr.bf16.mxu0 0
        %1366 = vmatpush1.bf16.msra.mxu0 %v1346
        %1367 = vmatprep.subr.bf16.mxu0 0
        %1368 = vmatpush1.bf16.msra.mxu0 %v1347
        %1369 = vmatprep.subr.bf16.mxu0 0
        %1370 = vmatpush1.bf16.msra.mxu0 %v1348
        %1371 = vmatprep.subr.bf16.mxu0 0
        %1372 = vmatpush1.bf16.msra.mxu0 %v1349
        %1373 = vmatprep.subr.bf16.mxu0 0
        %1374 = vmatpush1.bf16.msra.mxu0 %v1350
        %1375 = vmatprep.subr.bf16.mxu0 0
        %1376 = vmatpush1.bf16.msra.mxu0 0
        %1377 = vmatprep.subr.bf16.mxu0 0
        %1378 = vmatpush1.bf16.msra.mxu0 0
        %1379 = vmatprep.subr.bf16.mxu0 0
        %1380 = vmatpush1.bf16.msra.mxu0 0
        %1381 = vmatprep.subr.bf16.mxu0 0
        %1382 = vmatpush1.bf16.msra.mxu0 0
        %1383 = vmatprep.subr.bf16.mxu0 0
        %1384 = vmatpush1.bf16.msra.mxu0 0
        %1385 = vmatprep.subr.bf16.mxu0 0
        %1386 = vmatpush1.bf16.msra.mxu0 0
        %1387 = vmatprep.subr.bf16.mxu0 0
        %1388 = vmatpush1.bf16.msra.mxu0 0
        %1389 = vmatprep.subr.bf16.mxu0 0
        %1390 = vmatpush1.bf16.msra.mxu0 0
        %1391 = vmatprep.mubr.bf16.mxu0 0
        %1392 = vmatmul.mubr.bf16.gmra.mrb[0].mxu0 %v1287
        %v1393 = vpop.f32.mrb[0].mxu0
        %v1394 = vadd.f32 %v1309, %v1393
        %v1395 = vpop.f32.mrb[0].mxu0
        %v1396 = vpop.f32.mrb[0].mxu0
        %v1397 = vadd.f32 %v1309, %v1396
        %v1398 = vpop.f32.mrb[0].mxu0
        %1399 = vdwg.mxu0
        %v1400 = vadd.f32 %v467, %v1394
        %v1401 = vadd.f32 %v468, %v1397
        %v1402 = vld [vmem:[%s6] sm:$0x1]
        %v1403 = vld [vmem:[%s7] sm:$0x1]
        %1404 = vadd.xlane.f32.xlu0 %v1400
        %v1405 = vpop.xlane.xlu0 %1404
        %1406 = vadd.xlane.f32.xlu0 %v1401
        %v1407 = vpop.xlane.xlu0 %1406
        %v1408 = vmul.f32 %v1405, %v482
        %v1409 = vmul.f32 %v1407, %v482
        %v1410 = vsub.f32 %v1400, %v1408
        %v1411 = vsub.f32 %v1401, %v1409
        %v1412 = vmul.f32 %v1410, %v1410
        %v1413 = vmul.f32 %v1411, %v1411
        %1414 = vadd.xlane.f32.xlu0 %v1412
        %v1415 = vpop.xlane.xlu0 %1414
        %1416 = vadd.xlane.f32.xlu0 %v1413
        %v1417 = vpop.xlane.xlu0 %1416
        %v1418 = vmul.f32 %v1415, %v482
        %v1419 = vmul.f32 %v1417, %v482
        %v1420 = vadd.f32 %v1418, 1e-05
        %v1421 = vadd.f32 %v1419, 1e-05
        %v1422 = vrsqrt.pop %v1420
        %v1423 = vrsqrt.pop %v1421
        %v1424 = vmul.f32 %v1410, %v1422
        %v1425 = vmul.f32 %v1411, %v1423
        %v1427 = vlaneseq
        %v1428 = vshrl.u32 %v1427, 7
        %v1429 = vsub.s32 0, %v1428
        %v1430 = vrot.slane %v1402, %v1429
        %v1432 = vmul.f32 %v1424, %v1430
        %v1433 = vmul.f32 %v1425, %v1430
        %v1435 = vlaneseq
        %v1436 = vshrl.u32 %v1435, 7
        %v1437 = vsub.s32 0, %v1436
        %v1438 = vrot.slane %v1403, %v1437
        %v1440 = vadd.f32 %v1432, %v1438
        %v1441 = vadd.f32 %v1433, %v1438
        %v1442 = vpack.c.bf16 %v1441, %v1440
        %v1443 = vld [vmem:[%s8] sm:$0xff]
        %v1444 = vld [vmem:[%s8 + $0x8] sm:$0xff]
        %v1445 = vld [vmem:[%s8 + $0x10] sm:$0xff]
        %v1446 = vld [vmem:[%s8 + $0x18] sm:$0xff]
        %v1447 = vld [vmem:[%s8 + $0x20] sm:$0xff]
        %v1448 = vld [vmem:[%s8 + $0x28] sm:$0xff]
        %v1449 = vld [vmem:[%s8 + $0x30] sm:$0xff]
        %v1450 = vld [vmem:[%s8 + $0x38] sm:$0xff]
        %v1451 = vld [vmem:[%s8 + $0x40] sm:$0xff]
        %v1452 = vld [vmem:[%s8 + $0x48] sm:$0xff]
        %v1453 = vld [vmem:[%s8 + $0x50] sm:$0xff]
        %v1454 = vld [vmem:[%s8 + $0x58] sm:$0xff]
        %v1455 = vld [vmem:[%s8 + $0x60] sm:$0xff]
        %v1456 = vld [vmem:[%s8 + $0x68] sm:$0xff]
        %v1457 = vld [vmem:[%s8 + $0x70] sm:$0xff]
        %v1458 = vld [vmem:[%s8 + $0x78] sm:$0xff]
        %v1459 = vld [vmem:[%s8 + $0x80] sm:$0xff]
        %v1460 = vld [vmem:[%s8 + $0x88] sm:$0xff]
        %v1461 = vld [vmem:[%s8 + $0x90] sm:$0xff]
        %v1462 = vld [vmem:[%s8 + $0x98] sm:$0xff]
        %v1463 = vld [vmem:[%s8 + $0xa0] sm:$0xff]
        %v1464 = vld [vmem:[%s8 + $0xa8] sm:$0xff]
        %v1465 = vld [vmem:[%s8 + $0xb0] sm:$0xff]
        %v1466 = vld [vmem:[%s8 + $0xb8] sm:$0xff]
        %v1467 = vld [vmem:[%s8 + $0xc0] sm:$0xff]
        %v1468 = vld [vmem:[%s8 + $0xc8] sm:$0xff]
        %v1469 = vld [vmem:[%s8 + $0xd0] sm:$0xff]
        %v1470 = vld [vmem:[%s8 + $0xd8] sm:$0xff]
        %v1471 = vld [vmem:[%s8 + $0xe0] sm:$0xff]
        %v1472 = vld [vmem:[%s8 + $0xe8] sm:$0xff]
        %v1473 = vld [vmem:[%s8 + $0xf0] sm:$0xff]
        %v1474 = vld [vmem:[%s8 + $0xf8] sm:$0xff]
        %v1475 = vld [vmem:[%s9] sm:$0xf]
        %v1477 = vlaneseq
        %v1478 = vshrl.u32 %v1477, 7
        %v1479 = vsub.s32 0, %v1478
        %v1480 = vrot.slane %v1475, %v1479
        %v1481 = vlaneseq
        %v1482 = vshrl.u32 %v1481, 7
        %v1483 = vsub.s32 1, %v1482
        %v1484 = vrot.slane %v1475, %v1483
        %v1485 = vlaneseq
        %v1486 = vshrl.u32 %v1485, 7
        %v1487 = vsub.s32 2, %v1486
        %v1488 = vrot.slane %v1475, %v1487
        %v1489 = vlaneseq
        %v1490 = vshrl.u32 %v1489, 7
        %v1491 = vsub.s32 3, %v1490
        %v1492 = vrot.slane %v1475, %v1491
        %v1529 = vunpack.c.l.b16 %v1443
        %v1530 = vunpack.c.h.b16 %v1443
        %v1531 = vunpack.c.l.b16 %v1444
        %v1532 = vunpack.c.h.b16 %v1444
        %v1533 = vunpack.c.l.b16 %v1445
        %v1534 = vunpack.c.h.b16 %v1445
        %v1535 = vunpack.c.l.b16 %v1446
        %v1536 = vunpack.c.h.b16 %v1446
        %v1537 = vunpack.c.l.b16 %v1447
        %v1538 = vunpack.c.h.b16 %v1447
        %v1539 = vunpack.c.l.b16 %v1448
        %v1540 = vunpack.c.h.b16 %v1448
        %v1541 = vunpack.c.l.b16 %v1449
        %v1542 = vunpack.c.h.b16 %v1449
        %v1543 = vunpack.c.l.b16 %v1450
        %v1544 = vunpack.c.h.b16 %v1450
        %v1545 = vunpack.c.l.b16 %v1451
        %v1546 = vunpack.c.h.b16 %v1451
        %v1547 = vunpack.c.l.b16 %v1452
        %v1548 = vunpack.c.h.b16 %v1452
        %v1549 = vunpack.c.l.b16 %v1453
        %v1550 = vunpack.c.h.b16 %v1453
        %v1551 = vunpack.c.l.b16 %v1454
        %v1552 = vunpack.c.h.b16 %v1454
        %v1553 = vunpack.c.l.b16 %v1455
        %v1554 = vunpack.c.h.b16 %v1455
        %v1555 = vunpack.c.l.b16 %v1456
        %v1556 = vunpack.c.h.b16 %v1456
        %v1557 = vunpack.c.l.b16 %v1457
        %v1558 = vunpack.c.h.b16 %v1457
        %v1559 = vunpack.c.l.b16 %v1458
        %v1560 = vunpack.c.h.b16 %v1458
        %v1561 = vunpack.c.l.b16 %v1459
        %v1562 = vunpack.c.h.b16 %v1459
        %v1563 = vunpack.c.l.b16 %v1460
        %v1564 = vunpack.c.h.b16 %v1460
        %v1565 = vunpack.c.l.b16 %v1461
        %v1566 = vunpack.c.h.b16 %v1461
        %v1567 = vunpack.c.l.b16 %v1462
        %v1568 = vunpack.c.h.b16 %v1462
        %v1569 = vunpack.c.l.b16 %v1463
        %v1570 = vunpack.c.h.b16 %v1463
        %v1571 = vunpack.c.l.b16 %v1464
        %v1572 = vunpack.c.h.b16 %v1464
        %v1573 = vunpack.c.l.b16 %v1465
        %v1574 = vunpack.c.h.b16 %v1465
        %v1575 = vunpack.c.l.b16 %v1466
        %v1576 = vunpack.c.h.b16 %v1466
        %v1577 = vunpack.c.l.b16 %v1467
        %v1578 = vunpack.c.h.b16 %v1467
        %v1579 = vunpack.c.l.b16 %v1468
        %v1580 = vunpack.c.h.b16 %v1468
        %v1581 = vunpack.c.l.b16 %v1469
        %v1582 = vunpack.c.h.b16 %v1469
        %v1583 = vunpack.c.l.b16 %v1470
        %v1584 = vunpack.c.h.b16 %v1470
        %v1585 = vunpack.c.l.b16 %v1471
        %v1586 = vunpack.c.h.b16 %v1471
        %v1587 = vunpack.c.l.b16 %v1472
        %v1588 = vunpack.c.h.b16 %v1472
        %v1589 = vunpack.c.l.b16 %v1473
        %v1590 = vunpack.c.h.b16 %v1473
        %v1591 = vunpack.c.l.b16 %v1474
        %v1592 = vunpack.c.h.b16 %v1474
        %v1593 = vpack.c.b16 %v1533, %v1529
        %v1594 = vpack.c.b16 %v1534, %v1530
        %v1595 = vpack.c.b16 %v1535, %v1531
        %v1596 = vpack.c.b16 %v1536, %v1532
        %v1597 = vpack.c.b16 %v1541, %v1537
        %v1598 = vpack.c.b16 %v1542, %v1538
        %v1599 = vpack.c.b16 %v1543, %v1539
        %v1600 = vpack.c.b16 %v1544, %v1540
        %v1601 = vpack.c.b16 %v1549, %v1545
        %v1602 = vpack.c.b16 %v1550, %v1546
        %v1603 = vpack.c.b16 %v1551, %v1547
        %v1604 = vpack.c.b16 %v1552, %v1548
        %v1605 = vpack.c.b16 %v1557, %v1553
        %v1606 = vpack.c.b16 %v1558, %v1554
        %v1607 = vpack.c.b16 %v1559, %v1555
        %v1608 = vpack.c.b16 %v1560, %v1556
        %v1609 = vpack.c.b16 %v1565, %v1561
        %v1610 = vpack.c.b16 %v1566, %v1562
        %v1611 = vpack.c.b16 %v1567, %v1563
        %v1612 = vpack.c.b16 %v1568, %v1564
        %v1613 = vpack.c.b16 %v1573, %v1569
        %v1614 = vpack.c.b16 %v1574, %v1570
        %v1615 = vpack.c.b16 %v1575, %v1571
        %v1616 = vpack.c.b16 %v1576, %v1572
        %v1617 = vpack.c.b16 %v1581, %v1577
        %v1618 = vpack.c.b16 %v1582, %v1578
        %v1619 = vpack.c.b16 %v1583, %v1579
        %v1620 = vpack.c.b16 %v1584, %v1580
        %v1621 = vpack.c.b16 %v1589, %v1585
        %v1622 = vpack.c.b16 %v1590, %v1586
        %v1623 = vpack.c.b16 %v1591, %v1587
        %v1624 = vpack.c.b16 %v1592, %v1588
        %1657 = vmatprep.subr.bf16.mxu0 %v1594
        %1658 = vmatpush1.bf16.msra.mxu0 %v1593
        %1659 = vmatprep.subr.bf16.mxu0 %v1598
        %1660 = vmatpush1.bf16.msra.mxu0 %v1597
        %1661 = vmatprep.subr.bf16.mxu0 %v1602
        %1662 = vmatpush1.bf16.msra.mxu0 %v1601
        %1663 = vmatprep.subr.bf16.mxu0 %v1606
        %1664 = vmatpush1.bf16.msra.mxu0 %v1605
        %1665 = vmatprep.subr.bf16.mxu0 %v1610
        %1666 = vmatpush1.bf16.msra.mxu0 %v1609
        %1667 = vmatprep.subr.bf16.mxu0 %v1614
        %1668 = vmatpush1.bf16.msra.mxu0 %v1613
        %1669 = vmatprep.subr.bf16.mxu0 %v1618
        %1670 = vmatpush1.bf16.msra.mxu0 %v1617
        %1671 = vmatprep.subr.bf16.mxu0 %v1622
        %1672 = vmatpush1.bf16.msra.mxu0 %v1621
        %1673 = vmatprep.subr.bf16.mxu0 0
        %1674 = vmatpush1.bf16.msra.mxu0 0
        %1675 = vmatprep.subr.bf16.mxu0 0
        %1676 = vmatpush1.bf16.msra.mxu0 0
        %1677 = vmatprep.subr.bf16.mxu0 0
        %1678 = vmatpush1.bf16.msra.mxu0 0
        %1679 = vmatprep.subr.bf16.mxu0 0
        %1680 = vmatpush1.bf16.msra.mxu0 0
        %1681 = vmatprep.subr.bf16.mxu0 0
        %1682 = vmatpush1.bf16.msra.mxu0 0
        %1683 = vmatprep.subr.bf16.mxu0 0
        %1684 = vmatpush1.bf16.msra.mxu0 0
        %1685 = vmatprep.subr.bf16.mxu0 0
        %1686 = vmatpush1.bf16.msra.mxu0 0
        %1687 = vmatprep.subr.bf16.mxu0 0
        %1688 = vmatpush1.bf16.msra.mxu0 0
        %1689 = vmatprep.mubr.bf16.mxu0 0
        %1690 = vmatmul.mubr.bf16.gmra.mrb[0].mxu0 %v1442
        %v1691 = vpop.f32.mrb[0].mxu0
        %v1692 = vadd.f32 %v1480, %v1691
        %v1693 = vpop.f32.mrb[0].mxu0
        %v1694 = vadd.f32 %v1484, %v1693
        %v1695 = vpop.f32.mrb[0].mxu0
        %v1696 = vadd.f32 %v1480, %v1695
        %v1697 = vpop.f32.mrb[0].mxu0
        %v1698 = vadd.f32 %v1484, %v1697
        %1699 = vdwg.mxu0
        %1700 = vmatprep.subr.bf16.mxu0 %v1596
        %1701 = vmatpush1.bf16.msra.mxu0 %v1595
        %1702 = vmatprep.subr.bf16.mxu0 %v1600
        %1703 = vmatpush1.bf16.msra.mxu0 %v1599
        %1704 = vmatprep.subr.bf16.mxu0 %v1604
        %1705 = vmatpush1.bf16.msra.mxu0 %v1603
        %1706 = vmatprep.subr.bf16.mxu0 %v1608
        %1707 = vmatpush1.bf16.msra.mxu0 %v1607
        %1708 = vmatprep.subr.bf16.mxu0 %v1612
        %1709 = vmatpush1.bf16.msra.mxu0 %v1611
        %1710 = vmatprep.subr.bf16.mxu0 %v1616
        %1711 = vmatpush1.bf16.msra.mxu0 %v1615
        %1712 = vmatprep.subr.bf16.mxu0 %v1620
        %1713 = vmatpush1.bf16.msra.mxu0 %v1619
        %1714 = vmatprep.subr.bf16.mxu0 %v1624
        %1715 = vmatpush1.bf16.msra.mxu0 %v1623
        %1716 = vmatprep.subr.bf16.mxu0 0
        %1717 = vmatpush1.bf16.msra.mxu0 0
        %1718 = vmatprep.subr.bf16.mxu0 0
        %1719 = vmatpush1.bf16.msra.mxu0 0
        %1720 = vmatprep.subr.bf16.mxu0 0
        %1721 = vmatpush1.bf16.msra.mxu0 0
        %1722 = vmatprep.subr.bf16.mxu0 0
        %1723 = vmatpush1.bf16.msra.mxu0 0
        %1724 = vmatprep.subr.bf16.mxu0 0
        %1725 = vmatpush1.bf16.msra.mxu0 0
        %1726 = vmatprep.subr.bf16.mxu0 0
        %1727 = vmatpush1.bf16.msra.mxu0 0
        %1728 = vmatprep.subr.bf16.mxu0 0
        %1729 = vmatpush1.bf16.msra.mxu0 0
        %1730 = vmatprep.subr.bf16.mxu0 0
        %1731 = vmatpush1.bf16.msra.mxu0 0
        %1732 = vmatprep.mubr.bf16.mxu0 0
        %1733 = vmatmul.mubr.bf16.gmra.mrb[0].mxu0 %v1442
        %v1734 = vpop.f32.mrb[0].mxu0
        %v1735 = vadd.f32 %v1488, %v1734
        %v1736 = vpop.f32.mrb[0].mxu0
        %v1737 = vadd.f32 %v1492, %v1736
        %v1738 = vpop.f32.mrb[0].mxu0
        %v1739 = vadd.f32 %v1488, %v1738
        %v1740 = vpop.f32.mrb[0].mxu0
        %v1741 = vadd.f32 %v1492, %v1740
        %1742 = vdwg.mxu0
        %v1743 = vmax.f32 %v1692, 0.0
        %v1744 = vmax.f32 %v1694, 0.0
        %v1745 = vmax.f32 %v1735, 0.0
        %v1746 = vmax.f32 %v1737, 0.0
        %v1747 = vmax.f32 %v1696, 0.0
        %v1748 = vmax.f32 %v1698, 0.0
        %v1749 = vmax.f32 %v1739, 0.0
        %v1750 = vmax.f32 %v1741, 0.0
        %v1751 = vpack.c.bf16 %v1747, %v1743
        %v1752 = vpack.c.bf16 %v1748, %v1744
        %v1753 = vpack.c.bf16 %v1749, %v1745
        %v1754 = vpack.c.bf16 %v1750, %v1746
        %v1755 = vld [vmem:[%s10] sm:$0xf]
        %v1756 = vld [vmem:[%s10 + $0x4] sm:$0xf]
        %v1757 = vld [vmem:[%s10 + $0x8] sm:$0xf]
        %v1758 = vld [vmem:[%s10 + $0xc] sm:$0xf]
        %v1759 = vld [vmem:[%s10 + $0x10] sm:$0xf]
        %v1760 = vld [vmem:[%s10 + $0x14] sm:$0xf]
        %v1761 = vld [vmem:[%s10 + $0x18] sm:$0xf]
        %v1762 = vld [vmem:[%s10 + $0x1c] sm:$0xf]
        %v1763 = vld [vmem:[%s10 + $0x20] sm:$0xf]
        %v1764 = vld [vmem:[%s10 + $0x24] sm:$0xf]
        %v1765 = vld [vmem:[%s10 + $0x28] sm:$0xf]
        %v1766 = vld [vmem:[%s10 + $0x2c] sm:$0xf]
        %v1767 = vld [vmem:[%s10 + $0x30] sm:$0xf]
        %v1768 = vld [vmem:[%s10 + $0x34] sm:$0xf]
        %v1769 = vld [vmem:[%s10 + $0x38] sm:$0xf]
        %v1770 = vld [vmem:[%s10 + $0x3c] sm:$0xf]
        %v1771 = vld [vmem:[%s10 + $0x40] sm:$0xf]
        %v1772 = vld [vmem:[%s10 + $0x44] sm:$0xf]
        %v1773 = vld [vmem:[%s10 + $0x48] sm:$0xf]
        %v1774 = vld [vmem:[%s10 + $0x4c] sm:$0xf]
        %v1775 = vld [vmem:[%s10 + $0x50] sm:$0xf]
        %v1776 = vld [vmem:[%s10 + $0x54] sm:$0xf]
        %v1777 = vld [vmem:[%s10 + $0x58] sm:$0xf]
        %v1778 = vld [vmem:[%s10 + $0x5c] sm:$0xf]
        %v1779 = vld [vmem:[%s10 + $0x60] sm:$0xf]
        %v1780 = vld [vmem:[%s10 + $0x64] sm:$0xf]
        %v1781 = vld [vmem:[%s10 + $0x68] sm:$0xf]
        %v1782 = vld [vmem:[%s10 + $0x6c] sm:$0xf]
        %v1783 = vld [vmem:[%s10 + $0x70] sm:$0xf]
        %v1784 = vld [vmem:[%s10 + $0x74] sm:$0xf]
        %v1785 = vld [vmem:[%s10 + $0x78] sm:$0xf]
        %v1786 = vld [vmem:[%s10 + $0x7c] sm:$0xf]
        %v1787 = vld [vmem:[%s10 + $0x80] sm:$0xf]
        %v1788 = vld [vmem:[%s10 + $0x84] sm:$0xf]
        %v1789 = vld [vmem:[%s10 + $0x88] sm:$0xf]
        %v1790 = vld [vmem:[%s10 + $0x8c] sm:$0xf]
        %v1791 = vld [vmem:[%s10 + $0x90] sm:$0xf]
        %v1792 = vld [vmem:[%s10 + $0x94] sm:$0xf]
        %v1793 = vld [vmem:[%s10 + $0x98] sm:$0xf]
        %v1794 = vld [vmem:[%s10 + $0x9c] sm:$0xf]
        %v1795 = vld [vmem:[%s10 + $0xa0] sm:$0xf]
        %v1796 = vld [vmem:[%s10 + $0xa4] sm:$0xf]
        %v1797 = vld [vmem:[%s10 + $0xa8] sm:$0xf]
        %v1798 = vld [vmem:[%s10 + $0xac] sm:$0xf]
        %v1799 = vld [vmem:[%s10 + $0xb0] sm:$0xf]
        %v1800 = vld [vmem:[%s10 + $0xb4] sm:$0xf]
        %v1801 = vld [vmem:[%s10 + $0xb8] sm:$0xf]
        %v1802 = vld [vmem:[%s10 + $0xbc] sm:$0xf]
        %v1803 = vld [vmem:[%s10 + $0xc0] sm:$0xf]
        %v1804 = vld [vmem:[%s10 + $0xc4] sm:$0xf]
        %v1805 = vld [vmem:[%s10 + $0xc8] sm:$0xf]
        %v1806 = vld [vmem:[%s10 + $0xcc] sm:$0xf]
        %v1807 = vld [vmem:[%s10 + $0xd0] sm:$0xf]
        %v1808 = vld [vmem:[%s10 + $0xd4] sm:$0xf]
        %v1809 = vld [vmem:[%s10 + $0xd8] sm:$0xf]
        %v1810 = vld [vmem:[%s10 + $0xdc] sm:$0xf]
        %v1811 = vld [vmem:[%s10 + $0xe0] sm:$0xf]
        %v1812 = vld [vmem:[%s10 + $0xe4] sm:$0xf]
        %v1813 = vld [vmem:[%s10 + $0xe8] sm:$0xf]
        %v1814 = vld [vmem:[%s10 + $0xec] sm:$0xf]
        %v1815 = vld [vmem:[%s10 + $0xf0] sm:$0xf]
        %v1816 = vld [vmem:[%s10 + $0xf4] sm:$0xf]
        %v1817 = vld [vmem:[%s10 + $0xf8] sm:$0xf]
        %v1818 = vld [vmem:[%s10 + $0xfc] sm:$0xf]
        %v1819 = vld [vmem:[%s11] sm:$0x1]
        %v1821 = vlaneseq
        %v1822 = vshrl.u32 %v1821, 7
        %v1823 = vsub.s32 0, %v1822
        %v1824 = vrot.slane %v1819, %v1823
        %v1890 = vunpack.c.l.b16 %v1755
        %v1891 = vunpack.c.l.b16 %v1756
        %v1892 = vunpack.c.l.b16 %v1757
        %v1893 = vunpack.c.l.b16 %v1758
        %v1894 = vunpack.c.l.b16 %v1759
        %v1895 = vunpack.c.l.b16 %v1760
        %v1896 = vunpack.c.l.b16 %v1761
        %v1897 = vunpack.c.l.b16 %v1762
        %v1898 = vunpack.c.l.b16 %v1763
        %v1899 = vunpack.c.l.b16 %v1764
        %v1900 = vunpack.c.l.b16 %v1765
        %v1901 = vunpack.c.l.b16 %v1766
        %v1902 = vunpack.c.l.b16 %v1767
        %v1903 = vunpack.c.l.b16 %v1768
        %v1904 = vunpack.c.l.b16 %v1769
        %v1905 = vunpack.c.l.b16 %v1770
        %v1906 = vunpack.c.l.b16 %v1771
        %v1907 = vunpack.c.l.b16 %v1772
        %v1908 = vunpack.c.l.b16 %v1773
        %v1909 = vunpack.c.l.b16 %v1774
        %v1910 = vunpack.c.l.b16 %v1775
        %v1911 = vunpack.c.l.b16 %v1776
        %v1912 = vunpack.c.l.b16 %v1777
        %v1913 = vunpack.c.l.b16 %v1778
        %v1914 = vunpack.c.l.b16 %v1779
        %v1915 = vunpack.c.l.b16 %v1780
        %v1916 = vunpack.c.l.b16 %v1781
        %v1917 = vunpack.c.l.b16 %v1782
        %v1918 = vunpack.c.l.b16 %v1783
        %v1919 = vunpack.c.l.b16 %v1784
        %v1920 = vunpack.c.l.b16 %v1785
        %v1921 = vunpack.c.l.b16 %v1786
        %v1922 = vunpack.c.l.b16 %v1787
        %v1923 = vunpack.c.l.b16 %v1788
        %v1924 = vunpack.c.l.b16 %v1789
        %v1925 = vunpack.c.l.b16 %v1790
        %v1926 = vunpack.c.l.b16 %v1791
        %v1927 = vunpack.c.l.b16 %v1792
        %v1928 = vunpack.c.l.b16 %v1793
        %v1929 = vunpack.c.l.b16 %v1794
        %v1930 = vunpack.c.l.b16 %v1795
        %v1931 = vunpack.c.l.b16 %v1796
        %v1932 = vunpack.c.l.b16 %v1797
        %v1933 = vunpack.c.l.b16 %v1798
        %v1934 = vunpack.c.l.b16 %v1799
        %v1935 = vunpack.c.l.b16 %v1800
        %v1936 = vunpack.c.l.b16 %v1801
        %v1937 = vunpack.c.l.b16 %v1802
        %v1938 = vunpack.c.l.b16 %v1803
        %v1939 = vunpack.c.l.b16 %v1804
        %v1940 = vunpack.c.l.b16 %v1805
        %v1941 = vunpack.c.l.b16 %v1806
        %v1942 = vunpack.c.l.b16 %v1807
        %v1943 = vunpack.c.l.b16 %v1808
        %v1944 = vunpack.c.l.b16 %v1809
        %v1945 = vunpack.c.l.b16 %v1810
        %v1946 = vunpack.c.l.b16 %v1811
        %v1947 = vunpack.c.l.b16 %v1812
        %v1948 = vunpack.c.l.b16 %v1813
        %v1949 = vunpack.c.l.b16 %v1814
        %v1950 = vunpack.c.l.b16 %v1815
        %v1951 = vunpack.c.l.b16 %v1816
        %v1952 = vunpack.c.l.b16 %v1817
        %v1953 = vunpack.c.l.b16 %v1818
        %v1954 = vpack.c.b16 %v1891, %v1890
        %v1955 = vpack.c.b16 %v1893, %v1892
        %v1956 = vpack.c.b16 %v1895, %v1894
        %v1957 = vpack.c.b16 %v1897, %v1896
        %v1958 = vpack.c.b16 %v1899, %v1898
        %v1959 = vpack.c.b16 %v1901, %v1900
        %v1960 = vpack.c.b16 %v1903, %v1902
        %v1961 = vpack.c.b16 %v1905, %v1904
        %v1962 = vpack.c.b16 %v1907, %v1906
        %v1963 = vpack.c.b16 %v1909, %v1908
        %v1964 = vpack.c.b16 %v1911, %v1910
        %v1965 = vpack.c.b16 %v1913, %v1912
        %v1966 = vpack.c.b16 %v1915, %v1914
        %v1967 = vpack.c.b16 %v1917, %v1916
        %v1968 = vpack.c.b16 %v1919, %v1918
        %v1969 = vpack.c.b16 %v1921, %v1920
        %v1970 = vpack.c.b16 %v1923, %v1922
        %v1971 = vpack.c.b16 %v1925, %v1924
        %v1972 = vpack.c.b16 %v1927, %v1926
        %v1973 = vpack.c.b16 %v1929, %v1928
        %v1974 = vpack.c.b16 %v1931, %v1930
        %v1975 = vpack.c.b16 %v1933, %v1932
        %v1976 = vpack.c.b16 %v1935, %v1934
        %v1977 = vpack.c.b16 %v1937, %v1936
        %v1978 = vpack.c.b16 %v1939, %v1938
        %v1979 = vpack.c.b16 %v1941, %v1940
        %v1980 = vpack.c.b16 %v1943, %v1942
        %v1981 = vpack.c.b16 %v1945, %v1944
        %v1982 = vpack.c.b16 %v1947, %v1946
        %v1983 = vpack.c.b16 %v1949, %v1948
        %v1984 = vpack.c.b16 %v1951, %v1950
        %v1985 = vpack.c.b16 %v1953, %v1952
        %2018 = vmatprep.subr.bf16.mxu0 0
        %2019 = vmatpush1.bf16.msra.mxu0 %v1954
        %2020 = vmatprep.subr.bf16.mxu0 0
        %2021 = vmatpush1.bf16.msra.mxu0 %v1955
        %2022 = vmatprep.subr.bf16.mxu0 0
        %2023 = vmatpush1.bf16.msra.mxu0 %v1956
        %2024 = vmatprep.subr.bf16.mxu0 0
        %2025 = vmatpush1.bf16.msra.mxu0 %v1957
        %2026 = vmatprep.subr.bf16.mxu0 0
        %2027 = vmatpush1.bf16.msra.mxu0 %v1958
        %2028 = vmatprep.subr.bf16.mxu0 0
        %2029 = vmatpush1.bf16.msra.mxu0 %v1959
        %2030 = vmatprep.subr.bf16.mxu0 0
        %2031 = vmatpush1.bf16.msra.mxu0 %v1960
        %2032 = vmatprep.subr.bf16.mxu0 0
        %2033 = vmatpush1.bf16.msra.mxu0 %v1961
        %2034 = vmatprep.subr.bf16.mxu0 0
        %2035 = vmatpush1.bf16.msra.mxu0 %v1962
        %2036 = vmatprep.subr.bf16.mxu0 0
        %2037 = vmatpush1.bf16.msra.mxu0 %v1963
        %2038 = vmatprep.subr.bf16.mxu0 0
        %2039 = vmatpush1.bf16.msra.mxu0 %v1964
        %2040 = vmatprep.subr.bf16.mxu0 0
        %2041 = vmatpush1.bf16.msra.mxu0 %v1965
        %2042 = vmatprep.subr.bf16.mxu0 0
        %2043 = vmatpush1.bf16.msra.mxu0 %v1966
        %2044 = vmatprep.subr.bf16.mxu0 0
        %2045 = vmatpush1.bf16.msra.mxu0 %v1967
        %2046 = vmatprep.subr.bf16.mxu0 0
        %2047 = vmatpush1.bf16.msra.mxu0 %v1968
        %2048 = vmatprep.subr.bf16.mxu0 0
        %2049 = vmatpush1.bf16.msra.mxu0 %v1969
        %2050 = vmatprep.mubr.bf16.mxu0 %v1752
        %2051 = vmatmul.mubr.bf16.gmra.mrb[0].mxu0 %v1751
        %v2052 = vpop.f32.mrb[0].mxu0
        %v2053 = vadd.f32 %v1824, %v2052
        %v2054 = vpop.f32.mrb[0].mxu0
        %v2055 = vpop.f32.mrb[0].mxu0
        %v2056 = vadd.f32 %v1824, %v2055
        %v2057 = vpop.f32.mrb[0].mxu0
        %2058 = vdwg.mxu0
        %2059 = vmatprep.subr.bf16.mxu0 0
        %2060 = vmatpush1.bf16.msra.mxu0 %v1970
        %2061 = vmatprep.subr.bf16.mxu0 0
        %2062 = vmatpush1.bf16.msra.mxu0 %v1971
        %2063 = vmatprep.subr.bf16.mxu0 0
        %2064 = vmatpush1.bf16.msra.mxu0 %v1972
        %2065 = vmatprep.subr.bf16.mxu0 0
        %2066 = vmatpush1.bf16.msra.mxu0 %v1973
        %2067 = vmatprep.subr.bf16.mxu0 0
        %2068 = vmatpush1.bf16.msra.mxu0 %v1974
        %2069 = vmatprep.subr.bf16.mxu0 0
        %2070 = vmatpush1.bf16.msra.mxu0 %v1975
        %2071 = vmatprep.subr.bf16.mxu0 0
        %2072 = vmatpush1.bf16.msra.mxu0 %v1976
        %2073 = vmatprep.subr.bf16.mxu0 0
        %2074 = vmatpush1.bf16.msra.mxu0 %v1977
        %2075 = vmatprep.subr.bf16.mxu0 0
        %2076 = vmatpush1.bf16.msra.mxu0 %v1978
        %2077 = vmatprep.subr.bf16.mxu0 0
        %2078 = vmatpush1.bf16.msra.mxu0 %v1979
        %2079 = vmatprep.subr.bf16.mxu0 0
        %2080 = vmatpush1.bf16.msra.mxu0 %v1980
        %2081 = vmatprep.subr.bf16.mxu0 0
        %2082 = vmatpush1.bf16.msra.mxu0 %v1981
        %2083 = vmatprep.subr.bf16.mxu0 0
        %2084 = vmatpush1.bf16.msra.mxu0 %v1982
        %2085 = vmatprep.subr.bf16.mxu0 0
        %2086 = vmatpush1.bf16.msra.mxu0 %v1983
        %2087 = vmatprep.subr.bf16.mxu0 0
        %2088 = vmatpush1.bf16.msra.mxu0 %v1984
        %2089 = vmatprep.subr.bf16.mxu0 0
        %2090 = vmatpush1.bf16.msra.mxu0 %v1985
        %2091 = vmatprep.mubr.bf16.mxu0 %v1754
        %2092 = vmatmul.mubr.bf16.gmra.mrb[0].mxu0 %v1753
        %v2093 = vpop.f32.mrb[0].mxu0
        %v2094 = vadd.f32 %v2053, %v2093
        %v2095 = vpop.f32.mrb[0].mxu0
        %v2096 = vpop.f32.mrb[0].mxu0
        %v2097 = vadd.f32 %v2056, %v2096
        %v2098 = vpop.f32.mrb[0].mxu0
        %2099 = vdwg.mxu0
        %v2100 = vadd.f32 %v1400, %v2094
        %v2101 = vadd.f32 %v1401, %v2097
        %s2102 = scalar_lea.vmem %s1, 1
        %v2103 = vld [vmem:[%s2102] sm:$0x1]
        %s2104 = scalar_lea.vmem %s2, 1
        %v2105 = vld [vmem:[%s2104] sm:$0x1]
        %2106 = vadd.xlane.f32.xlu0 %v2100
        %v2107 = vpop.xlane.xlu0 %2106
        %2108 = vadd.xlane.f32.xlu0 %v2101
        %v2109 = vpop.xlane.xlu0 %2108
        %v2110 = vmul.f32 %v2107, %v482
        %v2111 = vmul.f32 %v2109, %v482
        %v2112 = vsub.f32 %v2100, %v2110
        %v2113 = vsub.f32 %v2101, %v2111
        %v2114 = vmul.f32 %v2112, %v2112
        %v2115 = vmul.f32 %v2113, %v2113
        %2116 = vadd.xlane.f32.xlu0 %v2114
        %v2117 = vpop.xlane.xlu0 %2116
        %2118 = vadd.xlane.f32.xlu0 %v2115
        %v2119 = vpop.xlane.xlu0 %2118
        %v2120 = vmul.f32 %v2117, %v482
        %v2121 = vmul.f32 %v2119, %v482
        %v2122 = vadd.f32 %v2120, 1e-05
        %v2123 = vadd.f32 %v2121, 1e-05
        %v2124 = vrsqrt.pop %v2122
        %v2125 = vrsqrt.pop %v2123
        %v2126 = vmul.f32 %v2112, %v2124
        %v2127 = vmul.f32 %v2113, %v2125
        %v2129 = vlaneseq
        %v2130 = vshrl.u32 %v2129, 7
        %v2131 = vsub.s32 0, %v2130
        %v2132 = vrot.slane %v2103, %v2131
        %v2134 = vmul.f32 %v2126, %v2132
        %v2135 = vmul.f32 %v2127, %v2132
        %v2137 = vlaneseq
        %v2138 = vshrl.u32 %v2137, 7
        %v2139 = vsub.s32 0, %v2138
        %v2140 = vrot.slane %v2105, %v2139
        %v2142 = vadd.f32 %v2134, %v2140
        %v2143 = vadd.f32 %v2135, %v2140
        %v2144 = vpack.c.bf16 %v2143, %v2142
        %s2145 = scalar_lea.vmem %s3, 192
        %v2146 = vld [vmem:[%s2145] sm:$0xff]
        %v2147 = vld [vmem:[%s2145 + $0x8] sm:$0xf]
        %v2148 = vld [vmem:[%s2145 + $0xc] sm:$0xff]
        %v2149 = vld [vmem:[%s2145 + $0x14] sm:$0xf]
        %v2150 = vld [vmem:[%s2145 + $0x18] sm:$0xff]
        %v2151 = vld [vmem:[%s2145 + $0x20] sm:$0xf]
        %v2152 = vld [vmem:[%s2145 + $0x24] sm:$0xff]
        %v2153 = vld [vmem:[%s2145 + $0x2c] sm:$0xf]
        %v2154 = vld [vmem:[%s2145 + $0x30] sm:$0xff]
        %v2155 = vld [vmem:[%s2145 + $0x38] sm:$0xf]
        %v2156 = vld [vmem:[%s2145 + $0x3c] sm:$0xff]
        %v2157 = vld [vmem:[%s2145 + $0x44] sm:$0xf]
        %v2158 = vld [vmem:[%s2145 + $0x48] sm:$0xff]
        %v2159 = vld [vmem:[%s2145 + $0x50] sm:$0xf]
        %v2160 = vld [vmem:[%s2145 + $0x54] sm:$0xff]
        %v2161 = vld [vmem:[%s2145 + $0x5c] sm:$0xf]
        %v2162 = vld [vmem:[%s2145 + $0x60] sm:$0xff]
        %v2163 = vld [vmem:[%s2145 + $0x68] sm:$0xf]
        %v2164 = vld [vmem:[%s2145 + $0x6c] sm:$0xff]
        %v2165 = vld [vmem:[%s2145 + $0x74] sm:$0xf]
        %v2166 = vld [vmem:[%s2145 + $0x78] sm:$0xff]
        %v2167 = vld [vmem:[%s2145 + $0x80] sm:$0xf]
        %v2168 = vld [vmem:[%s2145 + $0x84] sm:$0xff]
        %v2169 = vld [vmem:[%s2145 + $0x8c] sm:$0xf]
        %v2170 = vld [vmem:[%s2145 + $0x90] sm:$0xff]
        %v2171 = vld [vmem:[%s2145 + $0x98] sm:$0xf]
        %v2172 = vld [vmem:[%s2145 + $0x9c] sm:$0xff]
        %v2173 = vld [vmem:[%s2145 + $0xa4] sm:$0xf]
        %v2174 = vld [vmem:[%s2145 + $0xa8] sm:$0xff]
        %v2175 = vld [vmem:[%s2145 + $0xb0] sm:$0xf]
        %v2176 = vld [vmem:[%s2145 + $0xb4] sm:$0xff]
        %v2177 = vld [vmem:[%s2145 + $0xbc] sm:$0xf]
        %v2210 = vunpack.c.l.b16 %v2146
        %v2211 = vunpack.c.h.b16 %v2146
        %v2212 = vunpack.c.l.b16 %v2147
        %v2213 = vunpack.c.l.b16 %v2148
        %v2214 = vunpack.c.h.b16 %v2148
        %v2215 = vunpack.c.l.b16 %v2149
        %v2216 = vunpack.c.l.b16 %v2150
        %v2217 = vunpack.c.h.b16 %v2150
        %v2218 = vunpack.c.l.b16 %v2151
        %v2219 = vunpack.c.l.b16 %v2152
        %v2220 = vunpack.c.h.b16 %v2152
        %v2221 = vunpack.c.l.b16 %v2153
        %v2222 = vunpack.c.l.b16 %v2154
        %v2223 = vunpack.c.h.b16 %v2154
        %v2224 = vunpack.c.l.b16 %v2155
        %v2225 = vunpack.c.l.b16 %v2156
        %v2226 = vunpack.c.h.b16 %v2156
        %v2227 = vunpack.c.l.b16 %v2157
        %v2228 = vunpack.c.l.b16 %v2158
        %v2229 = vunpack.c.h.b16 %v2158
        %v2230 = vunpack.c.l.b16 %v2159
        %v2231 = vunpack.c.l.b16 %v2160
        %v2232 = vunpack.c.h.b16 %v2160
        %v2233 = vunpack.c.l.b16 %v2161
        %v2234 = vunpack.c.l.b16 %v2162
        %v2235 = vunpack.c.h.b16 %v2162
        %v2236 = vunpack.c.l.b16 %v2163
        %v2237 = vunpack.c.l.b16 %v2164
        %v2238 = vunpack.c.h.b16 %v2164
        %v2239 = vunpack.c.l.b16 %v2165
        %v2240 = vunpack.c.l.b16 %v2166
        %v2241 = vunpack.c.h.b16 %v2166
        %v2242 = vunpack.c.l.b16 %v2167
        %v2243 = vunpack.c.l.b16 %v2168
        %v2244 = vunpack.c.h.b16 %v2168
        %v2245 = vunpack.c.l.b16 %v2169
        %v2246 = vunpack.c.l.b16 %v2170
        %v2247 = vunpack.c.h.b16 %v2170
        %v2248 = vunpack.c.l.b16 %v2171
        %v2249 = vunpack.c.l.b16 %v2172
        %v2250 = vunpack.c.h.b16 %v2172
        %v2251 = vunpack.c.l.b16 %v2173
        %v2252 = vunpack.c.l.b16 %v2174
        %v2253 = vunpack.c.h.b16 %v2174
        %v2254 = vunpack.c.l.b16 %v2175
        %v2255 = vunpack.c.l.b16 %v2176
        %v2256 = vunpack.c.h.b16 %v2176
        %v2257 = vunpack.c.l.b16 %v2177
        %v2258 = vpack.c.b16 %v2213, %v2210
        %v2259 = vpack.c.b16 %v2214, %v2211
        %v2260 = vpack.c.b16 %v2215, %v2212
        %v2261 = vpack.c.b16 %v2219, %v2216
        %v2262 = vpack.c.b16 %v2220, %v2217
        %v2263 = vpack.c.b16 %v2221, %v2218
        %v2264 = vpack.c.b16 %v2225, %v2222
        %v2265 = vpack.c.b16 %v2226, %v2223
        %v2266 = vpack.c.b16 %v2227, %v2224
        %v2267 = vpack.c.b16 %v2231, %v2228
        %v2268 = vpack.c.b16 %v2232, %v2229
        %v2269 = vpack.c.b16 %v2233, %v2230
        %v2270 = vpack.c.b16 %v2237, %v2234
        %v2271 = vpack.c.b16 %v2238, %v2235
        %v2272 = vpack.c.b16 %v2239, %v2236
        %v2273 = vpack.c.b16 %v2243, %v2240
        %v2274 = vpack.c.b16 %v2244, %v2241
        %v2275 = vpack.c.b16 %v2245, %v2242
        %v2276 = vpack.c.b16 %v2249, %v2246
        %v2277 = vpack.c.b16 %v2250, %v2247
        %v2278 = vpack.c.b16 %v2251, %v2248
        %v2279 = vpack.c.b16 %v2255, %v2252
        %v2280 = vpack.c.b16 %v2256, %v2253
        %v2281 = vpack.c.b16 %v2257, %v2254
        %2306 = vmatprep.subr.bf16.mxu0 %v2259
        %2307 = vmatpush1.bf16.msra.mxu0 %v2258
        %2308 = vmatprep.subr.bf16.mxu0 %v2262
        %2309 = vmatpush1.bf16.msra.mxu0 %v2261
        %2310 = vmatprep.subr.bf16.mxu0 %v2265
        %2311 = vmatpush1.bf16.msra.mxu0 %v2264
        %2312 = vmatprep.subr.bf16.mxu0 %v2268
        %2313 = vmatpush1.bf16.msra.mxu0 %v2267
        %2314 = vmatprep.subr.bf16.mxu0 %v2271
        %2315 = vmatpush1.bf16.msra.mxu0 %v2270
        %2316 = vmatprep.subr.bf16.mxu0 %v2274
        %2317 = vmatpush1.bf16.msra.mxu0 %v2273
        %2318 = vmatprep.subr.bf16.mxu0 %v2277
        %2319 = vmatpush1.bf16.msra.mxu0 %v2276
        %2320 = vmatprep.subr.bf16.mxu0 %v2280
        %2321 = vmatpush1.bf16.msra.mxu0 %v2279
        %2322 = vmatprep.subr.bf16.mxu0 0
        %2323 = vmatpush1.bf16.msra.mxu0 0
        %2324 = vmatprep.subr.bf16.mxu0 0
        %2325 = vmatpush1.bf16.msra.mxu0 0
        %2326 = vmatprep.subr.bf16.mxu0 0
        %2327 = vmatpush1.bf16.msra.mxu0 0
        %2328 = vmatprep.subr.bf16.mxu0 0
        %2329 = vmatpush1.bf16.msra.mxu0 0
        %2330 = vmatprep.subr.bf16.mxu0 0
        %2331 = vmatpush1.bf16.msra.mxu0 0
        %2332 = vmatprep.subr.bf16.mxu0 0
        %2333 = vmatpush1.bf16.msra.mxu0 0
        %2334 = vmatprep.subr.bf16.mxu0 0
        %2335 = vmatpush1.bf16.msra.mxu0 0
        %2336 = vmatprep.subr.bf16.mxu0 0
        %2337 = vmatpush1.bf16.msra.mxu0 0
        %2338 = vmatprep.mubr.bf16.mxu0 0
        %2339 = vmatmul.mubr.bf16.gmra.mrb[0].mxu0 %v2144
        %v2340 = vpop.f32.mrb[0].mxu0
        %v2341 = vadd.f32 0.0, %v2340
        %v2342 = vpop.f32.mrb[0].mxu0
        %v2343 = vadd.f32 0.0, %v2342
        %v2344 = vpop.f32.mrb[0].mxu0
        %v2345 = vadd.f32 0.0, %v2344
        %v2346 = vpop.f32.mrb[0].mxu0
        %v2347 = vadd.f32 0.0, %v2346
        %2348 = vdwg.mxu0
        %2349 = vmatprep.subr.bf16.mxu0 0
        %2350 = vmatpush1.bf16.msra.mxu0 %v2260
        %2351 = vmatprep.subr.bf16.mxu0 0
        %2352 = vmatpush1.bf16.msra.mxu0 %v2263
        %2353 = vmatprep.subr.bf16.mxu0 0
        %2354 = vmatpush1.bf16.msra.mxu0 %v2266
        %2355 = vmatprep.subr.bf16.mxu0 0
        %2356 = vmatpush1.bf16.msra.mxu0 %v2269
        %2357 = vmatprep.subr.bf16.mxu0 0
        %2358 = vmatpush1.bf16.msra.mxu0 %v2272
        %2359 = vmatprep.subr.bf16.mxu0 0
        %2360 = vmatpush1.bf16.msra.mxu0 %v2275
        %2361 = vmatprep.subr.bf16.mxu0 0
        %2362 = vmatpush1.bf16.msra.mxu0 %v2278
        %2363 = vmatprep.subr.bf16.mxu0 0
        %2364 = vmatpush1.bf16.msra.mxu0 %v2281
        %2365 = vmatprep.subr.bf16.mxu0 0
        %2366 = vmatpush1.bf16.msra.mxu0 0
        %2367 = vmatprep.subr.bf16.mxu0 0
        %2368 = vmatpush1.bf16.msra.mxu0 0
        %2369 = vmatprep.subr.bf16.mxu0 0
        %2370 = vmatpush1.bf16.msra.mxu0 0
        %2371 = vmatprep.subr.bf16.mxu0 0
        %2372 = vmatpush1.bf16.msra.mxu0 0
        %2373 = vmatprep.subr.bf16.mxu0 0
        %2374 = vmatpush1.bf16.msra.mxu0 0
        %2375 = vmatprep.subr.bf16.mxu0 0
        %2376 = vmatpush1.bf16.msra.mxu0 0
        %2377 = vmatprep.subr.bf16.mxu0 0
        %2378 = vmatpush1.bf16.msra.mxu0 0
        %2379 = vmatprep.subr.bf16.mxu0 0
        %2380 = vmatpush1.bf16.msra.mxu0 0
        %2381 = vmatprep.mubr.bf16.mxu0 0
        %2382 = vmatmul.mubr.bf16.gmra.mrb[0].mxu0 %v2144
        %v2383 = vpop.f32.mrb[0].mxu0
        %v2384 = vadd.f32 0.0, %v2383
        %v2385 = vpop.f32.mrb[0].mxu0
        %v2386 = vpop.f32.mrb[0].mxu0
        %v2387 = vadd.f32 0.0, %v2386
        %v2388 = vpop.f32.mrb[0].mxu0
        %2389 = vdwg.mxu0
        %v2390 = vpack.c.bf16 %v2345, %v2341
        %v2391 = vpack.c.bf16 %v2347, %v2343
        %v2392 = vpack.c.bf16 %v2387, %v2384
        %v2394 = vsel %vm765, %v2390, 0
        %v2397 = vsel %vm765, %v2391, 0
        %2399 = vmatprep.subr.bf16.mxu0 0
        %2400 = vmatpush1.bf16.xpose.msra.mxu0 %v2397
        %2401 = vmatprep.subr.bf16.mxu0 0
        %2402 = vmatpush1.bf16.xpose.msra.mxu0 0
        %2403 = vmatprep.subr.bf16.mxu0 0
        %2404 = vmatpush1.bf16.xpose.msra.mxu0 0
        %2405 = vmatprep.subr.bf16.mxu0 0
        %2406 = vmatpush1.bf16.xpose.msra.mxu0 0
        %2407 = vmatprep.subr.bf16.mxu0 0
        %2408 = vmatpush1.bf16.xpose.msra.mxu0 0
        %2409 = vmatprep.subr.bf16.mxu0 0
        %2410 = vmatpush1.bf16.xpose.msra.mxu0 0
        %2411 = vmatprep.subr.bf16.mxu0 0
        %2412 = vmatpush1.bf16.xpose.msra.mxu0 0
        %2413 = vmatprep.subr.bf16.mxu0 0
        %2414 = vmatpush1.bf16.xpose.msra.mxu0 0
        %2415 = vmatprep.subr.bf16.mxu0 0
        %2416 = vmatpush1.bf16.xpose.msra.mxu0 0
        %2417 = vmatprep.subr.bf16.mxu0 0
        %2418 = vmatpush1.bf16.xpose.msra.mxu0 0
        %2419 = vmatprep.subr.bf16.mxu0 0
        %2420 = vmatpush1.bf16.xpose.msra.mxu0 0
        %2421 = vmatprep.subr.bf16.mxu0 0
        %2422 = vmatpush1.bf16.xpose.msra.mxu0 0
        %2423 = vmatprep.subr.bf16.mxu0 0
        %2424 = vmatpush1.bf16.xpose.msra.mxu0 0
        %2425 = vmatprep.subr.bf16.mxu0 0
        %2426 = vmatpush1.bf16.xpose.msra.mxu0 0
        %2427 = vmatprep.subr.bf16.mxu0 0
        %2428 = vmatpush1.bf16.xpose.msra.mxu0 0
        %2429 = vmatprep.subr.bf16.mxu0 0
        %2430 = vmatpush1.bf16.xpose.msra.mxu0 0
        %2431 = vmatprep.mubr.bf16.mxu0 0
        %2432 = vmatmul.mubr.bf16.gmra.mrb[0].mxu0 %v2394
        %v2433 = vpop.f32.mrb[0].mxu0
        %v2434 = vadd.f32 0.0, %v2433
        %v2435 = vpop.f32.mrb[0].mxu0
        %v2436 = vpop.f32.mrb[0].mxu0
        %v2437 = vadd.f32 0.0, %v2436
        %v2438 = vpop.f32.mrb[0].mxu0
        %2439 = vdwg.mxu0
        %v2440 = vsel %vm474, %v2434, -1e+30
        %v2441 = vsel %vm475, %v2437, -1e+30
        %v2442 = vsel %vm815, %v2440, -inf
        %2443 = vmax.xlane.f32.xlu0 %v2442
        %v2444 = vpop.xlane.xlu0 %2443
        %v2445 = vsel %vm815, %v2441, -inf
        %2446 = vmax.xlane.f32.xlu0 %v2445
        %v2447 = vpop.xlane.xlu0 %2446
        %v2448 = vsub.f32 %v2440, %v2444
        %v2449 = vsub.f32 %v2441, %v2447
        %v2450 = vmul.f32 %v2448, 1.442695
        %v2451 = vpow.pop %v2450
        %v2452 = vmul.f32 %v2449, 1.442695
        %v2453 = vpow.pop %v2452
        %v2454 = vsel %vm815, %v2451, 0.0
        %2455 = vadd.xlane.f32.xlu0 %v2454
        %v2456 = vpop.xlane.xlu0 %2455
        %v2457 = vsel %vm815, %v2453, 0.0
        %2458 = vadd.xlane.f32.xlu0 %v2457
        %v2459 = vpop.xlane.xlu0 %2458
        %v2460 = vrcp.pop %v2456
        %v2461 = vrcp.pop %v2459
        %v2462 = vmul.f32 %v2451, %v2460
        %v2463 = vmul.f32 %v2453, %v2461
        %v2464 = vpack.c.bf16 %v2463, %v2462
        %v2466 = vsel %vm815, %v2464, 0
        %2468 = vmatprep.subr.bf16.mxu0 0
        %2469 = vmatpush1.bf16.msra.mxu0 %v2392
        %2470 = vmatprep.subr.bf16.mxu0 0
        %2471 = vmatpush1.bf16.msra.mxu0 0
        %2472 = vmatprep.subr.bf16.mxu0 0
        %2473 = vmatpush1.bf16.msra.mxu0 0
        %2474 = vmatprep.subr.bf16.mxu0 0
        %2475 = vmatpush1.bf16.msra.mxu0 0
        %2476 = vmatprep.subr.bf16.mxu0 0
        %2477 = vmatpush1.bf16.msra.mxu0 0
        %2478 = vmatprep.subr.bf16.mxu0 0
        %2479 = vmatpush1.bf16.msra.mxu0 0
        %2480 = vmatprep.subr.bf16.mxu0 0
        %2481 = vmatpush1.bf16.msra.mxu0 0
        %2482 = vmatprep.subr.bf16.mxu0 0
        %2483 = vmatpush1.bf16.msra.mxu0 0
        %2484 = vmatprep.subr.bf16.mxu0 0
        %2485 = vmatpush1.bf16.msra.mxu0 0
        %2486 = vmatprep.subr.bf16.mxu0 0
        %2487 = vmatpush1.bf16.msra.mxu0 0
        %2488 = vmatprep.subr.bf16.mxu0 0
        %2489 = vmatpush1.bf16.msra.mxu0 0
        %2490 = vmatprep.subr.bf16.mxu0 0
        %2491 = vmatpush1.bf16.msra.mxu0 0
        %2492 = vmatprep.subr.bf16.mxu0 0
        %2493 = vmatpush1.bf16.msra.mxu0 0
        %2494 = vmatprep.subr.bf16.mxu0 0
        %2495 = vmatpush1.bf16.msra.mxu0 0
        %2496 = vmatprep.subr.bf16.mxu0 0
        %2497 = vmatpush1.bf16.msra.mxu0 0
        %2498 = vmatprep.subr.bf16.mxu0 0
        %2499 = vmatpush1.bf16.msra.mxu0 0
        %2500 = vmatprep.mubr.bf16.mxu0 0
        %2501 = vmatmul.mubr.bf16.gmra.mrb[0].mxu0 %v2466
        %v2502 = vpop.f32.mrb[0].mxu0
        %v2503 = vadd.f32 0.0, %v2502
        %v2504 = vpop.f32.mrb[0].mxu0
        %v2505 = vpop.f32.mrb[0].mxu0
        %v2506 = vadd.f32 0.0, %v2505
        %v2507 = vpop.f32.mrb[0].mxu0
        %2508 = vdwg.mxu0
        %2510 = vrot.lane.b32.xlu0 %v2390, 96
        %v2511 = vpop.permute.xlu0 %2510
        %2513 = vrot.lane.b32.xlu0 %v2391, 96
        %v2514 = vpop.permute.xlu0 %2513
        %v2516 = vsel %vm765, %v2511, 0
        %v2519 = vsel %vm765, %v2514, 0
        %2521 = vmatprep.subr.bf16.mxu0 0
        %2522 = vmatpush1.bf16.xpose.msra.mxu0 %v2519
        %2523 = vmatprep.subr.bf16.mxu0 0
        %2524 = vmatpush1.bf16.xpose.msra.mxu0 0
        %2525 = vmatprep.subr.bf16.mxu0 0
        %2526 = vmatpush1.bf16.xpose.msra.mxu0 0
        %2527 = vmatprep.subr.bf16.mxu0 0
        %2528 = vmatpush1.bf16.xpose.msra.mxu0 0
        %2529 = vmatprep.subr.bf16.mxu0 0
        %2530 = vmatpush1.bf16.xpose.msra.mxu0 0
        %2531 = vmatprep.subr.bf16.mxu0 0
        %2532 = vmatpush1.bf16.xpose.msra.mxu0 0
        %2533 = vmatprep.subr.bf16.mxu0 0
        %2534 = vmatpush1.bf16.xpose.msra.mxu0 0
        %2535 = vmatprep.subr.bf16.mxu0 0
        %2536 = vmatpush1.bf16.xpose.msra.mxu0 0
        %2537 = vmatprep.subr.bf16.mxu0 0
        %2538 = vmatpush1.bf16.xpose.msra.mxu0 0
        %2539 = vmatprep.subr.bf16.mxu0 0
        %2540 = vmatpush1.bf16.xpose.msra.mxu0 0
        %2541 = vmatprep.subr.bf16.mxu0 0
        %2542 = vmatpush1.bf16.xpose.msra.mxu0 0
        %2543 = vmatprep.subr.bf16.mxu0 0
        %2544 = vmatpush1.bf16.xpose.msra.mxu0 0
        %2545 = vmatprep.subr.bf16.mxu0 0
        %2546 = vmatpush1.bf16.xpose.msra.mxu0 0
        %2547 = vmatprep.subr.bf16.mxu0 0
        %2548 = vmatpush1.bf16.xpose.msra.mxu0 0
        %2549 = vmatprep.subr.bf16.mxu0 0
        %2550 = vmatpush1.bf16.xpose.msra.mxu0 0
        %2551 = vmatprep.subr.bf16.mxu0 0
        %2552 = vmatpush1.bf16.xpose.msra.mxu0 0
        %2553 = vmatprep.mubr.bf16.mxu0 0
        %2554 = vmatmul.mubr.bf16.gmra.mrb[0].mxu0 %v2516
        %v2555 = vpop.f32.mrb[0].mxu0
        %v2556 = vadd.f32 0.0, %v2555
        %v2557 = vpop.f32.mrb[0].mxu0
        %v2558 = vpop.f32.mrb[0].mxu0
        %v2559 = vadd.f32 0.0, %v2558
        %v2560 = vpop.f32.mrb[0].mxu0
        %2561 = vdwg.mxu0
        %v2562 = vsel %vm474, %v2556, -1e+30
        %v2563 = vsel %vm475, %v2559, -1e+30
        %v2564 = vsel %vm815, %v2562, -inf
        %2565 = vmax.xlane.f32.xlu0 %v2564
        %v2566 = vpop.xlane.xlu0 %2565
        %v2567 = vsel %vm815, %v2563, -inf
        %2568 = vmax.xlane.f32.xlu0 %v2567
        %v2569 = vpop.xlane.xlu0 %2568
        %v2570 = vsub.f32 %v2562, %v2566
        %v2571 = vsub.f32 %v2563, %v2569
        %v2572 = vmul.f32 %v2570, 1.442695
        %v2573 = vpow.pop %v2572
        %v2574 = vmul.f32 %v2571, 1.442695
        %v2575 = vpow.pop %v2574
        %v2576 = vsel %vm815, %v2573, 0.0
        %2577 = vadd.xlane.f32.xlu0 %v2576
        %v2578 = vpop.xlane.xlu0 %2577
        %v2579 = vsel %vm815, %v2575, 0.0
        %2580 = vadd.xlane.f32.xlu0 %v2579
        %v2581 = vpop.xlane.xlu0 %2580
        %v2582 = vrcp.pop %v2578
        %v2583 = vrcp.pop %v2581
        %v2584 = vmul.f32 %v2573, %v2582
        %v2585 = vmul.f32 %v2575, %v2583
        %v2586 = vpack.c.bf16 %v2585, %v2584
        %2588 = vrot.lane.b32.xlu0 %v2392, 96
        %v2589 = vpop.permute.xlu0 %2588
        %v2592 = vsel %vm815, %v2586, 0
        %2594 = vmatprep.subr.bf16.mxu0 0
        %2595 = vmatpush1.bf16.msra.mxu0 %v2589
        %2596 = vmatprep.subr.bf16.mxu0 0
        %2597 = vmatpush1.bf16.msra.mxu0 0
        %2598 = vmatprep.subr.bf16.mxu0 0
        %2599 = vmatpush1.bf16.msra.mxu0 0
        %2600 = vmatprep.subr.bf16.mxu0 0
        %2601 = vmatpush1.bf16.msra.mxu0 0
        %2602 = vmatprep.subr.bf16.mxu0 0
        %2603 = vmatpush1.bf16.msra.mxu0 0
        %2604 = vmatprep.subr.bf16.mxu0 0
        %2605 = vmatpush1.bf16.msra.mxu0 0
        %2606 = vmatprep.subr.bf16.mxu0 0
        %2607 = vmatpush1.bf16.msra.mxu0 0
        %2608 = vmatprep.subr.bf16.mxu0 0
        %2609 = vmatpush1.bf16.msra.mxu0 0
        %2610 = vmatprep.subr.bf16.mxu0 0
        %2611 = vmatpush1.bf16.msra.mxu0 0
        %2612 = vmatprep.subr.bf16.mxu0 0
        %2613 = vmatpush1.bf16.msra.mxu0 0
        %2614 = vmatprep.subr.bf16.mxu0 0
        %2615 = vmatpush1.bf16.msra.mxu0 0
        %2616 = vmatprep.subr.bf16.mxu0 0
        %2617 = vmatpush1.bf16.msra.mxu0 0
        %2618 = vmatprep.subr.bf16.mxu0 0
        %2619 = vmatpush1.bf16.msra.mxu0 0
        %2620 = vmatprep.subr.bf16.mxu0 0
        %2621 = vmatpush1.bf16.msra.mxu0 0
        %2622 = vmatprep.subr.bf16.mxu0 0
        %2623 = vmatpush1.bf16.msra.mxu0 0
        %2624 = vmatprep.subr.bf16.mxu0 0
        %2625 = vmatpush1.bf16.msra.mxu0 0
        %2626 = vmatprep.mubr.bf16.mxu0 0
        %2627 = vmatmul.mubr.bf16.gmra.mrb[0].mxu0 %v2592
        %v2628 = vpop.f32.mrb[0].mxu0
        %v2629 = vadd.f32 0.0, %v2628
        %v2630 = vpop.f32.mrb[0].mxu0
        %v2631 = vpop.f32.mrb[0].mxu0
        %v2632 = vadd.f32 0.0, %v2631
        %v2633 = vpop.f32.mrb[0].mxu0
        %2634 = vdwg.mxu0
        %2635 = vrot.lane.b32.xlu0 %v2390, 64
        %v2636 = vpop.permute.xlu0 %2635
        %2637 = vrot.lane.b32.xlu0 %v2391, 64
        %v2638 = vpop.permute.xlu0 %2637
        %v2640 = vsel %vm765, %v2636, 0
        %v2643 = vsel %vm765, %v2638, 0
        %2645 = vmatprep.subr.bf16.mxu0 0
        %2646 = vmatpush1.bf16.xpose.msra.mxu0 %v2643
        %2647 = vmatprep.subr.bf16.mxu0 0
        %2648 = vmatpush1.bf16.xpose.msra.mxu0 0
        %2649 = vmatprep.subr.bf16.mxu0 0
        %2650 = vmatpush1.bf16.xpose.msra.mxu0 0
        %2651 = vmatprep.subr.bf16.mxu0 0
        %2652 = vmatpush1.bf16.xpose.msra.mxu0 0
        %2653 = vmatprep.subr.bf16.mxu0 0
        %2654 = vmatpush1.bf16.xpose.msra.mxu0 0
        %2655 = vmatprep.subr.bf16.mxu0 0
        %2656 = vmatpush1.bf16.xpose.msra.mxu0 0
        %2657 = vmatprep.subr.bf16.mxu0 0
        %2658 = vmatpush1.bf16.xpose.msra.mxu0 0
        %2659 = vmatprep.subr.bf16.mxu0 0
        %2660 = vmatpush1.bf16.xpose.msra.mxu0 0
        %2661 = vmatprep.subr.bf16.mxu0 0
        %2662 = vmatpush1.bf16.xpose.msra.mxu0 0
        %2663 = vmatprep.subr.bf16.mxu0 0
        %2664 = vmatpush1.bf16.xpose.msra.mxu0 0
        %2665 = vmatprep.subr.bf16.mxu0 0
        %2666 = vmatpush1.bf16.xpose.msra.mxu0 0
        %2667 = vmatprep.subr.bf16.mxu0 0
        %2668 = vmatpush1.bf16.xpose.msra.mxu0 0
        %2669 = vmatprep.subr.bf16.mxu0 0
        %2670 = vmatpush1.bf16.xpose.msra.mxu0 0
        %2671 = vmatprep.subr.bf16.mxu0 0
        %2672 = vmatpush1.bf16.xpose.msra.mxu0 0
        %2673 = vmatprep.subr.bf16.mxu0 0
        %2674 = vmatpush1.bf16.xpose.msra.mxu0 0
        %2675 = vmatprep.subr.bf16.mxu0 0
        %2676 = vmatpush1.bf16.xpose.msra.mxu0 0
        %2677 = vmatprep.mubr.bf16.mxu0 0
        %2678 = vmatmul.mubr.bf16.gmra.mrb[0].mxu0 %v2640
        %v2679 = vpop.f32.mrb[0].mxu0
        %v2680 = vadd.f32 0.0, %v2679
        %v2681 = vpop.f32.mrb[0].mxu0
        %v2682 = vpop.f32.mrb[0].mxu0
        %v2683 = vadd.f32 0.0, %v2682
        %v2684 = vpop.f32.mrb[0].mxu0
        %2685 = vdwg.mxu0
        %v2686 = vsel %vm474, %v2680, -1e+30
        %v2687 = vsel %vm475, %v2683, -1e+30
        %v2688 = vsel %vm815, %v2686, -inf
        %2689 = vmax.xlane.f32.xlu0 %v2688
        %v2690 = vpop.xlane.xlu0 %2689
        %v2691 = vsel %vm815, %v2687, -inf
        %2692 = vmax.xlane.f32.xlu0 %v2691
        %v2693 = vpop.xlane.xlu0 %2692
        %v2694 = vsub.f32 %v2686, %v2690
        %v2695 = vsub.f32 %v2687, %v2693
        %v2696 = vmul.f32 %v2694, 1.442695
        %v2697 = vpow.pop %v2696
        %v2698 = vmul.f32 %v2695, 1.442695
        %v2699 = vpow.pop %v2698
        %v2700 = vsel %vm815, %v2697, 0.0
        %2701 = vadd.xlane.f32.xlu0 %v2700
        %v2702 = vpop.xlane.xlu0 %2701
        %v2703 = vsel %vm815, %v2699, 0.0
        %2704 = vadd.xlane.f32.xlu0 %v2703
        %v2705 = vpop.xlane.xlu0 %2704
        %v2706 = vrcp.pop %v2702
        %v2707 = vrcp.pop %v2705
        %v2708 = vmul.f32 %v2697, %v2706
        %v2709 = vmul.f32 %v2699, %v2707
        %v2710 = vpack.c.bf16 %v2709, %v2708
        %2711 = vrot.lane.b32.xlu0 %v2392, 64
        %v2712 = vpop.permute.xlu0 %2711
        %v2715 = vsel %vm815, %v2710, 0
        %2717 = vmatprep.subr.bf16.mxu0 0
        %2718 = vmatpush1.bf16.msra.mxu0 %v2712
        %2719 = vmatprep.subr.bf16.mxu0 0
        %2720 = vmatpush1.bf16.msra.mxu0 0
        %2721 = vmatprep.subr.bf16.mxu0 0
        %2722 = vmatpush1.bf16.msra.mxu0 0
        %2723 = vmatprep.subr.bf16.mxu0 0
        %2724 = vmatpush1.bf16.msra.mxu0 0
        %2725 = vmatprep.subr.bf16.mxu0 0
        %2726 = vmatpush1.bf16.msra.mxu0 0
        %2727 = vmatprep.subr.bf16.mxu0 0
        %2728 = vmatpush1.bf16.msra.mxu0 0
        %2729 = vmatprep.subr.bf16.mxu0 0
        %2730 = vmatpush1.bf16.msra.mxu0 0
        %2731 = vmatprep.subr.bf16.mxu0 0
        %2732 = vmatpush1.bf16.msra.mxu0 0
        %2733 = vmatprep.subr.bf16.mxu0 0
        %2734 = vmatpush1.bf16.msra.mxu0 0
        %2735 = vmatprep.subr.bf16.mxu0 0
        %2736 = vmatpush1.bf16.msra.mxu0 0
        %2737 = vmatprep.subr.bf16.mxu0 0
        %2738 = vmatpush1.bf16.msra.mxu0 0
        %2739 = vmatprep.subr.bf16.mxu0 0
        %2740 = vmatpush1.bf16.msra.mxu0 0
        %2741 = vmatprep.subr.bf16.mxu0 0
        %2742 = vmatpush1.bf16.msra.mxu0 0
        %2743 = vmatprep.subr.bf16.mxu0 0
        %2744 = vmatpush1.bf16.msra.mxu0 0
        %2745 = vmatprep.subr.bf16.mxu0 0
        %2746 = vmatpush1.bf16.msra.mxu0 0
        %2747 = vmatprep.subr.bf16.mxu0 0
        %2748 = vmatpush1.bf16.msra.mxu0 0
        %2749 = vmatprep.mubr.bf16.mxu0 0
        %2750 = vmatmul.mubr.bf16.gmra.mrb[0].mxu0 %v2715
        %v2751 = vpop.f32.mrb[0].mxu0
        %v2752 = vadd.f32 0.0, %v2751
        %v2753 = vpop.f32.mrb[0].mxu0
        %v2754 = vpop.f32.mrb[0].mxu0
        %v2755 = vadd.f32 0.0, %v2754
        %v2756 = vpop.f32.mrb[0].mxu0
        %2757 = vdwg.mxu0
        %2758 = vrot.lane.b32.xlu0 %v2390, 32
        %v2759 = vpop.permute.xlu0 %2758
        %2760 = vrot.lane.b32.xlu0 %v2391, 32
        %v2761 = vpop.permute.xlu0 %2760
        %v2763 = vsel %vm765, %v2759, 0
        %v2766 = vsel %vm765, %v2761, 0
        %2768 = vmatprep.subr.bf16.mxu0 0
        %2769 = vmatpush1.bf16.xpose.msra.mxu0 %v2766
        %2770 = vmatprep.subr.bf16.mxu0 0
        %2771 = vmatpush1.bf16.xpose.msra.mxu0 0
        %2772 = vmatprep.subr.bf16.mxu0 0
        %2773 = vmatpush1.bf16.xpose.msra.mxu0 0
        %2774 = vmatprep.subr.bf16.mxu0 0
        %2775 = vmatpush1.bf16.xpose.msra.mxu0 0
        %2776 = vmatprep.subr.bf16.mxu0 0
        %2777 = vmatpush1.bf16.xpose.msra.mxu0 0
        %2778 = vmatprep.subr.bf16.mxu0 0
        %2779 = vmatpush1.bf16.xpose.msra.mxu0 0
        %2780 = vmatprep.subr.bf16.mxu0 0
        %2781 = vmatpush1.bf16.xpose.msra.mxu0 0
        %2782 = vmatprep.subr.bf16.mxu0 0
        %2783 = vmatpush1.bf16.xpose.msra.mxu0 0
        %2784 = vmatprep.subr.bf16.mxu0 0
        %2785 = vmatpush1.bf16.xpose.msra.mxu0 0
        %2786 = vmatprep.subr.bf16.mxu0 0
        %2787 = vmatpush1.bf16.xpose.msra.mxu0 0
        %2788 = vmatprep.subr.bf16.mxu0 0
        %2789 = vmatpush1.bf16.xpose.msra.mxu0 0
        %2790 = vmatprep.subr.bf16.mxu0 0
        %2791 = vmatpush1.bf16.xpose.msra.mxu0 0
        %2792 = vmatprep.subr.bf16.mxu0 0
        %2793 = vmatpush1.bf16.xpose.msra.mxu0 0
        %2794 = vmatprep.subr.bf16.mxu0 0
        %2795 = vmatpush1.bf16.xpose.msra.mxu0 0
        %2796 = vmatprep.subr.bf16.mxu0 0
        %2797 = vmatpush1.bf16.xpose.msra.mxu0 0
        %2798 = vmatprep.subr.bf16.mxu0 0
        %2799 = vmatpush1.bf16.xpose.msra.mxu0 0
        %2800 = vmatprep.mubr.bf16.mxu0 0
        %2801 = vmatmul.mubr.bf16.gmra.mrb[0].mxu0 %v2763
        %v2802 = vpop.f32.mrb[0].mxu0
        %v2803 = vadd.f32 0.0, %v2802
        %v2804 = vpop.f32.mrb[0].mxu0
        %v2805 = vpop.f32.mrb[0].mxu0
        %v2806 = vadd.f32 0.0, %v2805
        %v2807 = vpop.f32.mrb[0].mxu0
        %2808 = vdwg.mxu0
        %v2809 = vsel %vm474, %v2803, -1e+30
        %v2810 = vsel %vm475, %v2806, -1e+30
        %v2811 = vsel %vm815, %v2809, -inf
        %2812 = vmax.xlane.f32.xlu0 %v2811
        %v2813 = vpop.xlane.xlu0 %2812
        %v2814 = vsel %vm815, %v2810, -inf
        %2815 = vmax.xlane.f32.xlu0 %v2814
        %v2816 = vpop.xlane.xlu0 %2815
        %v2817 = vsub.f32 %v2809, %v2813
        %v2818 = vsub.f32 %v2810, %v2816
        %v2819 = vmul.f32 %v2817, 1.442695
        %v2820 = vpow.pop %v2819
        %v2821 = vmul.f32 %v2818, 1.442695
        %v2822 = vpow.pop %v2821
        %v2823 = vsel %vm815, %v2820, 0.0
        %2824 = vadd.xlane.f32.xlu0 %v2823
        %v2825 = vpop.xlane.xlu0 %2824
        %v2826 = vsel %vm815, %v2822, 0.0
        %2827 = vadd.xlane.f32.xlu0 %v2826
        %v2828 = vpop.xlane.xlu0 %2827
        %v2829 = vrcp.pop %v2825
        %v2830 = vrcp.pop %v2828
        %v2831 = vmul.f32 %v2820, %v2829
        %v2832 = vmul.f32 %v2822, %v2830
        %v2833 = vpack.c.bf16 %v2832, %v2831
        %2834 = vrot.lane.b32.xlu0 %v2392, 32
        %v2835 = vpop.permute.xlu0 %2834
        %v2838 = vsel %vm815, %v2833, 0
        %2840 = vmatprep.subr.bf16.mxu0 0
        %2841 = vmatpush1.bf16.msra.mxu0 %v2835
        %2842 = vmatprep.subr.bf16.mxu0 0
        %2843 = vmatpush1.bf16.msra.mxu0 0
        %2844 = vmatprep.subr.bf16.mxu0 0
        %2845 = vmatpush1.bf16.msra.mxu0 0
        %2846 = vmatprep.subr.bf16.mxu0 0
        %2847 = vmatpush1.bf16.msra.mxu0 0
        %2848 = vmatprep.subr.bf16.mxu0 0
        %2849 = vmatpush1.bf16.msra.mxu0 0
        %2850 = vmatprep.subr.bf16.mxu0 0
        %2851 = vmatpush1.bf16.msra.mxu0 0
        %2852 = vmatprep.subr.bf16.mxu0 0
        %2853 = vmatpush1.bf16.msra.mxu0 0
        %2854 = vmatprep.subr.bf16.mxu0 0
        %2855 = vmatpush1.bf16.msra.mxu0 0
        %2856 = vmatprep.subr.bf16.mxu0 0
        %2857 = vmatpush1.bf16.msra.mxu0 0
        %2858 = vmatprep.subr.bf16.mxu0 0
        %2859 = vmatpush1.bf16.msra.mxu0 0
        %2860 = vmatprep.subr.bf16.mxu0 0
        %2861 = vmatpush1.bf16.msra.mxu0 0
        %2862 = vmatprep.subr.bf16.mxu0 0
        %2863 = vmatpush1.bf16.msra.mxu0 0
        %2864 = vmatprep.subr.bf16.mxu0 0
        %2865 = vmatpush1.bf16.msra.mxu0 0
        %2866 = vmatprep.subr.bf16.mxu0 0
        %2867 = vmatpush1.bf16.msra.mxu0 0
        %2868 = vmatprep.subr.bf16.mxu0 0
        %2869 = vmatpush1.bf16.msra.mxu0 0
        %2870 = vmatprep.subr.bf16.mxu0 0
        %2871 = vmatpush1.bf16.msra.mxu0 0
        %2872 = vmatprep.mubr.bf16.mxu0 0
        %2873 = vmatmul.mubr.bf16.gmra.mrb[0].mxu0 %v2838
        %v2874 = vpop.f32.mrb[0].mxu0
        %v2875 = vadd.f32 0.0, %v2874
        %v2876 = vpop.f32.mrb[0].mxu0
        %v2877 = vpop.f32.mrb[0].mxu0
        %v2878 = vadd.f32 0.0, %v2877
        %v2879 = vpop.f32.mrb[0].mxu0
        %2880 = vdwg.mxu0
        %2883 = vrot.lane.b32.xlu0 %v2629, 32
        %v2884 = vpop.permute.xlu0 %2883
        %2885 = vrot.lane.b32.xlu0 %v2632, 32
        %v2886 = vpop.permute.xlu0 %2885
        %2891 = vrot.lane.b32.xlu0 %v2752, 64
        %v2892 = vpop.permute.xlu0 %2891
        %2893 = vrot.lane.b32.xlu0 %v2755, 64
        %v2894 = vpop.permute.xlu0 %2893
        %2899 = vrot.lane.b32.xlu0 %v2875, 96
        %v2900 = vpop.permute.xlu0 %2899
        %2901 = vrot.lane.b32.xlu0 %v2878, 96
        %v2902 = vpop.permute.xlu0 %2901
        %v2905 = vsel %vm765, %v2503, %v2884
        %v2906 = vsel %vm765, %v2506, %v2886
        %v2907 = vsel %vm1281, %v2905, %v2892
        %v2908 = vsel %vm1281, %v2906, %v2894
        %v2909 = vsel %vm1284, %v2907, %v2900
        %v2910 = vsel %vm1284, %v2908, %v2902
        %v2911 = vpack.c.bf16 %v2910, %v2909
        %s2912 = scalar_lea.vmem %s4, 64
        %v2913 = vld [vmem:[%s2912] sm:$0xf]
        %v2914 = vld [vmem:[%s2912 + $0x4] sm:$0xf]
        %v2915 = vld [vmem:[%s2912 + $0x8] sm:$0xf]
        %v2916 = vld [vmem:[%s2912 + $0xc] sm:$0xf]
        %v2917 = vld [vmem:[%s2912 + $0x10] sm:$0xf]
        %v2918 = vld [vmem:[%s2912 + $0x14] sm:$0xf]
        %v2919 = vld [vmem:[%s2912 + $0x18] sm:$0xf]
        %v2920 = vld [vmem:[%s2912 + $0x1c] sm:$0xf]
        %v2921 = vld [vmem:[%s2912 + $0x20] sm:$0xf]
        %v2922 = vld [vmem:[%s2912 + $0x24] sm:$0xf]
        %v2923 = vld [vmem:[%s2912 + $0x28] sm:$0xf]
        %v2924 = vld [vmem:[%s2912 + $0x2c] sm:$0xf]
        %v2925 = vld [vmem:[%s2912 + $0x30] sm:$0xf]
        %v2926 = vld [vmem:[%s2912 + $0x34] sm:$0xf]
        %v2927 = vld [vmem:[%s2912 + $0x38] sm:$0xf]
        %v2928 = vld [vmem:[%s2912 + $0x3c] sm:$0xf]
        %s2929 = scalar_lea.vmem %s5, 1
        %v2930 = vld [vmem:[%s2929] sm:$0x1]
        %v2932 = vlaneseq
        %v2933 = vshrl.u32 %v2932, 7
        %v2934 = vsub.s32 0, %v2933
        %v2935 = vrot.slane %v2930, %v2934
        %v2953 = vunpack.c.l.b16 %v2913
        %v2954 = vunpack.c.l.b16 %v2914
        %v2955 = vunpack.c.l.b16 %v2915
        %v2956 = vunpack.c.l.b16 %v2916
        %v2957 = vunpack.c.l.b16 %v2917
        %v2958 = vunpack.c.l.b16 %v2918
        %v2959 = vunpack.c.l.b16 %v2919
        %v2960 = vunpack.c.l.b16 %v2920
        %v2961 = vunpack.c.l.b16 %v2921
        %v2962 = vunpack.c.l.b16 %v2922
        %v2963 = vunpack.c.l.b16 %v2923
        %v2964 = vunpack.c.l.b16 %v2924
        %v2965 = vunpack.c.l.b16 %v2925
        %v2966 = vunpack.c.l.b16 %v2926
        %v2967 = vunpack.c.l.b16 %v2927
        %v2968 = vunpack.c.l.b16 %v2928
        %v2969 = vpack.c.b16 %v2954, %v2953
        %v2970 = vpack.c.b16 %v2956, %v2955
        %v2971 = vpack.c.b16 %v2958, %v2957
        %v2972 = vpack.c.b16 %v2960, %v2959
        %v2973 = vpack.c.b16 %v2962, %v2961
        %v2974 = vpack.c.b16 %v2964, %v2963
        %v2975 = vpack.c.b16 %v2966, %v2965
        %v2976 = vpack.c.b16 %v2968, %v2967
        %2985 = vmatprep.subr.bf16.mxu0 0
        %2986 = vmatpush1.bf16.msra.mxu0 %v2969
        %2987 = vmatprep.subr.bf16.mxu0 0
        %2988 = vmatpush1.bf16.msra.mxu0 %v2970
        %2989 = vmatprep.subr.bf16.mxu0 0
        %2990 = vmatpush1.bf16.msra.mxu0 %v2971
        %2991 = vmatprep.subr.bf16.mxu0 0
        %2992 = vmatpush1.bf16.msra.mxu0 %v2972
        %2993 = vmatprep.subr.bf16.mxu0 0
        %2994 = vmatpush1.bf16.msra.mxu0 %v2973
        %2995 = vmatprep.subr.bf16.mxu0 0
        %2996 = vmatpush1.bf16.msra.mxu0 %v2974
        %2997 = vmatprep.subr.bf16.mxu0 0
        %2998 = vmatpush1.bf16.msra.mxu0 %v2975
        %2999 = vmatprep.subr.bf16.mxu0 0
        %3000 = vmatpush1.bf16.msra.mxu0 %v2976
        %3001 = vmatprep.subr.bf16.mxu0 0
        %3002 = vmatpush1.bf16.msra.mxu0 0
        %3003 = vmatprep.subr.bf16.mxu0 0
        %3004 = vmatpush1.bf16.msra.mxu0 0
        %3005 = vmatprep.subr.bf16.mxu0 0
        %3006 = vmatpush1.bf16.msra.mxu0 0
        %3007 = vmatprep.subr.bf16.mxu0 0
        %3008 = vmatpush1.bf16.msra.mxu0 0
        %3009 = vmatprep.subr.bf16.mxu0 0
        %3010 = vmatpush1.bf16.msra.mxu0 0
        %3011 = vmatprep.subr.bf16.mxu0 0
        %3012 = vmatpush1.bf16.msra.mxu0 0
        %3013 = vmatprep.subr.bf16.mxu0 0
        %3014 = vmatpush1.bf16.msra.mxu0 0
        %3015 = vmatprep.subr.bf16.mxu0 0
        %3016 = vmatpush1.bf16.msra.mxu0 0
        %3017 = vmatprep.mubr.bf16.mxu0 0
        %3018 = vmatmul.mubr.bf16.gmra.mrb[0].mxu0 %v2911
        %v3019 = vpop.f32.mrb[0].mxu0
        %v3020 = vadd.f32 %v2935, %v3019
        %v3021 = vpop.f32.mrb[0].mxu0
        %v3022 = vpop.f32.mrb[0].mxu0
        %v3023 = vadd.f32 %v2935, %v3022
        %v3024 = vpop.f32.mrb[0].mxu0
        %3025 = vdwg.mxu0
        %v3026 = vadd.f32 %v2100, %v3020
        %v3027 = vadd.f32 %v2101, %v3023
        %s3028 = scalar_lea.vmem %s6, 1
        %v3029 = vld [vmem:[%s3028] sm:$0x1]
        %s3030 = scalar_lea.vmem %s7, 1
        %v3031 = vld [vmem:[%s3030] sm:$0x1]
        %3032 = vadd.xlane.f32.xlu0 %v3026
        %v3033 = vpop.xlane.xlu0 %3032
        %3034 = vadd.xlane.f32.xlu0 %v3027
        %v3035 = vpop.xlane.xlu0 %3034
        %v3036 = vmul.f32 %v3033, %v482
        %v3037 = vmul.f32 %v3035, %v482
        %v3038 = vsub.f32 %v3026, %v3036
        %v3039 = vsub.f32 %v3027, %v3037
        %v3040 = vmul.f32 %v3038, %v3038
        %v3041 = vmul.f32 %v3039, %v3039
        %3042 = vadd.xlane.f32.xlu0 %v3040
        %v3043 = vpop.xlane.xlu0 %3042
        %3044 = vadd.xlane.f32.xlu0 %v3041
        %v3045 = vpop.xlane.xlu0 %3044
        %v3046 = vmul.f32 %v3043, %v482
        %v3047 = vmul.f32 %v3045, %v482
        %v3048 = vadd.f32 %v3046, 1e-05
        %v3049 = vadd.f32 %v3047, 1e-05
        %v3050 = vrsqrt.pop %v3048
        %v3051 = vrsqrt.pop %v3049
        %v3052 = vmul.f32 %v3038, %v3050
        %v3053 = vmul.f32 %v3039, %v3051
        %v3055 = vlaneseq
        %v3056 = vshrl.u32 %v3055, 7
        %v3057 = vsub.s32 0, %v3056
        %v3058 = vrot.slane %v3029, %v3057
        %v3060 = vmul.f32 %v3052, %v3058
        %v3061 = vmul.f32 %v3053, %v3058
        %v3063 = vlaneseq
        %v3064 = vshrl.u32 %v3063, 7
        %v3065 = vsub.s32 0, %v3064
        %v3066 = vrot.slane %v3031, %v3065
        %v3068 = vadd.f32 %v3060, %v3066
        %v3069 = vadd.f32 %v3061, %v3066
        %v3070 = vpack.c.bf16 %v3069, %v3068
        %s3071 = scalar_lea.vmem %s8, 256
        %v3072 = vld [vmem:[%s3071] sm:$0xff]
        %v3073 = vld [vmem:[%s3071 + $0x8] sm:$0xff]
        %v3074 = vld [vmem:[%s3071 + $0x10] sm:$0xff]
        %v3075 = vld [vmem:[%s3071 + $0x18] sm:$0xff]
        %v3076 = vld [vmem:[%s3071 + $0x20] sm:$0xff]
        %v3077 = vld [vmem:[%s3071 + $0x28] sm:$0xff]
        %v3078 = vld [vmem:[%s3071 + $0x30] sm:$0xff]
        %v3079 = vld [vmem:[%s3071 + $0x38] sm:$0xff]
        %v3080 = vld [vmem:[%s3071 + $0x40] sm:$0xff]
        %v3081 = vld [vmem:[%s3071 + $0x48] sm:$0xff]
        %v3082 = vld [vmem:[%s3071 + $0x50] sm:$0xff]
        %v3083 = vld [vmem:[%s3071 + $0x58] sm:$0xff]
        %v3084 = vld [vmem:[%s3071 + $0x60] sm:$0xff]
        %v3085 = vld [vmem:[%s3071 + $0x68] sm:$0xff]
        %v3086 = vld [vmem:[%s3071 + $0x70] sm:$0xff]
        %v3087 = vld [vmem:[%s3071 + $0x78] sm:$0xff]
        %v3088 = vld [vmem:[%s3071 + $0x80] sm:$0xff]
        %v3089 = vld [vmem:[%s3071 + $0x88] sm:$0xff]
        %v3090 = vld [vmem:[%s3071 + $0x90] sm:$0xff]
        %v3091 = vld [vmem:[%s3071 + $0x98] sm:$0xff]
        %v3092 = vld [vmem:[%s3071 + $0xa0] sm:$0xff]
        %v3093 = vld [vmem:[%s3071 + $0xa8] sm:$0xff]
        %v3094 = vld [vmem:[%s3071 + $0xb0] sm:$0xff]
        %v3095 = vld [vmem:[%s3071 + $0xb8] sm:$0xff]
        %v3096 = vld [vmem:[%s3071 + $0xc0] sm:$0xff]
        %v3097 = vld [vmem:[%s3071 + $0xc8] sm:$0xff]
        %v3098 = vld [vmem:[%s3071 + $0xd0] sm:$0xff]
        %v3099 = vld [vmem:[%s3071 + $0xd8] sm:$0xff]
        %v3100 = vld [vmem:[%s3071 + $0xe0] sm:$0xff]
        %v3101 = vld [vmem:[%s3071 + $0xe8] sm:$0xff]
        %v3102 = vld [vmem:[%s3071 + $0xf0] sm:$0xff]
        %v3103 = vld [vmem:[%s3071 + $0xf8] sm:$0xff]
        %s3104 = scalar_lea.vmem %s9, 4
        %v3105 = vld [vmem:[%s3104] sm:$0xf]
        %v3107 = vlaneseq
        %v3108 = vshrl.u32 %v3107, 7
        %v3109 = vsub.s32 0, %v3108
        %v3110 = vrot.slane %v3105, %v3109
        %v3111 = vlaneseq
        %v3112 = vshrl.u32 %v3111, 7
        %v3113 = vsub.s32 1, %v3112
        %v3114 = vrot.slane %v3105, %v3113
        %v3115 = vlaneseq
        %v3116 = vshrl.u32 %v3115, 7
        %v3117 = vsub.s32 2, %v3116
        %v3118 = vrot.slane %v3105, %v3117
        %v3119 = vlaneseq
        %v3120 = vshrl.u32 %v3119, 7
        %v3121 = vsub.s32 3, %v3120
        %v3122 = vrot.slane %v3105, %v3121
        %v3159 = vunpack.c.l.b16 %v3072
        %v3160 = vunpack.c.h.b16 %v3072
        %v3161 = vunpack.c.l.b16 %v3073
        %v3162 = vunpack.c.h.b16 %v3073
        %v3163 = vunpack.c.l.b16 %v3074
        %v3164 = vunpack.c.h.b16 %v3074
        %v3165 = vunpack.c.l.b16 %v3075
        %v3166 = vunpack.c.h.b16 %v3075
        %v3167 = vunpack.c.l.b16 %v3076
        %v3168 = vunpack.c.h.b16 %v3076
        %v3169 = vunpack.c.l.b16 %v3077
        %v3170 = vunpack.c.h.b16 %v3077
        %v3171 = vunpack.c.l.b16 %v3078
        %v3172 = vunpack.c.h.b16 %v3078
        %v3173 = vunpack.c.l.b16 %v3079
        %v3174 = vunpack.c.h.b16 %v3079
        %v3175 = vunpack.c.l.b16 %v3080
        %v3176 = vunpack.c.h.b16 %v3080
        %v3177 = vunpack.c.l.b16 %v3081
        %v3178 = vunpack.c.h.b16 %v3081
        %v3179 = vunpack.c.l.b16 %v3082
        %v3180 = vunpack.c.h.b16 %v3082
        %v3181 = vunpack.c.l.b16 %v3083
        %v3182 = vunpack.c.h.b16 %v3083
        %v3183 = vunpack.c.l.b16 %v3084
        %v3184 = vunpack.c.h.b16 %v3084
        %v3185 = vunpack.c.l.b16 %v3085
        %v3186 = vunpack.c.h.b16 %v3085
        %v3187 = vunpack.c.l.b16 %v3086
        %v3188 = vunpack.c.h.b16 %v3086
        %v3189 = vunpack.c.l.b16 %v3087
        %v3190 = vunpack.c.h.b16 %v3087
        %v3191 = vunpack.c.l.b16 %v3088
        %v3192 = vunpack.c.h.b16 %v3088
        %v3193 = vunpack.c.l.b16 %v3089
        %v3194 = vunpack.c.h.b16 %v3089
        %v3195 = vunpack.c.l.b16 %v3090
        %v3196 = vunpack.c.h.b16 %v3090
        %v3197 = vunpack.c.l.b16 %v3091
        %v3198 = vunpack.c.h.b16 %v3091
        %v3199 = vunpack.c.l.b16 %v3092
        %v3200 = vunpack.c.h.b16 %v3092
        %v3201 = vunpack.c.l.b16 %v3093
        %v3202 = vunpack.c.h.b16 %v3093
        %v3203 = vunpack.c.l.b16 %v3094
        %v3204 = vunpack.c.h.b16 %v3094
        %v3205 = vunpack.c.l.b16 %v3095
        %v3206 = vunpack.c.h.b16 %v3095
        %v3207 = vunpack.c.l.b16 %v3096
        %v3208 = vunpack.c.h.b16 %v3096
        %v3209 = vunpack.c.l.b16 %v3097
        %v3210 = vunpack.c.h.b16 %v3097
        %v3211 = vunpack.c.l.b16 %v3098
        %v3212 = vunpack.c.h.b16 %v3098
        %v3213 = vunpack.c.l.b16 %v3099
        %v3214 = vunpack.c.h.b16 %v3099
        %v3215 = vunpack.c.l.b16 %v3100
        %v3216 = vunpack.c.h.b16 %v3100
        %v3217 = vunpack.c.l.b16 %v3101
        %v3218 = vunpack.c.h.b16 %v3101
        %v3219 = vunpack.c.l.b16 %v3102
        %v3220 = vunpack.c.h.b16 %v3102
        %v3221 = vunpack.c.l.b16 %v3103
        %v3222 = vunpack.c.h.b16 %v3103
        %v3223 = vpack.c.b16 %v3163, %v3159
        %v3224 = vpack.c.b16 %v3164, %v3160
        %v3225 = vpack.c.b16 %v3165, %v3161
        %v3226 = vpack.c.b16 %v3166, %v3162
        %v3227 = vpack.c.b16 %v3171, %v3167
        %v3228 = vpack.c.b16 %v3172, %v3168
        %v3229 = vpack.c.b16 %v3173, %v3169
        %v3230 = vpack.c.b16 %v3174, %v3170
        %v3231 = vpack.c.b16 %v3179, %v3175
        %v3232 = vpack.c.b16 %v3180, %v3176
        %v3233 = vpack.c.b16 %v3181, %v3177
        %v3234 = vpack.c.b16 %v3182, %v3178
        %v3235 = vpack.c.b16 %v3187, %v3183
        %v3236 = vpack.c.b16 %v3188, %v3184
        %v3237 = vpack.c.b16 %v3189, %v3185
        %v3238 = vpack.c.b16 %v3190, %v3186
        %v3239 = vpack.c.b16 %v3195, %v3191
        %v3240 = vpack.c.b16 %v3196, %v3192
        %v3241 = vpack.c.b16 %v3197, %v3193
        %v3242 = vpack.c.b16 %v3198, %v3194
        %v3243 = vpack.c.b16 %v3203, %v3199
        %v3244 = vpack.c.b16 %v3204, %v3200
        %v3245 = vpack.c.b16 %v3205, %v3201
        %v3246 = vpack.c.b16 %v3206, %v3202
        %v3247 = vpack.c.b16 %v3211, %v3207
        %v3248 = vpack.c.b16 %v3212, %v3208
        %v3249 = vpack.c.b16 %v3213, %v3209
        %v3250 = vpack.c.b16 %v3214, %v3210
        %v3251 = vpack.c.b16 %v3219, %v3215
        %v3252 = vpack.c.b16 %v3220, %v3216
        %v3253 = vpack.c.b16 %v3221, %v3217
        %v3254 = vpack.c.b16 %v3222, %v3218
        %3287 = vmatprep.subr.bf16.mxu0 %v3224
        %3288 = vmatpush1.bf16.msra.mxu0 %v3223
        %3289 = vmatprep.subr.bf16.mxu0 %v3228
        %3290 = vmatpush1.bf16.msra.mxu0 %v3227
        %3291 = vmatprep.subr.bf16.mxu0 %v3232
        %3292 = vmatpush1.bf16.msra.mxu0 %v3231
        %3293 = vmatprep.subr.bf16.mxu0 %v3236
        %3294 = vmatpush1.bf16.msra.mxu0 %v3235
        %3295 = vmatprep.subr.bf16.mxu0 %v3240
        %3296 = vmatpush1.bf16.msra.mxu0 %v3239
        %3297 = vmatprep.subr.bf16.mxu0 %v3244
        %3298 = vmatpush1.bf16.msra.mxu0 %v3243
        %3299 = vmatprep.subr.bf16.mxu0 %v3248
        %3300 = vmatpush1.bf16.msra.mxu0 %v3247
        %3301 = vmatprep.subr.bf16.mxu0 %v3252
        %3302 = vmatpush1.bf16.msra.mxu0 %v3251
        %3303 = vmatprep.subr.bf16.mxu0 0
        %3304 = vmatpush1.bf16.msra.mxu0 0
        %3305 = vmatprep.subr.bf16.mxu0 0
        %3306 = vmatpush1.bf16.msra.mxu0 0
        %3307 = vmatprep.subr.bf16.mxu0 0
        %3308 = vmatpush1.bf16.msra.mxu0 0
        %3309 = vmatprep.subr.bf16.mxu0 0
        %3310 = vmatpush1.bf16.msra.mxu0 0
        %3311 = vmatprep.subr.bf16.mxu0 0
        %3312 = vmatpush1.bf16.msra.mxu0 0
        %3313 = vmatprep.subr.bf16.mxu0 0
        %3314 = vmatpush1.bf16.msra.mxu0 0
        %3315 = vmatprep.subr.bf16.mxu0 0
        %3316 = vmatpush1.bf16.msra.mxu0 0
        %3317 = vmatprep.subr.bf16.mxu0 0
        %3318 = vmatpush1.bf16.msra.mxu0 0
        %3319 = vmatprep.mubr.bf16.mxu0 0
        %3320 = vmatmul.mubr.bf16.gmra.mrb[0].mxu0 %v3070
        %v3321 = vpop.f32.mrb[0].mxu0
        %v3322 = vadd.f32 %v3110, %v3321
        %v3323 = vpop.f32.mrb[0].mxu0
        %v3324 = vadd.f32 %v3114, %v3323
        %v3325 = vpop.f32.mrb[0].mxu0
        %v3326 = vadd.f32 %v3110, %v3325
        %v3327 = vpop.f32.mrb[0].mxu0
        %v3328 = vadd.f32 %v3114, %v3327
        %3329 = vdwg.mxu0
        %3330 = vmatprep.subr.bf16.mxu0 %v3226
        %3331 = vmatpush1.bf16.msra.mxu0 %v3225
        %3332 = vmatprep.subr.bf16.mxu0 %v3230
        %3333 = vmatpush1.bf16.msra.mxu0 %v3229
        %3334 = vmatprep.subr.bf16.mxu0 %v3234
        %3335 = vmatpush1.bf16.msra.mxu0 %v3233
        %3336 = vmatprep.subr.bf16.mxu0 %v3238
        %3337 = vmatpush1.bf16.msra.mxu0 %v3237
        %3338 = vmatprep.subr.bf16.mxu0 %v3242
        %3339 = vmatpush1.bf16.msra.mxu0 %v3241
        %3340 = vmatprep.subr.bf16.mxu0 %v3246
        %3341 = vmatpush1.bf16.msra.mxu0 %v3245
        %3342 = vmatprep.subr.bf16.mxu0 %v3250
        %3343 = vmatpush1.bf16.msra.mxu0 %v3249
        %3344 = vmatprep.subr.bf16.mxu0 %v3254
        %3345 = vmatpush1.bf16.msra.mxu0 %v3253
        %3346 = vmatprep.subr.bf16.mxu0 0
        %3347 = vmatpush1.bf16.msra.mxu0 0
        %3348 = vmatprep.subr.bf16.mxu0 0
        %3349 = vmatpush1.bf16.msra.mxu0 0
        %3350 = vmatprep.subr.bf16.mxu0 0
        %3351 = vmatpush1.bf16.msra.mxu0 0
        %3352 = vmatprep.subr.bf16.mxu0 0
        %3353 = vmatpush1.bf16.msra.mxu0 0
        %3354 = vmatprep.subr.bf16.mxu0 0
        %3355 = vmatpush1.bf16.msra.mxu0 0
        %3356 = vmatprep.subr.bf16.mxu0 0
        %3357 = vmatpush1.bf16.msra.mxu0 0
        %3358 = vmatprep.subr.bf16.mxu0 0
        %3359 = vmatpush1.bf16.msra.mxu0 0
        %3360 = vmatprep.subr.bf16.mxu0 0
        %3361 = vmatpush1.bf16.msra.mxu0 0
        %3362 = vmatprep.mubr.bf16.mxu0 0
        %3363 = vmatmul.mubr.bf16.gmra.mrb[0].mxu0 %v3070
        %v3364 = vpop.f32.mrb[0].mxu0
        %v3365 = vadd.f32 %v3118, %v3364
        %v3366 = vpop.f32.mrb[0].mxu0
        %v3367 = vadd.f32 %v3122, %v3366
        %v3368 = vpop.f32.mrb[0].mxu0
        %v3369 = vadd.f32 %v3118, %v3368
        %v3370 = vpop.f32.mrb[0].mxu0
        %v3371 = vadd.f32 %v3122, %v3370
        %3372 = vdwg.mxu0
        %v3373 = vmax.f32 %v3322, 0.0
        %v3374 = vmax.f32 %v3324, 0.0
        %v3375 = vmax.f32 %v3365, 0.0
        %v3376 = vmax.f32 %v3367, 0.0
        %v3377 = vmax.f32 %v3326, 0.0
        %v3378 = vmax.f32 %v3328, 0.0
        %v3379 = vmax.f32 %v3369, 0.0
        %v3380 = vmax.f32 %v3371, 0.0
        %v3381 = vpack.c.bf16 %v3377, %v3373
        %v3382 = vpack.c.bf16 %v3378, %v3374
        %v3383 = vpack.c.bf16 %v3379, %v3375
        %v3384 = vpack.c.bf16 %v3380, %v3376
        %s3385 = scalar_lea.vmem %s10, 256
        %v3386 = vld [vmem:[%s3385] sm:$0xf]
        %v3387 = vld [vmem:[%s3385 + $0x4] sm:$0xf]
        %v3388 = vld [vmem:[%s3385 + $0x8] sm:$0xf]
        %v3389 = vld [vmem:[%s3385 + $0xc] sm:$0xf]
        %v3390 = vld [vmem:[%s3385 + $0x10] sm:$0xf]
        %v3391 = vld [vmem:[%s3385 + $0x14] sm:$0xf]
        %v3392 = vld [vmem:[%s3385 + $0x18] sm:$0xf]
        %v3393 = vld [vmem:[%s3385 + $0x1c] sm:$0xf]
        %v3394 = vld [vmem:[%s3385 + $0x20] sm:$0xf]
        %v3395 = vld [vmem:[%s3385 + $0x24] sm:$0xf]
        %v3396 = vld [vmem:[%s3385 + $0x28] sm:$0xf]
        %v3397 = vld [vmem:[%s3385 + $0x2c] sm:$0xf]
        %v3398 = vld [vmem:[%s3385 + $0x30] sm:$0xf]
        %v3399 = vld [vmem:[%s3385 + $0x34] sm:$0xf]
        %v3400 = vld [vmem:[%s3385 + $0x38] sm:$0xf]
        %v3401 = vld [vmem:[%s3385 + $0x3c] sm:$0xf]
        %v3402 = vld [vmem:[%s3385 + $0x40] sm:$0xf]
        %v3403 = vld [vmem:[%s3385 + $0x44] sm:$0xf]
        %v3404 = vld [vmem:[%s3385 + $0x48] sm:$0xf]
        %v3405 = vld [vmem:[%s3385 + $0x4c] sm:$0xf]
        %v3406 = vld [vmem:[%s3385 + $0x50] sm:$0xf]
        %v3407 = vld [vmem:[%s3385 + $0x54] sm:$0xf]
        %v3408 = vld [vmem:[%s3385 + $0x58] sm:$0xf]
        %v3409 = vld [vmem:[%s3385 + $0x5c] sm:$0xf]
        %v3410 = vld [vmem:[%s3385 + $0x60] sm:$0xf]
        %v3411 = vld [vmem:[%s3385 + $0x64] sm:$0xf]
        %v3412 = vld [vmem:[%s3385 + $0x68] sm:$0xf]
        %v3413 = vld [vmem:[%s3385 + $0x6c] sm:$0xf]
        %v3414 = vld [vmem:[%s3385 + $0x70] sm:$0xf]
        %v3415 = vld [vmem:[%s3385 + $0x74] sm:$0xf]
        %v3416 = vld [vmem:[%s3385 + $0x78] sm:$0xf]
        %v3417 = vld [vmem:[%s3385 + $0x7c] sm:$0xf]
        %v3418 = vld [vmem:[%s3385 + $0x80] sm:$0xf]
        %v3419 = vld [vmem:[%s3385 + $0x84] sm:$0xf]
        %v3420 = vld [vmem:[%s3385 + $0x88] sm:$0xf]
        %v3421 = vld [vmem:[%s3385 + $0x8c] sm:$0xf]
        %v3422 = vld [vmem:[%s3385 + $0x90] sm:$0xf]
        %v3423 = vld [vmem:[%s3385 + $0x94] sm:$0xf]
        %v3424 = vld [vmem:[%s3385 + $0x98] sm:$0xf]
        %v3425 = vld [vmem:[%s3385 + $0x9c] sm:$0xf]
        %v3426 = vld [vmem:[%s3385 + $0xa0] sm:$0xf]
        %v3427 = vld [vmem:[%s3385 + $0xa4] sm:$0xf]
        %v3428 = vld [vmem:[%s3385 + $0xa8] sm:$0xf]
        %v3429 = vld [vmem:[%s3385 + $0xac] sm:$0xf]
        %v3430 = vld [vmem:[%s3385 + $0xb0] sm:$0xf]
        %v3431 = vld [vmem:[%s3385 + $0xb4] sm:$0xf]
        %v3432 = vld [vmem:[%s3385 + $0xb8] sm:$0xf]
        %v3433 = vld [vmem:[%s3385 + $0xbc] sm:$0xf]
        %v3434 = vld [vmem:[%s3385 + $0xc0] sm:$0xf]
        %v3435 = vld [vmem:[%s3385 + $0xc4] sm:$0xf]
        %v3436 = vld [vmem:[%s3385 + $0xc8] sm:$0xf]
        %v3437 = vld [vmem:[%s3385 + $0xcc] sm:$0xf]
        %v3438 = vld [vmem:[%s3385 + $0xd0] sm:$0xf]
        %v3439 = vld [vmem:[%s3385 + $0xd4] sm:$0xf]
        %v3440 = vld [vmem:[%s3385 + $0xd8] sm:$0xf]
        %v3441 = vld [vmem:[%s3385 + $0xdc] sm:$0xf]
        %v3442 = vld [vmem:[%s3385 + $0xe0] sm:$0xf]
        %v3443 = vld [vmem:[%s3385 + $0xe4] sm:$0xf]
        %v3444 = vld [vmem:[%s3385 + $0xe8] sm:$0xf]
        %v3445 = vld [vmem:[%s3385 + $0xec] sm:$0xf]
        %v3446 = vld [vmem:[%s3385 + $0xf0] sm:$0xf]
        %v3447 = vld [vmem:[%s3385 + $0xf4] sm:$0xf]
        %v3448 = vld [vmem:[%s3385 + $0xf8] sm:$0xf]
        %v3449 = vld [vmem:[%s3385 + $0xfc] sm:$0xf]
        %s3450 = scalar_lea.vmem %s11, 1
        %v3451 = vld [vmem:[%s3450] sm:$0x1]
        %v3453 = vlaneseq
        %v3454 = vshrl.u32 %v3453, 7
        %v3455 = vsub.s32 0, %v3454
        %v3456 = vrot.slane %v3451, %v3455
        %v3522 = vunpack.c.l.b16 %v3386
        %v3523 = vunpack.c.l.b16 %v3387
        %v3524 = vunpack.c.l.b16 %v3388
        %v3525 = vunpack.c.l.b16 %v3389
        %v3526 = vunpack.c.l.b16 %v3390
        %v3527 = vunpack.c.l.b16 %v3391
        %v3528 = vunpack.c.l.b16 %v3392
        %v3529 = vunpack.c.l.b16 %v3393
        %v3530 = vunpack.c.l.b16 %v3394
        %v3531 = vunpack.c.l.b16 %v3395
        %v3532 = vunpack.c.l.b16 %v3396
        %v3533 = vunpack.c.l.b16 %v3397
        %v3534 = vunpack.c.l.b16 %v3398
        %v3535 = vunpack.c.l.b16 %v3399
        %v3536 = vunpack.c.l.b16 %v3400
        %v3537 = vunpack.c.l.b16 %v3401
        %v3538 = vunpack.c.l.b16 %v3402
        %v3539 = vunpack.c.l.b16 %v3403
        %v3540 = vunpack.c.l.b16 %v3404
        %v3541 = vunpack.c.l.b16 %v3405
        %v3542 = vunpack.c.l.b16 %v3406
        %v3543 = vunpack.c.l.b16 %v3407
        %v3544 = vunpack.c.l.b16 %v3408
        %v3545 = vunpack.c.l.b16 %v3409
        %v3546 = vunpack.c.l.b16 %v3410
        %v3547 = vunpack.c.l.b16 %v3411
        %v3548 = vunpack.c.l.b16 %v3412
        %v3549 = vunpack.c.l.b16 %v3413
        %v3550 = vunpack.c.l.b16 %v3414
        %v3551 = vunpack.c.l.b16 %v3415
        %v3552 = vunpack.c.l.b16 %v3416
        %v3553 = vunpack.c.l.b16 %v3417
        %v3554 = vunpack.c.l.b16 %v3418
        %v3555 = vunpack.c.l.b16 %v3419
        %v3556 = vunpack.c.l.b16 %v3420
        %v3557 = vunpack.c.l.b16 %v3421
        %v3558 = vunpack.c.l.b16 %v3422
        %v3559 = vunpack.c.l.b16 %v3423
        %v3560 = vunpack.c.l.b16 %v3424
        %v3561 = vunpack.c.l.b16 %v3425
        %v3562 = vunpack.c.l.b16 %v3426
        %v3563 = vunpack.c.l.b16 %v3427
        %v3564 = vunpack.c.l.b16 %v3428
        %v3565 = vunpack.c.l.b16 %v3429
        %v3566 = vunpack.c.l.b16 %v3430
        %v3567 = vunpack.c.l.b16 %v3431
        %v3568 = vunpack.c.l.b16 %v3432
        %v3569 = vunpack.c.l.b16 %v3433
        %v3570 = vunpack.c.l.b16 %v3434
        %v3571 = vunpack.c.l.b16 %v3435
        %v3572 = vunpack.c.l.b16 %v3436
        %v3573 = vunpack.c.l.b16 %v3437
        %v3574 = vunpack.c.l.b16 %v3438
        %v3575 = vunpack.c.l.b16 %v3439
        %v3576 = vunpack.c.l.b16 %v3440
        %v3577 = vunpack.c.l.b16 %v3441
        %v3578 = vunpack.c.l.b16 %v3442
        %v3579 = vunpack.c.l.b16 %v3443
        %v3580 = vunpack.c.l.b16 %v3444
        %v3581 = vunpack.c.l.b16 %v3445
        %v3582 = vunpack.c.l.b16 %v3446
        %v3583 = vunpack.c.l.b16 %v3447
        %v3584 = vunpack.c.l.b16 %v3448
        %v3585 = vunpack.c.l.b16 %v3449
        %v3586 = vpack.c.b16 %v3523, %v3522
        %v3587 = vpack.c.b16 %v3525, %v3524
        %v3588 = vpack.c.b16 %v3527, %v3526
        %v3589 = vpack.c.b16 %v3529, %v3528
        %v3590 = vpack.c.b16 %v3531, %v3530
        %v3591 = vpack.c.b16 %v3533, %v3532
        %v3592 = vpack.c.b16 %v3535, %v3534
        %v3593 = vpack.c.b16 %v3537, %v3536
        %v3594 = vpack.c.b16 %v3539, %v3538
        %v3595 = vpack.c.b16 %v3541, %v3540
        %v3596 = vpack.c.b16 %v3543, %v3542
        %v3597 = vpack.c.b16 %v3545, %v3544
        %v3598 = vpack.c.b16 %v3547, %v3546
        %v3599 = vpack.c.b16 %v3549, %v3548
        %v3600 = vpack.c.b16 %v3551, %v3550
        %v3601 = vpack.c.b16 %v3553, %v3552
        %v3602 = vpack.c.b16 %v3555, %v3554
        %v3603 = vpack.c.b16 %v3557, %v3556
        %v3604 = vpack.c.b16 %v3559, %v3558
        %v3605 = vpack.c.b16 %v3561, %v3560
        %v3606 = vpack.c.b16 %v3563, %v3562
        %v3607 = vpack.c.b16 %v3565, %v3564
        %v3608 = vpack.c.b16 %v3567, %v3566
        %v3609 = vpack.c.b16 %v3569, %v3568
        %v3610 = vpack.c.b16 %v3571, %v3570
        %v3611 = vpack.c.b16 %v3573, %v3572
        %v3612 = vpack.c.b16 %v3575, %v3574
        %v3613 = vpack.c.b16 %v3577, %v3576
        %v3614 = vpack.c.b16 %v3579, %v3578
        %v3615 = vpack.c.b16 %v3581, %v3580
        %v3616 = vpack.c.b16 %v3583, %v3582
        %v3617 = vpack.c.b16 %v3585, %v3584
        %3650 = vmatprep.subr.bf16.mxu0 0
        %3651 = vmatpush1.bf16.msra.mxu0 %v3586
        %3652 = vmatprep.subr.bf16.mxu0 0
        %3653 = vmatpush1.bf16.msra.mxu0 %v3587
        %3654 = vmatprep.subr.bf16.mxu0 0
        %3655 = vmatpush1.bf16.msra.mxu0 %v3588
        %3656 = vmatprep.subr.bf16.mxu0 0
        %3657 = vmatpush1.bf16.msra.mxu0 %v3589
        %3658 = vmatprep.subr.bf16.mxu0 0
        %3659 = vmatpush1.bf16.msra.mxu0 %v3590
        %3660 = vmatprep.subr.bf16.mxu0 0
        %3661 = vmatpush1.bf16.msra.mxu0 %v3591
        %3662 = vmatprep.subr.bf16.mxu0 0
        %3663 = vmatpush1.bf16.msra.mxu0 %v3592
        %3664 = vmatprep.subr.bf16.mxu0 0
        %3665 = vmatpush1.bf16.msra.mxu0 %v3593
        %3666 = vmatprep.subr.bf16.mxu0 0
        %3667 = vmatpush1.bf16.msra.mxu0 %v3594
        %3668 = vmatprep.subr.bf16.mxu0 0
        %3669 = vmatpush1.bf16.msra.mxu0 %v3595
        %3670 = vmatprep.subr.bf16.mxu0 0
        %3671 = vmatpush1.bf16.msra.mxu0 %v3596
        %3672 = vmatprep.subr.bf16.mxu0 0
        %3673 = vmatpush1.bf16.msra.mxu0 %v3597
        %3674 = vmatprep.subr.bf16.mxu0 0
        %3675 = vmatpush1.bf16.msra.mxu0 %v3598
        %3676 = vmatprep.subr.bf16.mxu0 0
        %3677 = vmatpush1.bf16.msra.mxu0 %v3599
        %3678 = vmatprep.subr.bf16.mxu0 0
        %3679 = vmatpush1.bf16.msra.mxu0 %v3600
        %3680 = vmatprep.subr.bf16.mxu0 0
        %3681 = vmatpush1.bf16.msra.mxu0 %v3601
        %3682 = vmatprep.mubr.bf16.mxu0 %v3382
        %3683 = vmatmul.mubr.bf16.gmra.mrb[0].mxu0 %v3381
        %v3684 = vpop.f32.mrb[0].mxu0
        %v3685 = vadd.f32 %v3456, %v3684
        %v3686 = vpop.f32.mrb[0].mxu0
        %v3687 = vpop.f32.mrb[0].mxu0
        %v3688 = vadd.f32 %v3456, %v3687
        %v3689 = vpop.f32.mrb[0].mxu0
        %3690 = vdwg.mxu0
        %3691 = vmatprep.subr.bf16.mxu0 0
        %3692 = vmatpush1.bf16.msra.mxu0 %v3602
        %3693 = vmatprep.subr.bf16.mxu0 0
        %3694 = vmatpush1.bf16.msra.mxu0 %v3603
        %3695 = vmatprep.subr.bf16.mxu0 0
        %3696 = vmatpush1.bf16.msra.mxu0 %v3604
        %3697 = vmatprep.subr.bf16.mxu0 0
        %3698 = vmatpush1.bf16.msra.mxu0 %v3605
        %3699 = vmatprep.subr.bf16.mxu0 0
        %3700 = vmatpush1.bf16.msra.mxu0 %v3606
        %3701 = vmatprep.subr.bf16.mxu0 0
        %3702 = vmatpush1.bf16.msra.mxu0 %v3607
        %3703 = vmatprep.subr.bf16.mxu0 0
        %3704 = vmatpush1.bf16.msra.mxu0 %v3608
        %3705 = vmatprep.subr.bf16.mxu0 0
        %3706 = vmatpush1.bf16.msra.mxu0 %v3609
        %3707 = vmatprep.subr.bf16.mxu0 0
        %3708 = vmatpush1.bf16.msra.mxu0 %v3610
        %3709 = vmatprep.subr.bf16.mxu0 0
        %3710 = vmatpush1.bf16.msra.mxu0 %v3611
        %3711 = vmatprep.subr.bf16.mxu0 0
        %3712 = vmatpush1.bf16.msra.mxu0 %v3612
        %3713 = vmatprep.subr.bf16.mxu0 0
        %3714 = vmatpush1.bf16.msra.mxu0 %v3613
        %3715 = vmatprep.subr.bf16.mxu0 0
        %3716 = vmatpush1.bf16.msra.mxu0 %v3614
        %3717 = vmatprep.subr.bf16.mxu0 0
        %3718 = vmatpush1.bf16.msra.mxu0 %v3615
        %3719 = vmatprep.subr.bf16.mxu0 0
        %3720 = vmatpush1.bf16.msra.mxu0 %v3616
        %3721 = vmatprep.subr.bf16.mxu0 0
        %3722 = vmatpush1.bf16.msra.mxu0 %v3617
        %3723 = vmatprep.mubr.bf16.mxu0 %v3384
        %3724 = vmatmul.mubr.bf16.gmra.mrb[0].mxu0 %v3383
        %v3725 = vpop.f32.mrb[0].mxu0
        %v3726 = vadd.f32 %v3685, %v3725
        %v3727 = vpop.f32.mrb[0].mxu0
        %v3728 = vpop.f32.mrb[0].mxu0
        %v3729 = vadd.f32 %v3688, %v3728
        %v3730 = vpop.f32.mrb[0].mxu0
        %3731 = vdwg.mxu0
        %v3732 = vadd.f32 %v3026, %v3726
        %v3733 = vadd.f32 %v3027, %v3729
        %v3734 = vpack.c.bf16 %v3733, %v3732
        %v3735 = vld [vmem:[%s12] sm:$0xf]
        %v3736 = vld [vmem:[%s12 + $0x4] sm:$0xf]
        %v3737 = vld [vmem:[%s12 + $0x8] sm:$0xf]
        %v3738 = vld [vmem:[%s12 + $0xc] sm:$0xf]
        %v3739 = vld [vmem:[%s12 + $0x10] sm:$0xf]
        %v3740 = vld [vmem:[%s12 + $0x14] sm:$0xf]
        %v3741 = vld [vmem:[%s12 + $0x18] sm:$0xf]
        %v3742 = vld [vmem:[%s12 + $0x1c] sm:$0xf]
        %v3743 = vld [vmem:[%s12 + $0x20] sm:$0xf]
        %v3744 = vld [vmem:[%s12 + $0x24] sm:$0xf]
        %v3745 = vld [vmem:[%s12 + $0x28] sm:$0xf]
        %v3746 = vld [vmem:[%s12 + $0x2c] sm:$0xf]
        %v3747 = vld [vmem:[%s12 + $0x30] sm:$0xf]
        %v3748 = vld [vmem:[%s12 + $0x34] sm:$0xf]
        %v3749 = vld [vmem:[%s12 + $0x38] sm:$0xf]
        %v3750 = vld [vmem:[%s12 + $0x3c] sm:$0xf]
        %v3751 = vld [vmem:[%s13] sm:$0x1]
        %v3753 = vlaneseq
        %v3754 = vshrl.u32 %v3753, 7
        %v3755 = vsub.s32 0, %v3754
        %v3756 = vrot.slane %v3751, %v3755
        %v3774 = vunpack.c.l.b16 %v3735
        %v3775 = vunpack.c.l.b16 %v3736
        %v3776 = vunpack.c.l.b16 %v3737
        %v3777 = vunpack.c.l.b16 %v3738
        %v3778 = vunpack.c.l.b16 %v3739
        %v3779 = vunpack.c.l.b16 %v3740
        %v3780 = vunpack.c.l.b16 %v3741
        %v3781 = vunpack.c.l.b16 %v3742
        %v3782 = vunpack.c.l.b16 %v3743
        %v3783 = vunpack.c.l.b16 %v3744
        %v3784 = vunpack.c.l.b16 %v3745
        %v3785 = vunpack.c.l.b16 %v3746
        %v3786 = vunpack.c.l.b16 %v3747
        %v3787 = vunpack.c.l.b16 %v3748
        %v3788 = vunpack.c.l.b16 %v3749
        %v3789 = vunpack.c.l.b16 %v3750
        %v3790 = vpack.c.b16 %v3775, %v3774
        %v3791 = vpack.c.b16 %v3777, %v3776
        %v3792 = vpack.c.b16 %v3779, %v3778
        %v3793 = vpack.c.b16 %v3781, %v3780
        %v3794 = vpack.c.b16 %v3783, %v3782
        %v3795 = vpack.c.b16 %v3785, %v3784
        %v3796 = vpack.c.b16 %v3787, %v3786
        %v3797 = vpack.c.b16 %v3789, %v3788
        %3806 = vmatprep.subr.bf16.mxu0 0
        %3807 = vmatpush1.bf16.msra.mxu0 %v3790
        %3808 = vmatprep.subr.bf16.mxu0 0
        %3809 = vmatpush1.bf16.msra.mxu0 %v3791
        %3810 = vmatprep.subr.bf16.mxu0 0
        %3811 = vmatpush1.bf16.msra.mxu0 %v3792
        %3812 = vmatprep.subr.bf16.mxu0 0
        %3813 = vmatpush1.bf16.msra.mxu0 %v3793
        %3814 = vmatprep.subr.bf16.mxu0 0
        %3815 = vmatpush1.bf16.msra.mxu0 %v3794
        %3816 = vmatprep.subr.bf16.mxu0 0
        %3817 = vmatpush1.bf16.msra.mxu0 %v3795
        %3818 = vmatprep.subr.bf16.mxu0 0
        %3819 = vmatpush1.bf16.msra.mxu0 %v3796
        %3820 = vmatprep.subr.bf16.mxu0 0
        %3821 = vmatpush1.bf16.msra.mxu0 %v3797
        %3822 = vmatprep.subr.bf16.mxu0 0
        %3823 = vmatpush1.bf16.msra.mxu0 0
        %3824 = vmatprep.subr.bf16.mxu0 0
        %3825 = vmatpush1.bf16.msra.mxu0 0
        %3826 = vmatprep.subr.bf16.mxu0 0
        %3827 = vmatpush1.bf16.msra.mxu0 0
        %3828 = vmatprep.subr.bf16.mxu0 0
        %3829 = vmatpush1.bf16.msra.mxu0 0
        %3830 = vmatprep.subr.bf16.mxu0 0
        %3831 = vmatpush1.bf16.msra.mxu0 0
        %3832 = vmatprep.subr.bf16.mxu0 0
        %3833 = vmatpush1.bf16.msra.mxu0 0
        %3834 = vmatprep.subr.bf16.mxu0 0
        %3835 = vmatpush1.bf16.msra.mxu0 0
        %3836 = vmatprep.subr.bf16.mxu0 0
        %3837 = vmatpush1.bf16.msra.mxu0 0
        %3838 = vmatprep.mubr.bf16.mxu0 0
        %3839 = vmatmul.mubr.bf16.gmra.mrb[0].mxu0 %v3734
        %v3840 = vpop.f32.mrb[0].mxu0
        %v3841 = vadd.f32 %v3756, %v3840
        %v3842 = vpop.f32.mrb[0].mxu0
        %v3843 = vpop.f32.mrb[0].mxu0
        %v3844 = vadd.f32 %v3756, %v3843
        %v3845 = vpop.f32.mrb[0].mxu0
        %3846 = vdwg.mxu0
        %3847 = vst [vmem:[%s460] sm:$0xff] %v3841
        %3848 = vst [vmem:[%s460 + $0x8] sm:$0xff] %v3844
        %s3849 = sand.u32 %s335, 1
        %s3850 = scalar_lea.sflag [#allocation3], %s3849
        %s3851 = sand.u32 %s335, 1
        %s3852 = smul.addr %s3851, 16
        %s3853 = scalar_lea.vmem [#allocation2], %s3852
        // Predicated region
        $region77: #{forward.1} parent=75 // pred_check
          %p3854 = pneg %p345
        $region78: #{forward.1} parent=75 // pred_check_branch
          %3856 = sbr.rel (%p3854) target = $region80
        $region79: #{forward.1} parent=75 // pred_region
          %s3858 = ssub.s32 256, 256
          %3859 = vsyncadd %s3850, %s3858
          %s3860 = smul.addr %s28, 2
          %s3861 = smul.addr %s3860, 128
          %s3862 = scalar_lea.hbm %s14, %s3861
          %s3863 = sshll.u32 %s3853, 4
          %s3864 = int_to_ptr.vmem [resolvable:$true] %s3863
          %3869 = dma.vmem_to_hbm [thread:$0]  %s3864, 256, %s3862, %s3850, 128, 128, 8
        $region80: #{forward.1} parent=75 // pred_fallthru
          _
      $region76: #{forward.1} parent=5 // pred_fallthru
        _
      %p3870 = scmp.le.s32.totalorder 2, %s23
      // Predicated region
      $region81: #{forward.1} parent=5 // pred_check
        %p3871 = pneg %p3870
      $region82: #{forward.1} parent=5 // pred_check_branch
        %3873 = sbr.rel (%p3871) target = $region84
      $region83: #{forward.1} parent=5 // pred_region
        %s3874 = ssub.s32 %s23, 2
        // Predicated region
        $region85: #{forward.1} parent=83 // pred_check
          %p3875 = pneg %p351
        $region86: #{forward.1} parent=83 // pred_check_branch
          %3877 = sbr.rel (%p3875) target = $region88
        $region87: #{forward.1} parent=83 // pred_region
          %s3878 = sand.u32 %s336, 1
          %s3879 = scalar_lea.sflag [#allocation3], %s3878
          %s3880 = sand.u32 %s336, 1
          %s3881 = smul.addr %s3880, 16
          %s3882 = scalar_lea.vmem [#allocation2], %s3881
          %3883 = dma.done %s3879, 256
        $region88: #{forward.1} parent=83 // pred_fallthru
          _
      $region84: #{forward.1} parent=5 // pred_fallthru
        _
    $region6: #{forward.1} parent=1 // loop_footer
      %s27 = sadd.s32 1, %s23
    $region7: #{forward.1} parent=1 // loop_footer_branch
      %22 = sbr.rel target = $region3
    $region8: #{forward.1} parent=1 // loop_exit
      _
    %3884 = vsyncpa [#allocation3], 1
    %s3885 = scalar_lea.sflag [#allocation3], 1
    %3886 = vsyncpa %s3885, 1

</llo_original>
